<compile_context>
chip_gen: v5e
topology: v5e:2x2
jax: 0.10.0
libtpu: 0.0.40
codegen_flags: <defaults>
</compile_context>

<pallas_src>
import math
import jax
import jax.numpy as jnp
from jax.experimental import pallas as pl
from jax.experimental.pallas import tpu as pltpu

EPS = 1e-5
LEAKY_SLOPE = 0.1
MXU_DTYPE = jnp.bfloat16            # matmul operand dtype (f32 accumulation)
VMEM_LIMIT_BYTES = 32 * 1024 * 1024  # safe on v5e/v6e (128 MiB) and v7x (64 MiB)
TARGET_PIXELS = 1024                 # ~output rows per matmul tile
TARGET_ROWS_ELTWISE = 4096           # rows per tile for the elementwise pass


def _pick_row_tile(rows, pixels_per_row, target_pixels, align=8):
    """Largest divisor `tr` of `rows` such that tr*pixels_per_row <= target and is
    a multiple of `align`. Falls back to `rows` (full-extent block is always legal)."""
    best = rows
    for tr in range(1, rows + 1):
        blk = tr * pixels_per_row
        if rows % tr == 0 and blk <= target_pixels and blk % align == 0:
            best = tr
    return best


# ---------------------------------------------------------------------------
# Kernels
# ---------------------------------------------------------------------------
def _conv3x3_stats_kernel(xr_ref, wk_ref, y_ref, st_ref):
    """3x3 conv (3 kx-shifted MXU dots over the ky-stacked input) fused with
    per-tile BatchNorm partial statistics.

    xr_ref: (TR, W+2, 3*Cin)  bf16   ky-stacked, width-padded input rows
    wk_ref: (3, 3*Cin, Cout)  bf16   weights regrouped per kx
    y_ref : (TR*W, Cout)      f32    raw conv output (pre-BN)
    st_ref: (1, 2, Cout)      f32    per-tile [sum ; sum_of_squares]
    """
    tr, wp, k = xr_ref.shape
    w_out = wp - 2
    cout = y_ref.shape[-1]

    # Upcast once so the kx-shifted sub-slices stay layout-trivial (f32);
    # operands are re-cast to bf16 right before the MXU dot.
    xr = xr_ref[...].astype(jnp.float32)

    acc = jnp.zeros((tr * w_out, cout), jnp.float32)
    for kx in range(3):
        xk = xr[:, kx:kx + w_out, :].reshape(tr * w_out, k).astype(MXU_DTYPE)
        acc = acc + jnp.dot(xk, wk_ref[kx], preferred_element_type=jnp.float32)

    y_ref[...] = acc
    s = jnp.sum(acc, axis=0, keepdims=True)          # (1, Cout)
    ss = jnp.sum(acc * acc, axis=0, keepdims=True)   # (1, Cout)
    st_ref[...] = jnp.concatenate([s, ss], axis=0).reshape(1, 2, cout)


def _bn_lrelu_kernel(y_ref, sc_ref, sh_ref, o_ref):
    """Folded BatchNorm affine + LeakyReLU(0.1); f32 in, bf16 out."""
    z = y_ref[...] * sc_ref[...] + sh_ref[...]
    o_ref[...] = jnp.where(z > 0, z, LEAKY_SLOPE * z).astype(o_ref.dtype)


def _down_fused_kernel(x_ref, sc_ref, sh_ref, w_ref, b_ref, o_ref):
    """Fused: BN affine + LeakyReLU of the last conv layer, then Conv2d(k=2,s=2)
    as 4 accumulated MXU dots (no patch materialization), bias and ReLU.

    x_ref : (TRo, 2, Wo, 2*C) f32   raw conv-3 output, rows/cols paired
    sc_ref, sh_ref : (1, C)   f32   folded BN scale / shift of conv-3
    w_ref : (2, 2, C, Cout)   bf16  downsample weights
    b_ref : (1, Cout)         f32   downsample bias
    o_ref : (TRo*Wo, Cout)    f32
    """
    tro, _, wo, twoc = x_ref.shape
    c = twoc // 2
    cout = o_ref.shape[-1]

    x = x_ref[...]
    sc = sc_ref[...]
    sh = sh_ref[...]

    acc = jnp.zeros((tro * wo, cout), jnp.float32)
    for dy in range(2):
        for dx in range(2):
            xs = x[:, dy, :, dx * c:(dx + 1) * c].reshape(tro * wo, c)
            a = xs * sc + sh                               # BN affine (f32)
            a = jnp.where(a > 0, a, LEAKY_SLOPE * a)       # LeakyReLU(0.1)
            acc = acc + jnp.dot(a.astype(MXU_DTYPE), w_ref[dy, dx],
                                preferred_element_type=jnp.float32)

    o_ref[...] = jnp.maximum(acc + b_ref[...], 0.0)        # bias + ReLU


# ---------------------------------------------------------------------------
# Wrappers (glue: padding, ky row-stack, reshapes, stats finalization)
# ---------------------------------------------------------------------------
def _conv3x3_bn_stats(x_nhwc, w):
    """3x3/s1/p1 bias-free conv + BatchNorm batch statistics.

    Returns (y, mean, var): y is the raw conv output flattened to (B*H*W, Cout)
    f32; mean/var are the biased per-channel batch statistics of y.
    """
    B, H, W, Cin = x_nhwc.shape
    Cout = w.shape[-1]
    Wp, K = W + 2, 3 * Cin
    M = B * H * W

    # ky-stacked, width-padded input (3x, not 9x, HBM expansion):
    #   xrows[b*H + h, w', ky*Cin + c] = x_padded[b, h + ky, w', c]
    xp = jnp.pad(x_nhwc.astype(MXU_DTYPE), ((0, 0), (1, 1), (1, 1), (0, 0)))
    xrows = jnp.concatenate([xp[:, ky:ky + H] for ky in range(3)], axis=-1)
    xrows = xrows.reshape(B * H, Wp, K)
    # weights regrouped per kx: wk[kx, ky*Cin + c, co] = w[ky, kx, c, co]
    wk = jnp.transpose(w, (1, 0, 2, 3)).reshape(3, K, Cout).astype(MXU_DTYPE)

    R = B * H
    TR = _pick_row_tile(R, W, TARGET_PIXELS, align=8)
    nT = R // TR

    flops = 2 * M * (9 * Cin) * Cout
    bytes_accessed = xrows.size * 2 + wk.size * 2 + M * Cout * 4 + nT * 2 * Cout * 4

    y, stats = pl.pallas_call(
        _conv3x3_stats_kernel,
        out_shape=(jax.ShapeDtypeStruct((M, Cout), jnp.float32),
                   jax.ShapeDtypeStruct((nT, 2, Cout), jnp.float32)),
        grid=(nT,),
        in_specs=[pl.BlockSpec((TR, Wp, K), lambda i: (i, 0, 0)),
                  pl.BlockSpec((3, K, Cout), lambda i: (0, 0, 0))],
        out_specs=(pl.BlockSpec((TR * W, Cout), lambda i: (i, 0)),
                   pl.BlockSpec((1, 2, Cout), lambda i: (i, 0, 0))),
        compiler_params=pltpu.CompilerParams(
            dimension_semantics=("parallel",),
            vmem_limit_bytes=VMEM_LIMIT_BYTES),
        cost_estimate=pl.CostEstimate(flops=flops, transcendentals=0,
                                      bytes_accessed=bytes_accessed),
    )(xrows, wk)

    ssum = jnp.sum(stats[:, 0, :], axis=0)
    ssq = jnp.sum(stats[:, 1, :], axis=0)
    mean = ssum / M
    var = jnp.maximum(ssq / M - mean * mean, 0.0)   # biased batch variance
    return y, mean, var


def _bn_lrelu_apply(y, scale, shift, out_dtype=MXU_DTYPE):
    """Pass 2: apply folded BN affine + LeakyReLU, tiled over rows."""
    M, C = y.shape
    TM = _pick_row_tile(M, 1, TARGET_ROWS_ELTWISE, align=16)
    nT = M // TM
    return pl.pallas_call(
        _bn_lrelu_kernel,
        out_shape=jax.ShapeDtypeStruct((M, C), out_dtype),
        grid=(nT,),
        in_specs=[pl.BlockSpec((TM, C), lambda i: (i, 0)),
                  pl.BlockSpec((1, C), lambda i: (0, 0)),
                  pl.BlockSpec((1, C), lambda i: (0, 0))],
        out_specs=pl.BlockSpec((TM, C), lambda i: (i, 0)),
        compiler_params=pltpu.CompilerParams(
            dimension_semantics=("parallel",),
            vmem_limit_bytes=VMEM_LIMIT_BYTES),
        cost_estimate=pl.CostEstimate(flops=4 * M * C, transcendentals=0,
                                      bytes_accessed=M * C * 4 + M * C * 2 + 2 * C * 4),
    )(y, scale.reshape(1, C).astype(jnp.float32),
      shift.reshape(1, C).astype(jnp.float32))


def _down2x2_fused(y3, scale, shift, w, b, B, H, W):
    """Fused BN+LeakyReLU of conv-3 followed by Conv2d(k=2, s=2) + bias + ReLU."""
    C = y3.shape[-1]
    Cout = w.shape[-1]
    Ho, Wo = H // 2, W // 2
    Mo = B * Ho * Wo

    # (B*H*W, C) -> (B*Ho, 2, Wo, 2*C): pure reshapes pairing rows/cols so that
    #   x[r, dy, wo, dx*C + c] = y3[b, 2*ho + dy, 2*wo + dx, c]  with r = b*Ho + ho
    x = y3.reshape(B, Ho, 2, Wo, 2, C).reshape(B * Ho, 2, Wo, 2 * C)

    R = B * Ho
    TRo = _pick_row_tile(R, Wo, TARGET_PIXELS, align=8)
    nT = R // TRo

    flops = 2 * Mo * (4 * C) * Cout + 6 * Mo * 4 * C
    bytes_accessed = x.size * 4 + w.size * 2 + Mo * Cout * 4 + 2 * C * 4 + Cout * 4

    out = pl.pallas_call(
        _down_fused_kernel,
        out_shape=jax.ShapeDtypeStruct((Mo, Cout), jnp.float32),
        grid=(nT,),
        in_specs=[pl.BlockSpec((TRo, 2, Wo, 2 * C), lambda i: (i, 0, 0, 0)),
                  pl.BlockSpec((1, C), lambda i: (0, 0)),
                  pl.BlockSpec((1, C), lambda i: (0, 0)),
                  pl.BlockSpec((2, 2, C, Cout), lambda i: (0, 0, 0, 0)),
                  pl.BlockSpec((1, Cout), lambda i: (0, 0))],
        out_specs=pl.BlockSpec((TRo * Wo, Cout), lambda i: (i, 0)),
        compiler_params=pltpu.CompilerParams(
            dimension_semantics=("parallel",),
            vmem_limit_bytes=VMEM_LIMIT_BYTES),
        cost_estimate=pl.CostEstimate(flops=flops, transcendentals=0,
                                      bytes_accessed=bytes_accessed),
    )(x, scale.reshape(1, C).astype(jnp.float32),
      shift.reshape(1, C).astype(jnp.float32),
      w.astype(MXU_DTYPE), b.reshape(1, Cout).astype(jnp.float32))
    return out.reshape(B, Ho, Wo, Cout)


# ---------------------------------------------------------------------------
# Parameter init (deterministic, matches PyTorch shapes / init schemes)
# ---------------------------------------------------------------------------
def init_convblock_params(key, in_channels, out_channels, n_convs=3):
    params = {"convs": [], "bns": []}
    c_in = in_channels
    for _ in range(n_convs):
        key, sub = jax.random.split(key)
        fan_in, fan_out = c_in * 9, out_channels * 9
        bound = math.sqrt(6.0 / (fan_in + fan_out))                 # xavier_uniform_
        w = jax.random.uniform(sub, (3, 3, c_in, out_channels),
                               jnp.float32, -bound, bound)
        params["convs"].append(w)
        params["bns"].append(
            {"gamma": jnp.ones((out_channels,), jnp.float32),
             "beta": jnp.zeros((out_channels,), jnp.float32)}
        )
        c_in = out_channels
    # downsample conv: k=2, s=2, bias=True
    key, sub_w, sub_b = jax.random.split(key, 3)
    fan_in = out_channels * 4
    fan_out = out_channels * 4
    bound = math.sqrt(6.0 / (fan_in + fan_out))                     # xavier_uniform_
    params["down_w"] = jax.random.uniform(
        sub_w, (2, 2, out_channels, out_channels), jnp.float32, -bound, bound)
    bb = 1.0 / math.sqrt(fan_in)                                    # PyTorch default bias init
    params["down_b"] = jax.random.uniform(
        sub_b, (out_channels,), jnp.float32, -bb, bb)
    return params


def convblock_forward(params, x_nchw):
    """x_nchw: (B, C_in, H, W) -> (B, C_out, H//2, W//2), matching PyTorch NCHW."""
    x = jnp.transpose(x_nchw, (0, 2, 3, 1)).astype(jnp.float32)     # -> NHWC
    B, H, W, _ = x.shape
    if H % 2 or W % 2:
        raise ValueError("ConvBlock downsample expects even H and W")

    n_convs = len(params["convs"])
    act = x
    y = scale = shift = None
    for li, (w, bn) in enumerate(zip(params["convs"], params["bns"])):
        Cout = w.shape[-1]
        y, mean, var = _conv3x3_bn_stats(act, w)                    # pass 1 (conv + stats)
        scale = bn["gamma"] * jax.lax.rsqrt(var + EPS)              # fold BN into affine
        shift = bn["beta"] - mean * scale
        if li < n_convs - 1:
            act = _bn_lrelu_apply(y, scale, shift).reshape(B, H, W, Cout)  # pass 2
        # last layer: its BN + LeakyReLU are fused into the downsample kernel

    out = _down2x2_fused(y, scale, shift, params["down_w"], params["down_b"], B, H, W)
    return jnp.transpose(out, (0, 3, 1, 2))                          # -> NCHW


# ---------------------------------------------------------------------------
if __name__ == "__main__":
    B, C_IN, C_OUT, H, W = 2, 4, 8, 16, 16
    key = jax.random.PRNGKey(0)
    key_x, key_p = jax.random.split(key)
    x = jax.random.normal(key_x, (B, C_IN, H, W), jnp.float32)
    params = init_convblock_params(key_p, C_IN, C_OUT, n_convs=3)

    out = jax.jit(convblock_forward)(params, x)
    out = jax.block_until_ready(out)
    assert out.shape == (B, C_OUT, H // 2, W // 2), out.shape
    assert bool(jnp.all(jnp.isfinite(out)))
    print("KERNEL_OK")
</pallas_src>

<mosaic_0001>
module attributes {stable_mosaic.version = 11 : i64} {
  func.func @_conv3x3_stats_kernel(%arg0: i32, %arg1: memref<32x18x12xbf16, #tpu.memory_space<vmem>>, %arg2: memref<3x12x8xbf16, #tpu.memory_space<vmem>>, %arg3: memref<512x8xf32, #tpu.memory_space<vmem>>, %arg4: memref<1x2x8xf32, #tpu.memory_space<vmem>>) attributes {dimension_semantics = [#tpu.dimension_semantics<parallel>], iteration_bounds = array<i64: 1>, scalar_prefetch = 0 : i64, scratch_operands = 0 : i64, tpu.core_type = #tpu.core_type<tc>, window_params = [{transform_indices = @transform_0, window_bounds = array<i64: 32, 18, 12>}, {pipeline_mode = #tpu.pipeline_mode<synchronous>, transform_indices = @transform_1, window_bounds = array<i64: 3, 12, 8>}, {transform_indices = @transform_2, window_bounds = array<i64: 512, 8>}, {transform_indices = @transform_3, window_bounds = array<i64: 1, 2, 8>}]} {
    %c0 = arith.constant 0 : index
    %c0_0 = arith.constant 0 : index
    %c0_1 = arith.constant 0 : index
    %0 = vector.load %arg1[%c0, %c0_0, %c0_1] : memref<32x18x12xbf16, #tpu.memory_space<vmem>>, vector<32x18x12xbf16>
    %1 = arith.extf %0 : vector<32x18x12xbf16> to vector<32x18x12xf32>
    %cst = arith.constant 0.000000e+00 : f32
    %2 = vector.broadcast %cst : f32 to vector<512x8xf32>
    %3 = vector.extract_strided_slice %1 {offsets = [0, 0, 0], sizes = [32, 16, 12], strides = [1, 1, 1]} : vector<32x18x12xf32> to vector<32x16x12xf32>
    %4 = vector.shape_cast %3 : vector<32x16x12xf32> to vector<512x12xf32>
    %5 = arith.truncf %4 : vector<512x12xf32> to vector<512x12xbf16>
    %c0_2 = arith.constant 0 : index
    %c0_3 = arith.constant 0 : index
    %c0_4 = arith.constant 0 : index
    %6 = vector.load %arg2[%c0_2, %c0_3, %c0_4] : memref<3x12x8xbf16, #tpu.memory_space<vmem>>, vector<1x12x8xbf16>
    %7 = vector.shape_cast %6 : vector<1x12x8xbf16> to vector<12x8xbf16>
    %cst_5 = arith.constant dense<0.000000e+00> : vector<512x8xf32>
    %8 = tpu.matmul %5, %7, %cst_5 {dimension_numbers = #tpu.dot_dimension_numbers<[1], [0], [0], [1], [0, 0, 1, 1], [], []>} : vector<512x12xbf16>, vector<12x8xbf16>, vector<512x8xf32> -> vector<512x8xf32>
    %9 = arith.addf %2, %8 : vector<512x8xf32>
    %10 = vector.extract_strided_slice %1 {offsets = [0, 1, 0], sizes = [32, 16, 12], strides = [1, 1, 1]} : vector<32x18x12xf32> to vector<32x16x12xf32>
    %11 = vector.shape_cast %10 : vector<32x16x12xf32> to vector<512x12xf32>
    %12 = arith.truncf %11 : vector<512x12xf32> to vector<512x12xbf16>
    %c1 = arith.constant 1 : index
    %c0_6 = arith.constant 0 : index
    %c0_7 = arith.constant 0 : index
    %13 = vector.load %arg2[%c1, %c0_6, %c0_7] : memref<3x12x8xbf16, #tpu.memory_space<vmem>>, vector<1x12x8xbf16>
    %14 = vector.shape_cast %13 : vector<1x12x8xbf16> to vector<12x8xbf16>
    %cst_8 = arith.constant dense<0.000000e+00> : vector<512x8xf32>
    %15 = tpu.matmul %12, %14, %cst_8 {dimension_numbers = #tpu.dot_dimension_numbers<[1], [0], [0], [1], [0, 0, 1, 1], [], []>} : vector<512x12xbf16>, vector<12x8xbf16>, vector<512x8xf32> -> vector<512x8xf32>
    %16 = arith.addf %9, %15 : vector<512x8xf32>
    %17 = vector.extract_strided_slice %1 {offsets = [0, 2, 0], sizes = [32, 16, 12], strides = [1, 1, 1]} : vector<32x18x12xf32> to vector<32x16x12xf32>
    %18 = vector.shape_cast %17 : vector<32x16x12xf32> to vector<512x12xf32>
    %19 = arith.truncf %18 : vector<512x12xf32> to vector<512x12xbf16>
    %c2 = arith.constant 2 : index
    %c0_9 = arith.constant 0 : index
    %c0_10 = arith.constant 0 : index
    %20 = vector.load %arg2[%c2, %c0_9, %c0_10] : memref<3x12x8xbf16, #tpu.memory_space<vmem>>, vector<1x12x8xbf16>
    %21 = vector.shape_cast %20 : vector<1x12x8xbf16> to vector<12x8xbf16>
    %cst_11 = arith.constant dense<0.000000e+00> : vector<512x8xf32>
    %22 = tpu.matmul %19, %21, %cst_11 {dimension_numbers = #tpu.dot_dimension_numbers<[1], [0], [0], [1], [0, 0, 1, 1], [], []>} : vector<512x12xbf16>, vector<12x8xbf16>, vector<512x8xf32> -> vector<512x8xf32>
    %23 = arith.addf %16, %22 : vector<512x8xf32>
    %c0_12 = arith.constant 0 : index
    %c0_13 = arith.constant 0 : index
    %24 = vector.load %arg3[%c0_12, %c0_13] : memref<512x8xf32, #tpu.memory_space<vmem>>, vector<512x8xf32>
    tpu.vector_store %arg3[%c0_12, %c0_13], %23 {strides = array<i32>} : memref<512x8xf32, #tpu.memory_space<vmem>>, vector<512x8xf32>,
    %cst_14 = arith.constant dense<0.000000e+00> : vector<8xf32>
    %25 = vector.multi_reduction <add>, %23, %cst_14 [0] : vector<512x8xf32> to vector<8xf32>
    %26 = vector.shape_cast %25 : vector<8xf32> to vector<1x8xf32>
    %27 = arith.mulf %23, %23 : vector<512x8xf32>
    %cst_15 = arith.constant dense<0.000000e+00> : vector<8xf32>
    %28 = vector.multi_reduction <add>, %27, %cst_15 [0] : vector<512x8xf32> to vector<8xf32>
    %29 = vector.shape_cast %28 : vector<8xf32> to vector<1x8xf32>
    %30 = tpu.concatenate %26, %29 in 0 : vector<1x8xf32>, vector<1x8xf32> -> vector<2x8xf32>
    %31 = vector.shape_cast %30 : vector<2x8xf32> to vector<1x2x8xf32>
    %c0_16 = arith.constant 0 : index
    %c0_17 = arith.constant 0 : index
    %c0_18 = arith.constant 0 : index
    %32 = vector.load %arg4[%c0_16, %c0_17, %c0_18] : memref<1x2x8xf32, #tpu.memory_space<vmem>>, vector<1x2x8xf32>
    tpu.vector_store %arg4[%c0_16, %c0_17, %c0_18], %31 {strides = array<i32>} : memref<1x2x8xf32, #tpu.memory_space<vmem>>, vector<1x2x8xf32>,
    return
  }
  func.func @transform_0(%arg0: i32) -> (i32, i32, i32) {
    %c0_i32 = arith.constant 0 : i32
    %c0_i32_0 = arith.constant 0 : i32
    %c0_i32_1 = arith.constant 0 : i32
    return %arg0, %c0_i32, %c0_i32_0 : i32, i32, i32
  }
  func.func @transform_1(%arg0: i32) -> (i32, i32, i32) {
    %c0_i32 = arith.constant 0 : i32
    %c0_i32_0 = arith.constant 0 : i32
    %c0_i32_1 = arith.constant 0 : i32
    %c0_i32_2 = arith.constant 0 : i32
    return %c0_i32, %c0_i32_0, %c0_i32_1 : i32, i32, i32
  }
  func.func @transform_2(%arg0: i32) -> (i32, i32) {
    %c0_i32 = arith.constant 0 : i32
    %c0_i32_0 = arith.constant 0 : i32
    return %arg0, %c0_i32 : i32, i32
  }
  func.func @transform_3(%arg0: i32) -> (i32, i32, i32) {
    %c0_i32 = arith.constant 0 : i32
    %c0_i32_0 = arith.constant 0 : i32
    %c0_i32_1 = arith.constant 0 : i32
    return %arg0, %c0_i32, %c0_i32_0 : i32, i32, i32
  }
}

module attributes {stable_mosaic.version = 11 : i64} {
  func.func @_bn_lrelu_kernel(%arg0: i32, %arg1: memref<512x8xf32, #tpu.memory_space<vmem>>, %arg2: memref<1x8xf32, #tpu.memory_space<vmem>>, %arg3: memref<1x8xf32, #tpu.memory_space<vmem>>, %arg4: memref<512x8xbf16, #tpu.memory_space<vmem>>) attributes {dimension_semantics = [#tpu.dimension_semantics<parallel>], iteration_bounds = array<i64: 1>, scalar_prefetch = 0 : i64, scratch_operands = 0 : i64, tpu.core_type = #tpu.core_type<tc>, window_params = [{transform_indices = @transform_0, window_bounds = array<i64: 512, 8>}, {pipeline_mode = #tpu.pipeline_mode<synchronous>, transform_indices = @transform_1, window_bounds = array<i64: 1, 8>}, {pipeline_mode = #tpu.pipeline_mode<synchronous>, transform_indices = @transform_2, window_bounds = array<i64: 1, 8>}, {transform_indices = @transform_3, window_bounds = array<i64: 512, 8>}]} {
    %c0 = arith.constant 0 : index
    %c0_0 = arith.constant 0 : index
    %0 = vector.load %arg1[%c0, %c0_0] : memref<512x8xf32, #tpu.memory_space<vmem>>, vector<512x8xf32>
    %c0_1 = arith.constant 0 : index
    %c0_2 = arith.constant 0 : index
    %1 = vector.load %arg2[%c0_1, %c0_2] : memref<1x8xf32, #tpu.memory_space<vmem>>, vector<1x8xf32>
    %2 = vector.broadcast %1 : vector<1x8xf32> to vector<512x8xf32>
    %3 = arith.mulf %0, %2 : vector<512x8xf32>
    %c0_3 = arith.constant 0 : index
    %c0_4 = arith.constant 0 : index
    %4 = vector.load %arg3[%c0_3, %c0_4] : memref<1x8xf32, #tpu.memory_space<vmem>>, vector<1x8xf32>
    %5 = vector.broadcast %4 : vector<1x8xf32> to vector<512x8xf32>
    %6 = arith.addf %3, %5 : vector<512x8xf32>
    %cst = arith.constant 0.000000e+00 : f32
    %7 = vector.broadcast %cst : f32 to vector<512x8xf32>
    %8 = arith.cmpf ogt, %6, %7 : vector<512x8xf32>
    %cst_5 = arith.constant 1.000000e-01 : f32
    %9 = vector.broadcast %cst_5 : f32 to vector<512x8xf32>
    %10 = arith.mulf %9, %6 : vector<512x8xf32>
    %11 = arith.select %8, %6, %10 : vector<512x8xi1>, vector<512x8xf32>
    %12 = arith.truncf %11 : vector<512x8xf32> to vector<512x8xbf16>
    %c0_6 = arith.constant 0 : index
    %c0_7 = arith.constant 0 : index
    %13 = vector.load %arg4[%c0_6, %c0_7] : memref<512x8xbf16, #tpu.memory_space<vmem>>, vector<512x8xbf16>
    tpu.vector_store %arg4[%c0_6, %c0_7], %12 {strides = array<i32>} : memref<512x8xbf16, #tpu.memory_space<vmem>>, vector<512x8xbf16>,
    return
  }
  func.func @transform_0(%arg0: i32) -> (i32, i32) {
    %c0_i32 = arith.constant 0 : i32
    %c0_i32_0 = arith.constant 0 : i32
    return %arg0, %c0_i32 : i32, i32
  }
  func.func @transform_1(%arg0: i32) -> (i32, i32) {
    %c0_i32 = arith.constant 0 : i32
    %c0_i32_0 = arith.constant 0 : i32
    %c0_i32_1 = arith.constant 0 : i32
    return %c0_i32, %c0_i32_0 : i32, i32
  }
  func.func @transform_2(%arg0: i32) -> (i32, i32) {
    %c0_i32 = arith.constant 0 : i32
    %c0_i32_0 = arith.constant 0 : i32
    %c0_i32_1 = arith.constant 0 : i32
    return %c0_i32, %c0_i32_0 : i32, i32
  }
  func.func @transform_3(%arg0: i32) -> (i32, i32) {
    %c0_i32 = arith.constant 0 : i32
    %c0_i32_0 = arith.constant 0 : i32
    return %arg0, %c0_i32 : i32, i32
  }
}

module attributes {stable_mosaic.version = 11 : i64} {
  func.func @_conv3x3_stats_kernel(%arg0: i32, %arg1: memref<32x18x24xbf16, #tpu.memory_space<vmem>>, %arg2: memref<3x24x8xbf16, #tpu.memory_space<vmem>>, %arg3: memref<512x8xf32, #tpu.memory_space<vmem>>, %arg4: memref<1x2x8xf32, #tpu.memory_space<vmem>>) attributes {dimension_semantics = [#tpu.dimension_semantics<parallel>], iteration_bounds = array<i64: 1>, scalar_prefetch = 0 : i64, scratch_operands = 0 : i64, tpu.core_type = #tpu.core_type<tc>, window_params = [{transform_indices = @transform_0, window_bounds = array<i64: 32, 18, 24>}, {pipeline_mode = #tpu.pipeline_mode<synchronous>, transform_indices = @transform_1, window_bounds = array<i64: 3, 24, 8>}, {transform_indices = @transform_2, window_bounds = array<i64: 512, 8>}, {transform_indices = @transform_3, window_bounds = array<i64: 1, 2, 8>}]} {
    %c0 = arith.constant 0 : index
    %c0_0 = arith.constant 0 : index
    %c0_1 = arith.constant 0 : index
    %0 = vector.load %arg1[%c0, %c0_0, %c0_1] : memref<32x18x24xbf16, #tpu.memory_space<vmem>>, vector<32x18x24xbf16>
    %1 = arith.extf %0 : vector<32x18x24xbf16> to vector<32x18x24xf32>
    %cst = arith.constant 0.000000e+00 : f32
    %2 = vector.broadcast %cst : f32 to vector<512x8xf32>
    %3 = vector.extract_strided_slice %1 {offsets = [0, 0, 0], sizes = [32, 16, 24], strides = [1, 1, 1]} : vector<32x18x24xf32> to vector<32x16x24xf32>
    %4 = vector.shape_cast %3 : vector<32x16x24xf32> to vector<512x24xf32>
    %5 = arith.truncf %4 : vector<512x24xf32> to vector<512x24xbf16>
    %c0_2 = arith.constant 0 : index
    %c0_3 = arith.constant 0 : index
    %c0_4 = arith.constant 0 : index
    %6 = vector.load %arg2[%c0_2, %c0_3, %c0_4] : memref<3x24x8xbf16, #tpu.memory_space<vmem>>, vector<1x24x8xbf16>
    %7 = vector.shape_cast %6 : vector<1x24x8xbf16> to vector<24x8xbf16>
    %cst_5 = arith.constant dense<0.000000e+00> : vector<512x8xf32>
    %8 = tpu.matmul %5, %7, %cst_5 {dimension_numbers = #tpu.dot_dimension_numbers<[1], [0], [0], [1], [0, 0, 1, 1], [], []>} : vector<512x24xbf16>, vector<24x8xbf16>, vector<512x8xf32> -> vector<512x8xf32>
    %9 = arith.addf %2, %8 : vector<512x8xf32>
    %10 = vector.extract_strided_slice %1 {offsets = [0, 1, 0], sizes = [32, 16, 24], strides = [1, 1, 1]} : vector<32x18x24xf32> to vector<32x16x24xf32>
    %11 = vector.shape_cast %10 : vector<32x16x24xf32> to vector<512x24xf32>
    %12 = arith.truncf %11 : vector<512x24xf32> to vector<512x24xbf16>
    %c1 = arith.constant 1 : index
    %c0_6 = arith.constant 0 : index
    %c0_7 = arith.constant 0 : index
    %13 = vector.load %arg2[%c1, %c0_6, %c0_7] : memref<3x24x8xbf16, #tpu.memory_space<vmem>>, vector<1x24x8xbf16>
    %14 = vector.shape_cast %13 : vector<1x24x8xbf16> to vector<24x8xbf16>
    %cst_8 = arith.constant dense<0.000000e+00> : vector<512x8xf32>
    %15 = tpu.matmul %12, %14, %cst_8 {dimension_numbers = #tpu.dot_dimension_numbers<[1], [0], [0], [1], [0, 0, 1, 1], [], []>} : vector<512x24xbf16>, vector<24x8xbf16>, vector<512x8xf32> -> vector<512x8xf32>
    %16 = arith.addf %9, %15 : vector<512x8xf32>
    %17 = vector.extract_strided_slice %1 {offsets = [0, 2, 0], sizes = [32, 16, 24], strides = [1, 1, 1]} : vector<32x18x24xf32> to vector<32x16x24xf32>
    %18 = vector.shape_cast %17 : vector<32x16x24xf32> to vector<512x24xf32>
    %19 = arith.truncf %18 : vector<512x24xf32> to vector<512x24xbf16>
    %c2 = arith.constant 2 : index
    %c0_9 = arith.constant 0 : index
    %c0_10 = arith.constant 0 : index
    %20 = vector.load %arg2[%c2, %c0_9, %c0_10] : memref<3x24x8xbf16, #tpu.memory_space<vmem>>, vector<1x24x8xbf16>
    %21 = vector.shape_cast %20 : vector<1x24x8xbf16> to vector<24x8xbf16>
    %cst_11 = arith.constant dense<0.000000e+00> : vector<512x8xf32>
    %22 = tpu.matmul %19, %21, %cst_11 {dimension_numbers = #tpu.dot_dimension_numbers<[1], [0], [0], [1], [0, 0, 1, 1], [], []>} : vector<512x24xbf16>, vector<24x8xbf16>, vector<512x8xf32> -> vector<512x8xf32>
    %23 = arith.addf %16, %22 : vector<512x8xf32>
    %c0_12 = arith.constant 0 : index
    %c0_13 = arith.constant 0 : index
    %24 = vector.load %arg3[%c0_12, %c0_13] : memref<512x8xf32, #tpu.memory_space<vmem>>, vector<512x8xf32>
    tpu.vector_store %arg3[%c0_12, %c0_13], %23 {strides = array<i32>} : memref<512x8xf32, #tpu.memory_space<vmem>>, vector<512x8xf32>,
    %cst_14 = arith.constant dense<0.000000e+00> : vector<8xf32>
    %25 = vector.multi_reduction <add>, %23, %cst_14 [0] : vector<512x8xf32> to vector<8xf32>
    %26 = vector.shape_cast %25 : vector<8xf32> to vector<1x8xf32>
    %27 = arith.mulf %23, %23 : vector<512x8xf32>
    %cst_15 = arith.constant dense<0.000000e+00> : vector<8xf32>
    %28 = vector.multi_reduction <add>, %27, %cst_15 [0] : vector<512x8xf32> to vector<8xf32>
    %29 = vector.shape_cast %28 : vector<8xf32> to vector<1x8xf32>
    %30 = tpu.concatenate %26, %29 in 0 : vector<1x8xf32>, vector<1x8xf32> -> vector<2x8xf32>
    %31 = vector.shape_cast %30 : vector<2x8xf32> to vector<1x2x8xf32>
    %c0_16 = arith.constant 0 : index
    %c0_17 = arith.constant 0 : index
    %c0_18 = arith.constant 0 : index
    %32 = vector.load %arg4[%c0_16, %c0_17, %c0_18] : memref<1x2x8xf32, #tpu.memory_space<vmem>>, vector<1x2x8xf32>
    tpu.vector_store %arg4[%c0_16, %c0_17, %c0_18], %31 {strides = array<i32>} : memref<1x2x8xf32, #tpu.memory_space<vmem>>, vector<1x2x8xf32>,
    return
  }
  func.func @transform_0(%arg0: i32) -> (i32, i32, i32) {
    %c0_i32 = arith.constant 0 : i32
    %c0_i32_0 = arith.constant 0 : i32
    %c0_i32_1 = arith.constant 0 : i32
    return %arg0, %c0_i32, %c0_i32_0 : i32, i32, i32
  }
  func.func @transform_1(%arg0: i32) -> (i32, i32, i32) {
    %c0_i32 = arith.constant 0 : i32
    %c0_i32_0 = arith.constant 0 : i32
    %c0_i32_1 = arith.constant 0 : i32
    %c0_i32_2 = arith.constant 0 : i32
    return %c0_i32, %c0_i32_0, %c0_i32_1 : i32, i32, i32
  }
  func.func @transform_2(%arg0: i32) -> (i32, i32) {
    %c0_i32 = arith.constant 0 : i32
    %c0_i32_0 = arith.constant 0 : i32
    return %arg0, %c0_i32 : i32, i32
  }
  func.func @transform_3(%arg0: i32) -> (i32, i32, i32) {
    %c0_i32 = arith.constant 0 : i32
    %c0_i32_0 = arith.constant 0 : i32
    %c0_i32_1 = arith.constant 0 : i32
    return %arg0, %c0_i32, %c0_i32_0 : i32, i32, i32
  }
}

module attributes {stable_mosaic.version = 11 : i64} {
  func.func @_down_fused_kernel(%arg0: i32, %arg1: memref<16x2x8x16xf32, #tpu.memory_space<vmem>>, %arg2: memref<1x8xf32, #tpu.memory_space<vmem>>, %arg3: memref<1x8xf32, #tpu.memory_space<vmem>>, %arg4: memref<2x2x8x8xbf16, #tpu.memory_space<vmem>>, %arg5: memref<1x8xf32, #tpu.memory_space<vmem>>, %arg6: memref<128x8xf32, #tpu.memory_space<vmem>>) attributes {dimension_semantics = [#tpu.dimension_semantics<parallel>], iteration_bounds = array<i64: 1>, scalar_prefetch = 0 : i64, scratch_operands = 0 : i64, tpu.core_type = #tpu.core_type<tc>, window_params = [{transform_indices = @transform_0, window_bounds = array<i64: 16, 2, 8, 16>}, {pipeline_mode = #tpu.pipeline_mode<synchronous>, transform_indices = @transform_1, window_bounds = array<i64: 1, 8>}, {pipeline_mode = #tpu.pipeline_mode<synchronous>, transform_indices = @transform_2, window_bounds = array<i64: 1, 8>}, {pipeline_mode = #tpu.pipeline_mode<synchronous>, transform_indices = @transform_3, window_bounds = array<i64: 2, 2, 8, 8>}, {pipeline_mode = #tpu.pipeline_mode<synchronous>, transform_indices = @transform_4, window_bounds = array<i64: 1, 8>}, {transform_indices = @transform_5, window_bounds = array<i64: 128, 8>}]} {
    %c0 = arith.constant 0 : index
    %c0_0 = arith.constant 0 : index
    %c0_1 = arith.constant 0 : index
    %c0_2 = arith.constant 0 : index
    %0 = vector.load %arg1[%c0, %c0_0, %c0_1, %c0_2] : memref<16x2x8x16xf32, #tpu.memory_space<vmem>>, vector<16x2x8x16xf32>
    %c0_3 = arith.constant 0 : index
    %c0_4 = arith.constant 0 : index
    %1 = vector.load %arg2[%c0_3, %c0_4] : memref<1x8xf32, #tpu.memory_space<vmem>>, vector<1x8xf32>
    %c0_5 = arith.constant 0 : index
    %c0_6 = arith.constant 0 : index
    %2 = vector.load %arg3[%c0_5, %c0_6] : memref<1x8xf32, #tpu.memory_space<vmem>>, vector<1x8xf32>
    %cst = arith.constant 0.000000e+00 : f32
    %3 = vector.broadcast %cst : f32 to vector<128x8xf32>
    %4 = vector.extract_strided_slice %0 {offsets = [0, 0, 0, 0], sizes = [16, 1, 8, 8], strides = [1, 1, 1, 1]} : vector<16x2x8x16xf32> to vector<16x1x8x8xf32>
    %5 = vector.shape_cast %4 : vector<16x1x8x8xf32> to vector<16x8x8xf32>
    %6 = vector.shape_cast %5 : vector<16x8x8xf32> to vector<128x8xf32>
    %7 = vector.broadcast %1 : vector<1x8xf32> to vector<128x8xf32>
    %8 = arith.mulf %6, %7 : vector<128x8xf32>
    %9 = vector.broadcast %2 : vector<1x8xf32> to vector<128x8xf32>
    %10 = arith.addf %8, %9 : vector<128x8xf32>
    %cst_7 = arith.constant 0.000000e+00 : f32
    %11 = vector.broadcast %cst_7 : f32 to vector<128x8xf32>
    %12 = arith.cmpf ogt, %10, %11 : vector<128x8xf32>
    %cst_8 = arith.constant 1.000000e-01 : f32
    %13 = vector.broadcast %cst_8 : f32 to vector<128x8xf32>
    %14 = arith.mulf %13, %10 : vector<128x8xf32>
    %15 = arith.select %12, %10, %14 : vector<128x8xi1>, vector<128x8xf32>
    %16 = arith.truncf %15 : vector<128x8xf32> to vector<128x8xbf16>
    %c0_9 = arith.constant 0 : index
    %c0_10 = arith.constant 0 : index
    %c0_11 = arith.constant 0 : index
    %c0_12 = arith.constant 0 : index
    %17 = vector.load %arg4[%c0_9, %c0_10, %c0_11, %c0_12] : memref<2x2x8x8xbf16, #tpu.memory_space<vmem>>, vector<1x1x8x8xbf16>
    %18 = vector.shape_cast %17 : vector<1x1x8x8xbf16> to vector<8x8xbf16>
    %cst_13 = arith.constant dense<0.000000e+00> : vector<128x8xf32>
    %19 = tpu.matmul %16, %18, %cst_13 {dimension_numbers = #tpu.dot_dimension_numbers<[1], [0], [0], [1], [0, 0, 1, 1], [], []>} : vector<128x8xbf16>, vector<8x8xbf16>, vector<128x8xf32> -> vector<128x8xf32>
    %20 = arith.addf %3, %19 : vector<128x8xf32>
    %21 = vector.extract_strided_slice %0 {offsets = [0, 0, 0, 8], sizes = [16, 1, 8, 8], strides = [1, 1, 1, 1]} : vector<16x2x8x16xf32> to vector<16x1x8x8xf32>
    %22 = vector.shape_cast %21 : vector<16x1x8x8xf32> to vector<16x8x8xf32>
    %23 = vector.shape_cast %22 : vector<16x8x8xf32> to vector<128x8xf32>
    %24 = vector.broadcast %1 : vector<1x8xf32> to vector<128x8xf32>
    %25 = arith.mulf %23, %24 : vector<128x8xf32>
    %26 = vector.broadcast %2 : vector<1x8xf32> to vector<128x8xf32>
    %27 = arith.addf %25, %26 : vector<128x8xf32>
    %cst_14 = arith.constant 0.000000e+00 : f32
    %28 = vector.broadcast %cst_14 : f32 to vector<128x8xf32>
    %29 = arith.cmpf ogt, %27, %28 : vector<128x8xf32>
    %cst_15 = arith.constant 1.000000e-01 : f32
    %30 = vector.broadcast %cst_15 : f32 to vector<128x8xf32>
    %31 = arith.mulf %30, %27 : vector<128x8xf32>
    %32 = arith.select %29, %27, %31 : vector<128x8xi1>, vector<128x8xf32>
    %33 = arith.truncf %32 : vector<128x8xf32> to vector<128x8xbf16>
    %c0_16 = arith.constant 0 : index
    %c1 = arith.constant 1 : index
    %c0_17 = arith.constant 0 : index
    %c0_18 = arith.constant 0 : index
    %34 = vector.load %arg4[%c0_16, %c1, %c0_17, %c0_18] : memref<2x2x8x8xbf16, #tpu.memory_space<vmem>>, vector<1x1x8x8xbf16>
    %35 = vector.shape_cast %34 : vector<1x1x8x8xbf16> to vector<8x8xbf16>
    %cst_19 = arith.constant dense<0.000000e+00> : vector<128x8xf32>
    %36 = tpu.matmul %33, %35, %cst_19 {dimension_numbers = #tpu.dot_dimension_numbers<[1], [0], [0], [1], [0, 0, 1, 1], [], []>} : vector<128x8xbf16>, vector<8x8xbf16>, vector<128x8xf32> -> vector<128x8xf32>
    %37 = arith.addf %20, %36 : vector<128x8xf32>
    %38 = vector.extract_strided_slice %0 {offsets = [0, 1, 0, 0], sizes = [16, 1, 8, 8], strides = [1, 1, 1, 1]} : vector<16x2x8x16xf32> to vector<16x1x8x8xf32>
    %39 = vector.shape_cast %38 : vector<16x1x8x8xf32> to vector<16x8x8xf32>
    %40 = vector.shape_cast %39 : vector<16x8x8xf32> to vector<128x8xf32>
    %41 = vector.broadcast %1 : vector<1x8xf32> to vector<128x8xf32>
    %42 = arith.mulf %40, %41 : vector<128x8xf32>
    %43 = vector.broadcast %2 : vector<1x8xf32> to vector<128x8xf32>
    %44 = arith.addf %42, %43 : vector<128x8xf32>
    %cst_20 = arith.constant 0.000000e+00 : f32
    %45 = vector.broadcast %cst_20 : f32 to vector<128x8xf32>
    %46 = arith.cmpf ogt, %44, %45 : vector<128x8xf32>
    %cst_21 = arith.constant 1.000000e-01 : f32
    %47 = vector.broadcast %cst_21 : f32 to vector<128x8xf32>
    %48 = arith.mulf %47, %44 : vector<128x8xf32>
    %49 = arith.select %46, %44, %48 : vector<128x8xi1>, vector<128x8xf32>
    %50 = arith.truncf %49 : vector<128x8xf32> to vector<128x8xbf16>
    %c1_22 = arith.constant 1 : index
    %c0_23 = arith.constant 0 : index
    %c0_24 = arith.constant 0 : index
    %c0_25 = arith.constant 0 : index
    %51 = vector.load %arg4[%c1_22, %c0_23, %c0_24, %c0_25] : memref<2x2x8x8xbf16, #tpu.memory_space<vmem>>, vector<1x1x8x8xbf16>
    %52 = vector.shape_cast %51 : vector<1x1x8x8xbf16> to vector<8x8xbf16>
    %cst_26 = arith.constant dense<0.000000e+00> : vector<128x8xf32>
    %53 = tpu.matmul %50, %52, %cst_26 {dimension_numbers = #tpu.dot_dimension_numbers<[1], [0], [0], [1], [0, 0, 1, 1], [], []>} : vector<128x8xbf16>, vector<8x8xbf16>, vector<128x8xf32> -> vector<128x8xf32>
    %54 = arith.addf %37, %53 : vector<128x8xf32>
    %55 = vector.extract_strided_slice %0 {offsets = [0, 1, 0, 8], sizes = [16, 1, 8, 8], strides = [1, 1, 1, 1]} : vector<16x2x8x16xf32> to vector<16x1x8x8xf32>
    %56 = vector.shape_cast %55 : vector<16x1x8x8xf32> to vector<16x8x8xf32>
    %57 = vector.shape_cast %56 : vector<16x8x8xf32> to vector<128x8xf32>
    %58 = vector.broadcast %1 : vector<1x8xf32> to vector<128x8xf32>
    %59 = arith.mulf %57, %58 : vector<128x8xf32>
    %60 = vector.broadcast %2 : vector<1x8xf32> to vector<128x8xf32>
    %61 = arith.addf %59, %60 : vector<128x8xf32>
    %cst_27 = arith.constant 0.000000e+00 : f32
    %62 = vector.broadcast %cst_27 : f32 to vector<128x8xf32>
    %63 = arith.cmpf ogt, %61, %62 : vector<128x8xf32>
    %cst_28 = arith.constant 1.000000e-01 : f32
    %64 = vector.broadcast %cst_28 : f32 to vector<128x8xf32>
    %65 = arith.mulf %64, %61 : vector<128x8xf32>
    %66 = arith.select %63, %61, %65 : vector<128x8xi1>, vector<128x8xf32>
    %67 = arith.truncf %66 : vector<128x8xf32> to vector<128x8xbf16>
    %c1_29 = arith.constant 1 : index
    %c1_30 = arith.constant 1 : index
    %c0_31 = arith.constant 0 : index
    %c0_32 = arith.constant 0 : index
    %68 = vector.load %arg4[%c1_29, %c1_30, %c0_31, %c0_32] : memref<2x2x8x8xbf16, #tpu.memory_space<vmem>>, vector<1x1x8x8xbf16>
    %69 = vector.shape_cast %68 : vector<1x1x8x8xbf16> to vector<8x8xbf16>
    %cst_33 = arith.constant dense<0.000000e+00> : vector<128x8xf32>
    %70 = tpu.matmul %67, %69, %cst_33 {dimension_numbers = #tpu.dot_dimension_numbers<[1], [0], [0], [1], [0, 0, 1, 1], [], []>} : vector<128x8xbf16>, vector<8x8xbf16>, vector<128x8xf32> -> vector<128x8xf32>
    %71 = arith.addf %54, %70 : vector<128x8xf32>
    %c0_34 = arith.constant 0 : index
    %c0_35 = arith.constant 0 : index
    %72 = vector.load %arg5[%c0_34, %c0_35] : memref<1x8xf32, #tpu.memory_space<vmem>>, vector<1x8xf32>
    %73 = vector.broadcast %72 : vector<1x8xf32> to vector<128x8xf32>
    %74 = arith.addf %71, %73 : vector<128x8xf32>
    %cst_36 = arith.constant 0.000000e+00 : f32
    %75 = vector.broadcast %cst_36 : f32 to vector<128x8xf32>
    %76 = arith.maximumf %74, %75 : vector<128x8xf32>
    %c0_37 = arith.constant 0 : index
    %c0_38 = arith.constant 0 : index
    %77 = vector.load %arg6[%c0_37, %c0_38] : memref<128x8xf32, #tpu.memory_space<vmem>>, vector<128x8xf32>
    tpu.vector_store %arg6[%c0_37, %c0_38], %76 {strides = array<i32>} : memref<128x8xf32, #tpu.memory_space<vmem>>, vector<128x8xf32>,
    return
  }
  func.func @transform_0(%arg0: i32) -> (i32, i32, i32, i32) {
    %c0_i32 = arith.constant 0 : i32
    %c0_i32_0 = arith.constant 0 : i32
    %c0_i32_1 = arith.constant 0 : i32
    %c0_i32_2 = arith.constant 0 : i32
    return %arg0, %c0_i32, %c0_i32_0, %c0_i32_1 : i32, i32, i32, i32
  }
  func.func @transform_1(%arg0: i32) -> (i32, i32) {
    %c0_i32 = arith.constant 0 : i32
    %c0_i32_0 = arith.constant 0 : i32
    %c0_i32_1 = arith.constant 0 : i32
    return %c0_i32, %c0_i32_0 : i32, i32
  }
  func.func @transform_2(%arg0: i32) -> (i32, i32) {
    %c0_i32 = arith.constant 0 : i32
    %c0_i32_0 = arith.constant 0 : i32
    %c0_i32_1 = arith.constant 0 : i32
    return %c0_i32, %c0_i32_0 : i32, i32
  }
  func.func @transform_3(%arg0: i32) -> (i32, i32, i32, i32) {
    %c0_i32 = arith.constant 0 : i32
    %c0_i32_0 = arith.constant 0 : i32
    %c0_i32_1 = arith.constant 0 : i32
    %c0_i32_2 = arith.constant 0 : i32
    %c0_i32_3 = arith.constant 0 : i32
    return %c0_i32, %c0_i32_0, %c0_i32_1, %c0_i32_2 : i32, i32, i32, i32
  }
  func.func @transform_4(%arg0: i32) -> (i32, i32) {
    %c0_i32 = arith.constant 0 : i32
    %c0_i32_0 = arith.constant 0 : i32
    %c0_i32_1 = arith.constant 0 : i32
    return %c0_i32, %c0_i32_0 : i32, i32
  }
  func.func @transform_5(%arg0: i32) -> (i32, i32) {
    %c0_i32 = arith.constant 0 : i32
    %c0_i32_0 = arith.constant 0 : i32
    return %arg0, %c0_i32 : i32, i32
  }
}

</mosaic_0001>

<llo_original>
// kernel: convblock_forward.7
$region0: #{convblock_forward.7}
  #allocation0 [shape = 'u32[]', space=smem, size = 0x4, offset = 0x4, fixed_abs, tag = 'smem constant byte address 0x4 - core index']
  #allocation1 [shape = 'u32[72,128]{1,0:T(1,128)}', space=vmem, size = 0x9000, scoped, tag = 'internal scratch']
  %s0 = inlined_call_operand.vmem [shape: f32[512,8], index: 0, kind: input, shape index: {}]
  %s1 = inlined_call_operand.vmem [shape: f32[1,8], index: 1, kind: input, shape index: {}]
  %s2 = inlined_call_operand.vmem [shape: f32[1,8], index: 2, kind: input, shape index: {}]
  %s3 = inlined_call_operand.vmem [shape: bf16[512,8], index: 3, kind: output, shape index: {}]
  %s4 = sld [smem:[#allocation0]]
  $region22: #{convblock_forward.7} parent=0
    _
  %s6 = ssub.s32 1, %s4
  %s7 = scalar_select 0, %s6, %s4
  // Predicated region
  $region2: #{convblock_forward.7} parent=0 // pred_check
    _
  $region3: #{convblock_forward.7} parent=0 // pred_check_branch
    %9 = sbr.rel (0) target = $region5
  $region4: #{convblock_forward.7} parent=0 // pred_region
    _
  $region5: #{convblock_forward.7} parent=0 // pred_fallthru
    _
  // Predicated region
  $region6: #{convblock_forward.7} parent=0 // pred_check
    _
  $region7: #{convblock_forward.7} parent=0 // pred_check_branch
    %11 = sbr.rel (0) target = $region9
  $region8: #{convblock_forward.7} parent=0 // pred_region
    _
  $region9: #{convblock_forward.7} parent=0 // pred_fallthru
    _
  // Predicated region
  $region10: #{convblock_forward.7} parent=0 // pred_check
    _
  $region11: #{convblock_forward.7} parent=0 // pred_check_branch
    %13 = sbr.rel (0) target = $region13
  $region12: #{convblock_forward.7} parent=0 // pred_region
    _
  $region13: #{convblock_forward.7} parent=0 // pred_fallthru
    _
  %v14 = vld [vmem:[%s0] sm:$0xff]
  %v15 = vld [vmem:[%s0 + $0x8] sm:$0xff]
  %v16 = vld [vmem:[%s0 + $0x10] sm:$0xff]
  %v17 = vld [vmem:[%s0 + $0x18] sm:$0xff]
  %v18 = vld [vmem:[%s0 + $0x20] sm:$0xff]
  %v19 = vld [vmem:[%s0 + $0x28] sm:$0xff]
  %v20 = vld [vmem:[%s0 + $0x30] sm:$0xff]
  %v21 = vld [vmem:[%s0 + $0x38] sm:$0xff]
  %v22 = vld [vmem:[%s0 + $0x40] sm:$0xff]
  %v23 = vld [vmem:[%s0 + $0x48] sm:$0xff]
  %v24 = vld [vmem:[%s0 + $0x50] sm:$0xff]
  %v25 = vld [vmem:[%s0 + $0x58] sm:$0xff]
  %v26 = vld [vmem:[%s0 + $0x60] sm:$0xff]
  %v27 = vld [vmem:[%s0 + $0x68] sm:$0xff]
  %v28 = vld [vmem:[%s0 + $0x70] sm:$0xff]
  %v29 = vld [vmem:[%s0 + $0x78] sm:$0xff]
  %v30 = vld [vmem:[%s0 + $0x80] sm:$0xff]
  %v31 = vld [vmem:[%s0 + $0x88] sm:$0xff]
  %v32 = vld [vmem:[%s0 + $0x90] sm:$0xff]
  %v33 = vld [vmem:[%s0 + $0x98] sm:$0xff]
  %v34 = vld [vmem:[%s0 + $0xa0] sm:$0xff]
  %v35 = vld [vmem:[%s0 + $0xa8] sm:$0xff]
  %v36 = vld [vmem:[%s0 + $0xb0] sm:$0xff]
  %v37 = vld [vmem:[%s0 + $0xb8] sm:$0xff]
  %v38 = vld [vmem:[%s0 + $0xc0] sm:$0xff]
  %v39 = vld [vmem:[%s0 + $0xc8] sm:$0xff]
  %v40 = vld [vmem:[%s0 + $0xd0] sm:$0xff]
  %v41 = vld [vmem:[%s0 + $0xd8] sm:$0xff]
  %v42 = vld [vmem:[%s0 + $0xe0] sm:$0xff]
  %v43 = vld [vmem:[%s0 + $0xe8] sm:$0xff]
  %v44 = vld [vmem:[%s0 + $0xf0] sm:$0xff]
  %v45 = vld [vmem:[%s0 + $0xf8] sm:$0xff]
  %v46 = vld [vmem:[%s0 + $0x100] sm:$0xff]
  %v47 = vld [vmem:[%s0 + $0x108] sm:$0xff]
  %v48 = vld [vmem:[%s0 + $0x110] sm:$0xff]
  %v49 = vld [vmem:[%s0 + $0x118] sm:$0xff]
  %v50 = vld [vmem:[%s0 + $0x120] sm:$0xff]
  %v51 = vld [vmem:[%s0 + $0x128] sm:$0xff]
  %v52 = vld [vmem:[%s0 + $0x130] sm:$0xff]
  %v53 = vld [vmem:[%s0 + $0x138] sm:$0xff]
  %v54 = vld [vmem:[%s0 + $0x140] sm:$0xff]
  %v55 = vld [vmem:[%s0 + $0x148] sm:$0xff]
  %v56 = vld [vmem:[%s0 + $0x150] sm:$0xff]
  %v57 = vld [vmem:[%s0 + $0x158] sm:$0xff]
  %v58 = vld [vmem:[%s0 + $0x160] sm:$0xff]
  %v59 = vld [vmem:[%s0 + $0x168] sm:$0xff]
  %v60 = vld [vmem:[%s0 + $0x170] sm:$0xff]
  %v61 = vld [vmem:[%s0 + $0x178] sm:$0xff]
  %v62 = vld [vmem:[%s0 + $0x180] sm:$0xff]
  %v63 = vld [vmem:[%s0 + $0x188] sm:$0xff]
  %v64 = vld [vmem:[%s0 + $0x190] sm:$0xff]
  %v65 = vld [vmem:[%s0 + $0x198] sm:$0xff]
  %v66 = vld [vmem:[%s0 + $0x1a0] sm:$0xff]
  %v67 = vld [vmem:[%s0 + $0x1a8] sm:$0xff]
  %v68 = vld [vmem:[%s0 + $0x1b0] sm:$0xff]
  %v69 = vld [vmem:[%s0 + $0x1b8] sm:$0xff]
  %v70 = vld [vmem:[%s0 + $0x1c0] sm:$0xff]
  %v71 = vld [vmem:[%s0 + $0x1c8] sm:$0xff]
  %v72 = vld [vmem:[%s0 + $0x1d0] sm:$0xff]
  %v73 = vld [vmem:[%s0 + $0x1d8] sm:$0xff]
  %v74 = vld [vmem:[%s0 + $0x1e0] sm:$0xff]
  %v75 = vld [vmem:[%s0 + $0x1e8] sm:$0xff]
  %v76 = vld [vmem:[%s0 + $0x1f0] sm:$0xff]
  %v77 = vld [vmem:[%s0 + $0x1f8] sm:$0xff]
  %v78 = vld [vmem:[%s1] sm:$0x1]
  %v80 = vperm.slane %v78, 0
  %v82 = vmul.f32 %v14, %v80
  %v83 = vmul.f32 %v15, %v80
  %v84 = vmul.f32 %v16, %v80
  %v85 = vmul.f32 %v17, %v80
  %v86 = vmul.f32 %v18, %v80
  %v87 = vmul.f32 %v19, %v80
  %v88 = vmul.f32 %v20, %v80
  %v89 = vmul.f32 %v21, %v80
  %v90 = vmul.f32 %v22, %v80
  %v91 = vmul.f32 %v23, %v80
  %v92 = vmul.f32 %v24, %v80
  %v93 = vmul.f32 %v25, %v80
  %v94 = vmul.f32 %v26, %v80
  %v95 = vmul.f32 %v27, %v80
  %v96 = vmul.f32 %v28, %v80
  %v97 = vmul.f32 %v29, %v80
  %v98 = vmul.f32 %v30, %v80
  %v99 = vmul.f32 %v31, %v80
  %v100 = vmul.f32 %v32, %v80
  %v101 = vmul.f32 %v33, %v80
  %v102 = vmul.f32 %v34, %v80
  %v103 = vmul.f32 %v35, %v80
  %v104 = vmul.f32 %v36, %v80
  %v105 = vmul.f32 %v37, %v80
  %v106 = vmul.f32 %v38, %v80
  %v107 = vmul.f32 %v39, %v80
  %v108 = vmul.f32 %v40, %v80
  %v109 = vmul.f32 %v41, %v80
  %v110 = vmul.f32 %v42, %v80
  %v111 = vmul.f32 %v43, %v80
  %v112 = vmul.f32 %v44, %v80
  %v113 = vmul.f32 %v45, %v80
  %v114 = vmul.f32 %v46, %v80
  %v115 = vmul.f32 %v47, %v80
  %v116 = vmul.f32 %v48, %v80
  %v117 = vmul.f32 %v49, %v80
  %v118 = vmul.f32 %v50, %v80
  %v119 = vmul.f32 %v51, %v80
  %v120 = vmul.f32 %v52, %v80
  %v121 = vmul.f32 %v53, %v80
  %v122 = vmul.f32 %v54, %v80
  %v123 = vmul.f32 %v55, %v80
  %v124 = vmul.f32 %v56, %v80
  %v125 = vmul.f32 %v57, %v80
  %v126 = vmul.f32 %v58, %v80
  %v127 = vmul.f32 %v59, %v80
  %v128 = vmul.f32 %v60, %v80
  %v129 = vmul.f32 %v61, %v80
  %v130 = vmul.f32 %v62, %v80
  %v131 = vmul.f32 %v63, %v80
  %v132 = vmul.f32 %v64, %v80
  %v133 = vmul.f32 %v65, %v80
  %v134 = vmul.f32 %v66, %v80
  %v135 = vmul.f32 %v67, %v80
  %v136 = vmul.f32 %v68, %v80
  %v137 = vmul.f32 %v69, %v80
  %v138 = vmul.f32 %v70, %v80
  %v139 = vmul.f32 %v71, %v80
  %v140 = vmul.f32 %v72, %v80
  %v141 = vmul.f32 %v73, %v80
  %v142 = vmul.f32 %v74, %v80
  %v143 = vmul.f32 %v75, %v80
  %v144 = vmul.f32 %v76, %v80
  %v145 = vmul.f32 %v77, %v80
  %v146 = vld [vmem:[%s2] sm:$0x1]
  %v148 = vperm.slane %v146, 0
  %v150 = vadd.f32 %v82, %v148
  %v151 = vadd.f32 %v83, %v148
  %v152 = vadd.f32 %v84, %v148
  %v153 = vadd.f32 %v85, %v148
  %v154 = vadd.f32 %v86, %v148
  %v155 = vadd.f32 %v87, %v148
  %v156 = vadd.f32 %v88, %v148
  %v157 = vadd.f32 %v89, %v148
  %v158 = vadd.f32 %v90, %v148
  %v159 = vadd.f32 %v91, %v148
  %v160 = vadd.f32 %v92, %v148
  %v161 = vadd.f32 %v93, %v148
  %v162 = vadd.f32 %v94, %v148
  %v163 = vadd.f32 %v95, %v148
  %v164 = vadd.f32 %v96, %v148
  %v165 = vadd.f32 %v97, %v148
  %v166 = vadd.f32 %v98, %v148
  %v167 = vadd.f32 %v99, %v148
  %v168 = vadd.f32 %v100, %v148
  %v169 = vadd.f32 %v101, %v148
  %v170 = vadd.f32 %v102, %v148
  %v171 = vadd.f32 %v103, %v148
  %v172 = vadd.f32 %v104, %v148
  %v173 = vadd.f32 %v105, %v148
  %v174 = vadd.f32 %v106, %v148
  %v175 = vadd.f32 %v107, %v148
  %v176 = vadd.f32 %v108, %v148
  %v177 = vadd.f32 %v109, %v148
  %v178 = vadd.f32 %v110, %v148
  %v179 = vadd.f32 %v111, %v148
  %v180 = vadd.f32 %v112, %v148
  %v181 = vadd.f32 %v113, %v148
  %v182 = vadd.f32 %v114, %v148
  %v183 = vadd.f32 %v115, %v148
  %v184 = vadd.f32 %v116, %v148
  %v185 = vadd.f32 %v117, %v148
  %v186 = vadd.f32 %v118, %v148
  %v187 = vadd.f32 %v119, %v148
  %v188 = vadd.f32 %v120, %v148
  %v189 = vadd.f32 %v121, %v148
  %v190 = vadd.f32 %v122, %v148
  %v191 = vadd.f32 %v123, %v148
  %v192 = vadd.f32 %v124, %v148
  %v193 = vadd.f32 %v125, %v148
  %v194 = vadd.f32 %v126, %v148
  %v195 = vadd.f32 %v127, %v148
  %v196 = vadd.f32 %v128, %v148
  %v197 = vadd.f32 %v129, %v148
  %v198 = vadd.f32 %v130, %v148
  %v199 = vadd.f32 %v131, %v148
  %v200 = vadd.f32 %v132, %v148
  %v201 = vadd.f32 %v133, %v148
  %v202 = vadd.f32 %v134, %v148
  %v203 = vadd.f32 %v135, %v148
  %v204 = vadd.f32 %v136, %v148
  %v205 = vadd.f32 %v137, %v148
  %v206 = vadd.f32 %v138, %v148
  %v207 = vadd.f32 %v139, %v148
  %v208 = vadd.f32 %v140, %v148
  %v209 = vadd.f32 %v141, %v148
  %v210 = vadd.f32 %v142, %v148
  %v211 = vadd.f32 %v143, %v148
  %v212 = vadd.f32 %v144, %v148
  %v213 = vadd.f32 %v145, %v148
  %vm214 = vcmp.gt.f32.partialorder %v150, 0.0
  %vm215 = vcmp.gt.f32.partialorder %v151, 0.0
  %vm216 = vcmp.gt.f32.partialorder %v152, 0.0
  %vm217 = vcmp.gt.f32.partialorder %v153, 0.0
  %vm218 = vcmp.gt.f32.partialorder %v154, 0.0
  %vm219 = vcmp.gt.f32.partialorder %v155, 0.0
  %vm220 = vcmp.gt.f32.partialorder %v156, 0.0
  %vm221 = vcmp.gt.f32.partialorder %v157, 0.0
  %vm222 = vcmp.gt.f32.partialorder %v158, 0.0
  %vm223 = vcmp.gt.f32.partialorder %v159, 0.0
  %vm224 = vcmp.gt.f32.partialorder %v160, 0.0
  %vm225 = vcmp.gt.f32.partialorder %v161, 0.0
  %vm226 = vcmp.gt.f32.partialorder %v162, 0.0
  %vm227 = vcmp.gt.f32.partialorder %v163, 0.0
  %vm228 = vcmp.gt.f32.partialorder %v164, 0.0
  %vm229 = vcmp.gt.f32.partialorder %v165, 0.0
  %vm230 = vcmp.gt.f32.partialorder %v166, 0.0
  %vm231 = vcmp.gt.f32.partialorder %v167, 0.0
  %vm232 = vcmp.gt.f32.partialorder %v168, 0.0
  %vm233 = vcmp.gt.f32.partialorder %v169, 0.0
  %vm234 = vcmp.gt.f32.partialorder %v170, 0.0
  %vm235 = vcmp.gt.f32.partialorder %v171, 0.0
  %vm236 = vcmp.gt.f32.partialorder %v172, 0.0
  %vm237 = vcmp.gt.f32.partialorder %v173, 0.0
  %vm238 = vcmp.gt.f32.partialorder %v174, 0.0
  %vm239 = vcmp.gt.f32.partialorder %v175, 0.0
  %vm240 = vcmp.gt.f32.partialorder %v176, 0.0
  %vm241 = vcmp.gt.f32.partialorder %v177, 0.0
  %vm242 = vcmp.gt.f32.partialorder %v178, 0.0
  %vm243 = vcmp.gt.f32.partialorder %v179, 0.0
  %vm244 = vcmp.gt.f32.partialorder %v180, 0.0
  %vm245 = vcmp.gt.f32.partialorder %v181, 0.0
  %vm246 = vcmp.gt.f32.partialorder %v182, 0.0
  %vm247 = vcmp.gt.f32.partialorder %v183, 0.0
  %vm248 = vcmp.gt.f32.partialorder %v184, 0.0
  %vm249 = vcmp.gt.f32.partialorder %v185, 0.0
  %vm250 = vcmp.gt.f32.partialorder %v186, 0.0
  %vm251 = vcmp.gt.f32.partialorder %v187, 0.0
  %vm252 = vcmp.gt.f32.partialorder %v188, 0.0
  %vm253 = vcmp.gt.f32.partialorder %v189, 0.0
  %vm254 = vcmp.gt.f32.partialorder %v190, 0.0
  %vm255 = vcmp.gt.f32.partialorder %v191, 0.0
  %vm256 = vcmp.gt.f32.partialorder %v192, 0.0
  %vm257 = vcmp.gt.f32.partialorder %v193, 0.0
  %vm258 = vcmp.gt.f32.partialorder %v194, 0.0
  %vm259 = vcmp.gt.f32.partialorder %v195, 0.0
  %vm260 = vcmp.gt.f32.partialorder %v196, 0.0
  %vm261 = vcmp.gt.f32.partialorder %v197, 0.0
  %vm262 = vcmp.gt.f32.partialorder %v198, 0.0
  %vm263 = vcmp.gt.f32.partialorder %v199, 0.0
  %vm264 = vcmp.gt.f32.partialorder %v200, 0.0
  %vm265 = vcmp.gt.f32.partialorder %v201, 0.0
  %vm266 = vcmp.gt.f32.partialorder %v202, 0.0
  %vm267 = vcmp.gt.f32.partialorder %v203, 0.0
  %vm268 = vcmp.gt.f32.partialorder %v204, 0.0
  %vm269 = vcmp.gt.f32.partialorder %v205, 0.0
  %vm270 = vcmp.gt.f32.partialorder %v206, 0.0
  %vm271 = vcmp.gt.f32.partialorder %v207, 0.0
  %vm272 = vcmp.gt.f32.partialorder %v208, 0.0
  %vm273 = vcmp.gt.f32.partialorder %v209, 0.0
  %vm274 = vcmp.gt.f32.partialorder %v210, 0.0
  %vm275 = vcmp.gt.f32.partialorder %v211, 0.0
  %vm276 = vcmp.gt.f32.partialorder %v212, 0.0
  %vm277 = vcmp.gt.f32.partialorder %v213, 0.0
  %v278 = vmul.f32 %v150, 0.1
  %v279 = vmul.f32 %v151, 0.1
  %v280 = vmul.f32 %v152, 0.1
  %v281 = vmul.f32 %v153, 0.1
  %v282 = vmul.f32 %v154, 0.1
  %v283 = vmul.f32 %v155, 0.1
  %v284 = vmul.f32 %v156, 0.1
  %v285 = vmul.f32 %v157, 0.1
  %v286 = vmul.f32 %v158, 0.1
  %v287 = vmul.f32 %v159, 0.1
  %v288 = vmul.f32 %v160, 0.1
  %v289 = vmul.f32 %v161, 0.1
  %v290 = vmul.f32 %v162, 0.1
  %v291 = vmul.f32 %v163, 0.1
  %v292 = vmul.f32 %v164, 0.1
  %v293 = vmul.f32 %v165, 0.1
  %v294 = vmul.f32 %v166, 0.1
  %v295 = vmul.f32 %v167, 0.1
  %v296 = vmul.f32 %v168, 0.1
  %v297 = vmul.f32 %v169, 0.1
  %v298 = vmul.f32 %v170, 0.1
  %v299 = vmul.f32 %v171, 0.1
  %v300 = vmul.f32 %v172, 0.1
  %v301 = vmul.f32 %v173, 0.1
  %v302 = vmul.f32 %v174, 0.1
  %v303 = vmul.f32 %v175, 0.1
  %v304 = vmul.f32 %v176, 0.1
  %v305 = vmul.f32 %v177, 0.1
  %v306 = vmul.f32 %v178, 0.1
  %v307 = vmul.f32 %v179, 0.1
  %v308 = vmul.f32 %v180, 0.1
  %v309 = vmul.f32 %v181, 0.1
  %v310 = vmul.f32 %v182, 0.1
  %v311 = vmul.f32 %v183, 0.1
  %v312 = vmul.f32 %v184, 0.1
  %v313 = vmul.f32 %v185, 0.1
  %v314 = vmul.f32 %v186, 0.1
  %v315 = vmul.f32 %v187, 0.1
  %v316 = vmul.f32 %v188, 0.1
  %v317 = vmul.f32 %v189, 0.1
  %v318 = vmul.f32 %v190, 0.1
  %v319 = vmul.f32 %v191, 0.1
  %v320 = vmul.f32 %v192, 0.1
  %v321 = vmul.f32 %v193, 0.1
  %v322 = vmul.f32 %v194, 0.1
  %v323 = vmul.f32 %v195, 0.1
  %v324 = vmul.f32 %v196, 0.1
  %v325 = vmul.f32 %v197, 0.1
  %v326 = vmul.f32 %v198, 0.1
  %v327 = vmul.f32 %v199, 0.1
  %v328 = vmul.f32 %v200, 0.1
  %v329 = vmul.f32 %v201, 0.1
  %v330 = vmul.f32 %v202, 0.1
  %v331 = vmul.f32 %v203, 0.1
  %v332 = vmul.f32 %v204, 0.1
  %v333 = vmul.f32 %v205, 0.1
  %v334 = vmul.f32 %v206, 0.1
  %v335 = vmul.f32 %v207, 0.1
  %v336 = vmul.f32 %v208, 0.1
  %v337 = vmul.f32 %v209, 0.1
  %v338 = vmul.f32 %v210, 0.1
  %v339 = vmul.f32 %v211, 0.1
  %v340 = vmul.f32 %v212, 0.1
  %v341 = vmul.f32 %v213, 0.1
  %v342 = vsel %vm214, %v150, %v278
  %v343 = vsel %vm215, %v151, %v279
  %v344 = vsel %vm216, %v152, %v280
  %v345 = vsel %vm217, %v153, %v281
  %v346 = vsel %vm218, %v154, %v282
  %v347 = vsel %vm219, %v155, %v283
  %v348 = vsel %vm220, %v156, %v284
  %v349 = vsel %vm221, %v157, %v285
  %v350 = vsel %vm222, %v158, %v286
  %v351 = vsel %vm223, %v159, %v287
  %v352 = vsel %vm224, %v160, %v288
  %v353 = vsel %vm225, %v161, %v289
  %v354 = vsel %vm226, %v162, %v290
  %v355 = vsel %vm227, %v163, %v291
  %v356 = vsel %vm228, %v164, %v292
  %v357 = vsel %vm229, %v165, %v293
  %v358 = vsel %vm230, %v166, %v294
  %v359 = vsel %vm231, %v167, %v295
  %v360 = vsel %vm232, %v168, %v296
  %v361 = vsel %vm233, %v169, %v297
  %v362 = vsel %vm234, %v170, %v298
  %v363 = vsel %vm235, %v171, %v299
  %v364 = vsel %vm236, %v172, %v300
  %v365 = vsel %vm237, %v173, %v301
  %v366 = vsel %vm238, %v174, %v302
  %v367 = vsel %vm239, %v175, %v303
  %v368 = vsel %vm240, %v176, %v304
  %v369 = vsel %vm241, %v177, %v305
  %v370 = vsel %vm242, %v178, %v306
  %v371 = vsel %vm243, %v179, %v307
  %v372 = vsel %vm244, %v180, %v308
  %v373 = vsel %vm245, %v181, %v309
  %v374 = vsel %vm246, %v182, %v310
  %v375 = vsel %vm247, %v183, %v311
  %v376 = vsel %vm248, %v184, %v312
  %v377 = vsel %vm249, %v185, %v313
  %v378 = vsel %vm250, %v186, %v314
  %v379 = vsel %vm251, %v187, %v315
  %v380 = vsel %vm252, %v188, %v316
  %v381 = vsel %vm253, %v189, %v317
  %v382 = vsel %vm254, %v190, %v318
  %v383 = vsel %vm255, %v191, %v319
  %v384 = vsel %vm256, %v192, %v320
  %v385 = vsel %vm257, %v193, %v321
  %v386 = vsel %vm258, %v194, %v322
  %v387 = vsel %vm259, %v195, %v323
  %v388 = vsel %vm260, %v196, %v324
  %v389 = vsel %vm261, %v197, %v325
  %v390 = vsel %vm262, %v198, %v326
  %v391 = vsel %vm263, %v199, %v327
  %v392 = vsel %vm264, %v200, %v328
  %v393 = vsel %vm265, %v201, %v329
  %v394 = vsel %vm266, %v202, %v330
  %v395 = vsel %vm267, %v203, %v331
  %v396 = vsel %vm268, %v204, %v332
  %v397 = vsel %vm269, %v205, %v333
  %v398 = vsel %vm270, %v206, %v334
  %v399 = vsel %vm271, %v207, %v335
  %v400 = vsel %vm272, %v208, %v336
  %v401 = vsel %vm273, %v209, %v337
  %v402 = vsel %vm274, %v210, %v338
  %v403 = vsel %vm275, %v211, %v339
  %v404 = vsel %vm276, %v212, %v340
  %v405 = vsel %vm277, %v213, %v341
  %v406 = vpack.c.bf16 %v342, %v342
  %v407 = vpack.c.bf16 %v343, %v343
  %v408 = vpack.c.bf16 %v344, %v344
  %v409 = vpack.c.bf16 %v345, %v345
  %v410 = vpack.c.bf16 %v346, %v346
  %v411 = vpack.c.bf16 %v347, %v347
  %v412 = vpack.c.bf16 %v348, %v348
  %v413 = vpack.c.bf16 %v349, %v349
  %v414 = vpack.c.bf16 %v350, %v350
  %v415 = vpack.c.bf16 %v351, %v351
  %v416 = vpack.c.bf16 %v352, %v352
  %v417 = vpack.c.bf16 %v353, %v353
  %v418 = vpack.c.bf16 %v354, %v354
  %v419 = vpack.c.bf16 %v355, %v355
  %v420 = vpack.c.bf16 %v356, %v356
  %v421 = vpack.c.bf16 %v357, %v357
  %v422 = vpack.c.bf16 %v358, %v358
  %v423 = vpack.c.bf16 %v359, %v359
  %v424 = vpack.c.bf16 %v360, %v360
  %v425 = vpack.c.bf16 %v361, %v361
  %v426 = vpack.c.bf16 %v362, %v362
  %v427 = vpack.c.bf16 %v363, %v363
  %v428 = vpack.c.bf16 %v364, %v364
  %v429 = vpack.c.bf16 %v365, %v365
  %v430 = vpack.c.bf16 %v366, %v366
  %v431 = vpack.c.bf16 %v367, %v367
  %v432 = vpack.c.bf16 %v368, %v368
  %v433 = vpack.c.bf16 %v369, %v369
  %v434 = vpack.c.bf16 %v370, %v370
  %v435 = vpack.c.bf16 %v371, %v371
  %v436 = vpack.c.bf16 %v372, %v372
  %v437 = vpack.c.bf16 %v373, %v373
  %v438 = vpack.c.bf16 %v374, %v374
  %v439 = vpack.c.bf16 %v375, %v375
  %v440 = vpack.c.bf16 %v376, %v376
  %v441 = vpack.c.bf16 %v377, %v377
  %v442 = vpack.c.bf16 %v378, %v378
  %v443 = vpack.c.bf16 %v379, %v379
  %v444 = vpack.c.bf16 %v380, %v380
  %v445 = vpack.c.bf16 %v381, %v381
  %v446 = vpack.c.bf16 %v382, %v382
  %v447 = vpack.c.bf16 %v383, %v383
  %v448 = vpack.c.bf16 %v384, %v384
  %v449 = vpack.c.bf16 %v385, %v385
  %v450 = vpack.c.bf16 %v386, %v386
  %v451 = vpack.c.bf16 %v387, %v387
  %v452 = vpack.c.bf16 %v388, %v388
  %v453 = vpack.c.bf16 %v389, %v389
  %v454 = vpack.c.bf16 %v390, %v390
  %v455 = vpack.c.bf16 %v391, %v391
  %v456 = vpack.c.bf16 %v392, %v392
  %v457 = vpack.c.bf16 %v393, %v393
  %v458 = vpack.c.bf16 %v394, %v394
  %v459 = vpack.c.bf16 %v395, %v395
  %v460 = vpack.c.bf16 %v396, %v396
  %v461 = vpack.c.bf16 %v397, %v397
  %v462 = vpack.c.bf16 %v398, %v398
  %v463 = vpack.c.bf16 %v399, %v399
  %v464 = vpack.c.bf16 %v400, %v400
  %v465 = vpack.c.bf16 %v401, %v401
  %v466 = vpack.c.bf16 %v402, %v402
  %v467 = vpack.c.bf16 %v403, %v403
  %v468 = vpack.c.bf16 %v404, %v404
  %v469 = vpack.c.bf16 %v405, %v405
  %vm470 = vcmask 60416
  %471 = vst.msk [vmem:[%s3] sm:$0xf] %vm470, %v406
  %472 = vst.msk [vmem:[%s3 + $0x4] sm:$0xf] %vm470, %v407
  %473 = vst.msk [vmem:[%s3 + $0x8] sm:$0xf] %vm470, %v408
  %474 = vst.msk [vmem:[%s3 + $0xc] sm:$0xf] %vm470, %v409
  %475 = vst.msk [vmem:[%s3 + $0x10] sm:$0xf] %vm470, %v410
  %476 = vst.msk [vmem:[%s3 + $0x14] sm:$0xf] %vm470, %v411
  %477 = vst.msk [vmem:[%s3 + $0x18] sm:$0xf] %vm470, %v412
  %478 = vst.msk [vmem:[%s3 + $0x1c] sm:$0xf] %vm470, %v413
  %479 = vst.msk [vmem:[%s3 + $0x20] sm:$0xf] %vm470, %v414
  %480 = vst.msk [vmem:[%s3 + $0x24] sm:$0xf] %vm470, %v415
  %481 = vst.msk [vmem:[%s3 + $0x28] sm:$0xf] %vm470, %v416
  %482 = vst.msk [vmem:[%s3 + $0x2c] sm:$0xf] %vm470, %v417
  %483 = vst.msk [vmem:[%s3 + $0x30] sm:$0xf] %vm470, %v418
  %484 = vst.msk [vmem:[%s3 + $0x34] sm:$0xf] %vm470, %v419
  %485 = vst.msk [vmem:[%s3 + $0x38] sm:$0xf] %vm470, %v420
  %486 = vst.msk [vmem:[%s3 + $0x3c] sm:$0xf] %vm470, %v421
  %487 = vst.msk [vmem:[%s3 + $0x40] sm:$0xf] %vm470, %v422
  %488 = vst.msk [vmem:[%s3 + $0x44] sm:$0xf] %vm470, %v423
  %489 = vst.msk [vmem:[%s3 + $0x48] sm:$0xf] %vm470, %v424
  %490 = vst.msk [vmem:[%s3 + $0x4c] sm:$0xf] %vm470, %v425
  %491 = vst.msk [vmem:[%s3 + $0x50] sm:$0xf] %vm470, %v426
  %492 = vst.msk [vmem:[%s3 + $0x54] sm:$0xf] %vm470, %v427
  %493 = vst.msk [vmem:[%s3 + $0x58] sm:$0xf] %vm470, %v428
  %494 = vst.msk [vmem:[%s3 + $0x5c] sm:$0xf] %vm470, %v429
  %495 = vst.msk [vmem:[%s3 + $0x60] sm:$0xf] %vm470, %v430
  %496 = vst.msk [vmem:[%s3 + $0x64] sm:$0xf] %vm470, %v431
  %497 = vst.msk [vmem:[%s3 + $0x68] sm:$0xf] %vm470, %v432
  %498 = vst.msk [vmem:[%s3 + $0x6c] sm:$0xf] %vm470, %v433
  %499 = vst.msk [vmem:[%s3 + $0x70] sm:$0xf] %vm470, %v434
  %500 = vst.msk [vmem:[%s3 + $0x74] sm:$0xf] %vm470, %v435
  %501 = vst.msk [vmem:[%s3 + $0x78] sm:$0xf] %vm470, %v436
  %502 = vst.msk [vmem:[%s3 + $0x7c] sm:$0xf] %vm470, %v437
  %503 = vst.msk [vmem:[%s3 + $0x80] sm:$0xf] %vm470, %v438
  %504 = vst.msk [vmem:[%s3 + $0x84] sm:$0xf] %vm470, %v439
  %505 = vst.msk [vmem:[%s3 + $0x88] sm:$0xf] %vm470, %v440
  %506 = vst.msk [vmem:[%s3 + $0x8c] sm:$0xf] %vm470, %v441
  %507 = vst.msk [vmem:[%s3 + $0x90] sm:$0xf] %vm470, %v442
  %508 = vst.msk [vmem:[%s3 + $0x94] sm:$0xf] %vm470, %v443
  %509 = vst.msk [vmem:[%s3 + $0x98] sm:$0xf] %vm470, %v444
  %510 = vst.msk [vmem:[%s3 + $0x9c] sm:$0xf] %vm470, %v445
  %511 = vst.msk [vmem:[%s3 + $0xa0] sm:$0xf] %vm470, %v446
  %512 = vst.msk [vmem:[%s3 + $0xa4] sm:$0xf] %vm470, %v447
  %513 = vst.msk [vmem:[%s3 + $0xa8] sm:$0xf] %vm470, %v448
  %514 = vst.msk [vmem:[%s3 + $0xac] sm:$0xf] %vm470, %v449
  %515 = vst.msk [vmem:[%s3 + $0xb0] sm:$0xf] %vm470, %v450
  %516 = vst.msk [vmem:[%s3 + $0xb4] sm:$0xf] %vm470, %v451
  %517 = vst.msk [vmem:[%s3 + $0xb8] sm:$0xf] %vm470, %v452
  %518 = vst.msk [vmem:[%s3 + $0xbc] sm:$0xf] %vm470, %v453
  %519 = vst.msk [vmem:[%s3 + $0xc0] sm:$0xf] %vm470, %v454
  %520 = vst.msk [vmem:[%s3 + $0xc4] sm:$0xf] %vm470, %v455
  %521 = vst.msk [vmem:[%s3 + $0xc8] sm:$0xf] %vm470, %v456
  %522 = vst.msk [vmem:[%s3 + $0xcc] sm:$0xf] %vm470, %v457
  %523 = vst.msk [vmem:[%s3 + $0xd0] sm:$0xf] %vm470, %v458
  %524 = vst.msk [vmem:[%s3 + $0xd4] sm:$0xf] %vm470, %v459
  %525 = vst.msk [vmem:[%s3 + $0xd8] sm:$0xf] %vm470, %v460
  %526 = vst.msk [vmem:[%s3 + $0xdc] sm:$0xf] %vm470, %v461
  %527 = vst.msk [vmem:[%s3 + $0xe0] sm:$0xf] %vm470, %v462
  %528 = vst.msk [vmem:[%s3 + $0xe4] sm:$0xf] %vm470, %v463
  %529 = vst.msk [vmem:[%s3 + $0xe8] sm:$0xf] %vm470, %v464
  %530 = vst.msk [vmem:[%s3 + $0xec] sm:$0xf] %vm470, %v465
  %531 = vst.msk [vmem:[%s3 + $0xf0] sm:$0xf] %vm470, %v466
  %532 = vst.msk [vmem:[%s3 + $0xf4] sm:$0xf] %vm470, %v467
  %533 = vst.msk [vmem:[%s3 + $0xf8] sm:$0xf] %vm470, %v468
  %534 = vst.msk [vmem:[%s3 + $0xfc] sm:$0xf] %vm470, %v469
  // Predicated region
  $region14: #{convblock_forward.7} parent=0 // pred_check
    _
  $region15: #{convblock_forward.7} parent=0 // pred_check_branch
    %536 = sbr.rel (0) target = $region17
  $region16: #{convblock_forward.7} parent=0 // pred_region
    _
  $region17: #{convblock_forward.7} parent=0 // pred_fallthru
    _
  // Predicated region
  $region18: #{convblock_forward.7} parent=0 // pred_check
    _
  $region19: #{convblock_forward.7} parent=0 // pred_check_branch
    %538 = sbr.rel (0) target = $region21
  $region20: #{convblock_forward.7} parent=0 // pred_region
    _
  $region21: #{convblock_forward.7} parent=0 // pred_fallthru
    _

// kernel: convblock_forward.6
$region0: #{convblock_forward.6}
  #allocation0 [shape = 'u32[]', space=smem, size = 0x4, offset = 0x4, fixed_abs, tag = 'smem constant byte address 0x4 - core index']
  #allocation1 [shape = 'u32[72,128]{1,0:T(1,128)}', space=vmem, size = 0x9000, scoped, tag = 'internal scratch']
  %s0 = inlined_call_operand.vmem [shape: bf16[32,18,12], index: 0, kind: input, shape index: {}]
  %s1 = inlined_call_operand.vmem [shape: bf16[3,12,8], index: 1, kind: input, shape index: {}]
  %s2 = inlined_call_operand.vmem [shape: f32[512,8], index: 2, kind: output, shape index: {0}]
  %s3 = inlined_call_operand.vmem [shape: f32[1,2,8], index: 3, kind: output, shape index: {1}]
  %4 = xla_tuple %s2, %s3
  %s5 = sld [smem:[#allocation0]]
  $region26: #{convblock_forward.6} parent=0
    _
  %s7 = ssub.s32 1, %s5
  %s8 = scalar_select 0, %s7, %s5
  // Predicated region
  $region2: #{convblock_forward.6} parent=0 // pred_check
    _
  $region3: #{convblock_forward.6} parent=0 // pred_check_branch
    %10 = sbr.rel (0) target = $region5
  $region4: #{convblock_forward.6} parent=0 // pred_region
    _
  $region5: #{convblock_forward.6} parent=0 // pred_fallthru
    _
  // Predicated region
  $region6: #{convblock_forward.6} parent=0 // pred_check
    _
  $region7: #{convblock_forward.6} parent=0 // pred_check_branch
    %12 = sbr.rel (0) target = $region9
  $region8: #{convblock_forward.6} parent=0 // pred_region
    _
  $region9: #{convblock_forward.6} parent=0 // pred_fallthru
    _
  %v14 = vld [vmem:[%s0] sm:$0xf]
  %v15 = vld [vmem:[%s0 + $0x4] sm:$0xf]
  %v16 = vld [vmem:[%s0 + $0x8] sm:$0x1]
  %v17 = vld [vmem:[%s0 + $0xc] sm:$0xf]
  %v18 = vld [vmem:[%s0 + $0x10] sm:$0xf]
  %v19 = vld [vmem:[%s0 + $0x14] sm:$0x1]
  %v20 = vld [vmem:[%s0 + $0x18] sm:$0xf]
  %v21 = vld [vmem:[%s0 + $0x1c] sm:$0xf]
  %v22 = vld [vmem:[%s0 + $0x20] sm:$0x1]
  %v23 = vld [vmem:[%s0 + $0x24] sm:$0xf]
  %v24 = vld [vmem:[%s0 + $0x28] sm:$0xf]
  %v25 = vld [vmem:[%s0 + $0x2c] sm:$0x1]
  %v26 = vld [vmem:[%s0 + $0x30] sm:$0xf]
  %v27 = vld [vmem:[%s0 + $0x34] sm:$0xf]
  %v28 = vld [vmem:[%s0 + $0x38] sm:$0x1]
  %v29 = vld [vmem:[%s0 + $0x3c] sm:$0xf]
  %v30 = vld [vmem:[%s0 + $0x40] sm:$0xf]
  %v31 = vld [vmem:[%s0 + $0x44] sm:$0x1]
  %v32 = vld [vmem:[%s0 + $0x48] sm:$0xf]
  %v33 = vld [vmem:[%s0 + $0x4c] sm:$0xf]
  %v34 = vld [vmem:[%s0 + $0x50] sm:$0x1]
  %v35 = vld [vmem:[%s0 + $0x54] sm:$0xf]
  %v36 = vld [vmem:[%s0 + $0x58] sm:$0xf]
  %v37 = vld [vmem:[%s0 + $0x5c] sm:$0x1]
  %v38 = vld [vmem:[%s0 + $0x60] sm:$0xf]
  %v39 = vld [vmem:[%s0 + $0x64] sm:$0xf]
  %v40 = vld [vmem:[%s0 + $0x68] sm:$0x1]
  %v41 = vld [vmem:[%s0 + $0x6c] sm:$0xf]
  %v42 = vld [vmem:[%s0 + $0x70] sm:$0xf]
  %v43 = vld [vmem:[%s0 + $0x74] sm:$0x1]
  %v44 = vld [vmem:[%s0 + $0x78] sm:$0xf]
  %v45 = vld [vmem:[%s0 + $0x7c] sm:$0xf]
  %v46 = vld [vmem:[%s0 + $0x80] sm:$0x1]
  %v47 = vld [vmem:[%s0 + $0x84] sm:$0xf]
  %v48 = vld [vmem:[%s0 + $0x88] sm:$0xf]
  %v49 = vld [vmem:[%s0 + $0x8c] sm:$0x1]
  %v50 = vld [vmem:[%s0 + $0x90] sm:$0xf]
  %v51 = vld [vmem:[%s0 + $0x94] sm:$0xf]
  %v52 = vld [vmem:[%s0 + $0x98] sm:$0x1]
  %v53 = vld [vmem:[%s0 + $0x9c] sm:$0xf]
  %v54 = vld [vmem:[%s0 + $0xa0] sm:$0xf]
  %v55 = vld [vmem:[%s0 + $0xa4] sm:$0x1]
  %v56 = vld [vmem:[%s0 + $0xa8] sm:$0xf]
  %v57 = vld [vmem:[%s0 + $0xac] sm:$0xf]
  %v58 = vld [vmem:[%s0 + $0xb0] sm:$0x1]
  %v59 = vld [vmem:[%s0 + $0xb4] sm:$0xf]
  %v60 = vld [vmem:[%s0 + $0xb8] sm:$0xf]
  %v61 = vld [vmem:[%s0 + $0xbc] sm:$0x1]
  %v62 = vld [vmem:[%s0 + $0xc0] sm:$0xf]
  %v63 = vld [vmem:[%s0 + $0xc4] sm:$0xf]
  %v64 = vld [vmem:[%s0 + $0xc8] sm:$0x1]
  %v65 = vld [vmem:[%s0 + $0xcc] sm:$0xf]
  %v66 = vld [vmem:[%s0 + $0xd0] sm:$0xf]
  %v67 = vld [vmem:[%s0 + $0xd4] sm:$0x1]
  %v68 = vld [vmem:[%s0 + $0xd8] sm:$0xf]
  %v69 = vld [vmem:[%s0 + $0xdc] sm:$0xf]
  %v70 = vld [vmem:[%s0 + $0xe0] sm:$0x1]
  %v71 = vld [vmem:[%s0 + $0xe4] sm:$0xf]
  %v72 = vld [vmem:[%s0 + $0xe8] sm:$0xf]
  %v73 = vld [vmem:[%s0 + $0xec] sm:$0x1]
  %v74 = vld [vmem:[%s0 + $0xf0] sm:$0xf]
  %v75 = vld [vmem:[%s0 + $0xf4] sm:$0xf]
  %v76 = vld [vmem:[%s0 + $0xf8] sm:$0x1]
  %v77 = vld [vmem:[%s0 + $0xfc] sm:$0xf]
  %v78 = vld [vmem:[%s0 + $0x100] sm:$0xf]
  %v79 = vld [vmem:[%s0 + $0x104] sm:$0x1]
  %v80 = vld [vmem:[%s0 + $0x108] sm:$0xf]
  %v81 = vld [vmem:[%s0 + $0x10c] sm:$0xf]
  %v82 = vld [vmem:[%s0 + $0x110] sm:$0x1]
  %v83 = vld [vmem:[%s0 + $0x114] sm:$0xf]
  %v84 = vld [vmem:[%s0 + $0x118] sm:$0xf]
  %v85 = vld [vmem:[%s0 + $0x11c] sm:$0x1]
  %v86 = vld [vmem:[%s0 + $0x120] sm:$0xf]
  %v87 = vld [vmem:[%s0 + $0x124] sm:$0xf]
  %v88 = vld [vmem:[%s0 + $0x128] sm:$0x1]
  %v89 = vld [vmem:[%s0 + $0x12c] sm:$0xf]
  %v90 = vld [vmem:[%s0 + $0x130] sm:$0xf]
  %v91 = vld [vmem:[%s0 + $0x134] sm:$0x1]
  %v92 = vld [vmem:[%s0 + $0x138] sm:$0xf]
  %v93 = vld [vmem:[%s0 + $0x13c] sm:$0xf]
  %v94 = vld [vmem:[%s0 + $0x140] sm:$0x1]
  %v95 = vld [vmem:[%s0 + $0x144] sm:$0xf]
  %v96 = vld [vmem:[%s0 + $0x148] sm:$0xf]
  %v97 = vld [vmem:[%s0 + $0x14c] sm:$0x1]
  %v98 = vld [vmem:[%s0 + $0x150] sm:$0xf]
  %v99 = vld [vmem:[%s0 + $0x154] sm:$0xf]
  %v100 = vld [vmem:[%s0 + $0x158] sm:$0x1]
  %v101 = vld [vmem:[%s0 + $0x15c] sm:$0xf]
  %v102 = vld [vmem:[%s0 + $0x160] sm:$0xf]
  %v103 = vld [vmem:[%s0 + $0x164] sm:$0x1]
  %v104 = vld [vmem:[%s0 + $0x168] sm:$0xf]
  %v105 = vld [vmem:[%s0 + $0x16c] sm:$0xf]
  %v106 = vld [vmem:[%s0 + $0x170] sm:$0x1]
  %v107 = vld [vmem:[%s0 + $0x174] sm:$0xf]
  %v108 = vld [vmem:[%s0 + $0x178] sm:$0xf]
  %v109 = vld [vmem:[%s0 + $0x17c] sm:$0x1]
  %v110 = vunpack.c.l.bf16 %v14
  %v111 = vunpack.c.l.bf16 %v15
  %v112 = vunpack.c.l.bf16 %v16
  %v113 = vunpack.c.l.bf16 %v17
  %v114 = vunpack.c.l.bf16 %v18
  %v115 = vunpack.c.l.bf16 %v19
  %v116 = vunpack.c.l.bf16 %v20
  %v117 = vunpack.c.l.bf16 %v21
  %v118 = vunpack.c.l.bf16 %v22
  %v119 = vunpack.c.l.bf16 %v23
  %v120 = vunpack.c.l.bf16 %v24
  %v121 = vunpack.c.l.bf16 %v25
  %v122 = vunpack.c.l.bf16 %v26
  %v123 = vunpack.c.l.bf16 %v27
  %v124 = vunpack.c.l.bf16 %v28
  %v125 = vunpack.c.l.bf16 %v29
  %v126 = vunpack.c.l.bf16 %v30
  %v127 = vunpack.c.l.bf16 %v31
  %v128 = vunpack.c.l.bf16 %v32
  %v129 = vunpack.c.l.bf16 %v33
  %v130 = vunpack.c.l.bf16 %v34
  %v131 = vunpack.c.l.bf16 %v35
  %v132 = vunpack.c.l.bf16 %v36
  %v133 = vunpack.c.l.bf16 %v37
  %v134 = vunpack.c.l.bf16 %v38
  %v135 = vunpack.c.l.bf16 %v39
  %v136 = vunpack.c.l.bf16 %v40
  %v137 = vunpack.c.l.bf16 %v41
  %v138 = vunpack.c.l.bf16 %v42
  %v139 = vunpack.c.l.bf16 %v43
  %v140 = vunpack.c.l.bf16 %v44
  %v141 = vunpack.c.l.bf16 %v45
  %v142 = vunpack.c.l.bf16 %v46
  %v143 = vunpack.c.l.bf16 %v47
  %v144 = vunpack.c.l.bf16 %v48
  %v145 = vunpack.c.l.bf16 %v49
  %v146 = vunpack.c.l.bf16 %v50
  %v147 = vunpack.c.l.bf16 %v51
  %v148 = vunpack.c.l.bf16 %v52
  %v149 = vunpack.c.l.bf16 %v53
  %v150 = vunpack.c.l.bf16 %v54
  %v151 = vunpack.c.l.bf16 %v55
  %v152 = vunpack.c.l.bf16 %v56
  %v153 = vunpack.c.l.bf16 %v57
  %v154 = vunpack.c.l.bf16 %v58
  %v155 = vunpack.c.l.bf16 %v59
  %v156 = vunpack.c.l.bf16 %v60
  %v157 = vunpack.c.l.bf16 %v61
  %v158 = vunpack.c.l.bf16 %v62
  %v159 = vunpack.c.l.bf16 %v63
  %v160 = vunpack.c.l.bf16 %v64
  %v161 = vunpack.c.l.bf16 %v65
  %v162 = vunpack.c.l.bf16 %v66
  %v163 = vunpack.c.l.bf16 %v67
  %v164 = vunpack.c.l.bf16 %v68
  %v165 = vunpack.c.l.bf16 %v69
  %v166 = vunpack.c.l.bf16 %v70
  %v167 = vunpack.c.l.bf16 %v71
  %v168 = vunpack.c.l.bf16 %v72
  %v169 = vunpack.c.l.bf16 %v73
  %v170 = vunpack.c.l.bf16 %v74
  %v171 = vunpack.c.l.bf16 %v75
  %v172 = vunpack.c.l.bf16 %v76
  %v173 = vunpack.c.l.bf16 %v77
  %v174 = vunpack.c.l.bf16 %v78
  %v175 = vunpack.c.l.bf16 %v79
  %v176 = vunpack.c.l.bf16 %v80
  %v177 = vunpack.c.l.bf16 %v81
  %v178 = vunpack.c.l.bf16 %v82
  %v179 = vunpack.c.l.bf16 %v83
  %v180 = vunpack.c.l.bf16 %v84
  %v181 = vunpack.c.l.bf16 %v85
  %v182 = vunpack.c.l.bf16 %v86
  %v183 = vunpack.c.l.bf16 %v87
  %v184 = vunpack.c.l.bf16 %v88
  %v185 = vunpack.c.l.bf16 %v89
  %v186 = vunpack.c.l.bf16 %v90
  %v187 = vunpack.c.l.bf16 %v91
  %v188 = vunpack.c.l.bf16 %v92
  %v189 = vunpack.c.l.bf16 %v93
  %v190 = vunpack.c.l.bf16 %v94
  %v191 = vunpack.c.l.bf16 %v95
  %v192 = vunpack.c.l.bf16 %v96
  %v193 = vunpack.c.l.bf16 %v97
  %v194 = vunpack.c.l.bf16 %v98
  %v195 = vunpack.c.l.bf16 %v99
  %v196 = vunpack.c.l.bf16 %v100
  %v197 = vunpack.c.l.bf16 %v101
  %v198 = vunpack.c.l.bf16 %v102
  %v199 = vunpack.c.l.bf16 %v103
  %v200 = vunpack.c.l.bf16 %v104
  %v201 = vunpack.c.l.bf16 %v105
  %v202 = vunpack.c.l.bf16 %v106
  %v203 = vunpack.c.l.bf16 %v107
  %v204 = vunpack.c.l.bf16 %v108
  %v205 = vunpack.c.l.bf16 %v109
  %v206 = vpack.c.bf16 %v111, %v110
  %v207 = vpack.c.bf16 %v114, %v113
  %v208 = vpack.c.bf16 %v117, %v116
  %v209 = vpack.c.bf16 %v120, %v119
  %v210 = vpack.c.bf16 %v123, %v122
  %v211 = vpack.c.bf16 %v126, %v125
  %v212 = vpack.c.bf16 %v129, %v128
  %v213 = vpack.c.bf16 %v132, %v131
  %v214 = vpack.c.bf16 %v135, %v134
  %v215 = vpack.c.bf16 %v138, %v137
  %v216 = vpack.c.bf16 %v141, %v140
  %v217 = vpack.c.bf16 %v144, %v143
  %v218 = vpack.c.bf16 %v147, %v146
  %v219 = vpack.c.bf16 %v150, %v149
  %v220 = vpack.c.bf16 %v153, %v152
  %v221 = vpack.c.bf16 %v156, %v155
  %v222 = vpack.c.bf16 %v159, %v158
  %v223 = vpack.c.bf16 %v162, %v161
  %v224 = vpack.c.bf16 %v165, %v164
  %v225 = vpack.c.bf16 %v168, %v167
  %v226 = vpack.c.bf16 %v171, %v170
  %v227 = vpack.c.bf16 %v174, %v173
  %v228 = vpack.c.bf16 %v177, %v176
  %v229 = vpack.c.bf16 %v180, %v179
  %v230 = vpack.c.bf16 %v183, %v182
  %v231 = vpack.c.bf16 %v186, %v185
  %v232 = vpack.c.bf16 %v189, %v188
  %v233 = vpack.c.bf16 %v192, %v191
  %v234 = vpack.c.bf16 %v195, %v194
  %v235 = vpack.c.bf16 %v198, %v197
  %v236 = vpack.c.bf16 %v201, %v200
  %v237 = vpack.c.bf16 %v204, %v203
  %v238 = vld [vmem:[%s1] sm:$0xf]
  %v239 = vld [vmem:[%s1 + $0x4] sm:$0x3]
  %vm336 = vcmask 1046528
  %v337 = vrot.slane %v110, 1
  %v338 = vrot.slane %v111, 1
  %v339 = vsel %vm336, %v337, %v338
  %v340 = vrot.slane %v112, 1
  %v341 = vsel %vm336, %v338, %v340
  %v342 = vrot.slane %v113, 1
  %v343 = vrot.slane %v114, 1
  %v344 = vsel %vm336, %v342, %v343
  %v345 = vrot.slane %v115, 1
  %v346 = vsel %vm336, %v343, %v345
  %v347 = vrot.slane %v116, 1
  %v348 = vrot.slane %v117, 1
  %v349 = vsel %vm336, %v347, %v348
  %v350 = vrot.slane %v118, 1
  %v351 = vsel %vm336, %v348, %v350
  %v352 = vrot.slane %v119, 1
  %v353 = vrot.slane %v120, 1
  %v354 = vsel %vm336, %v352, %v353
  %v355 = vrot.slane %v121, 1
  %v356 = vsel %vm336, %v353, %v355
  %v357 = vrot.slane %v122, 1
  %v358 = vrot.slane %v123, 1
  %v359 = vsel %vm336, %v357, %v358
  %v360 = vrot.slane %v124, 1
  %v361 = vsel %vm336, %v358, %v360
  %v362 = vrot.slane %v125, 1
  %v363 = vrot.slane %v126, 1
  %v364 = vsel %vm336, %v362, %v363
  %v365 = vrot.slane %v127, 1
  %v366 = vsel %vm336, %v363, %v365
  %v367 = vrot.slane %v128, 1
  %v368 = vrot.slane %v129, 1
  %v369 = vsel %vm336, %v367, %v368
  %v370 = vrot.slane %v130, 1
  %v371 = vsel %vm336, %v368, %v370
  %v372 = vrot.slane %v131, 1
  %v373 = vrot.slane %v132, 1
  %v374 = vsel %vm336, %v372, %v373
  %v375 = vrot.slane %v133, 1
  %v376 = vsel %vm336, %v373, %v375
  %v377 = vrot.slane %v134, 1
  %v378 = vrot.slane %v135, 1
  %v379 = vsel %vm336, %v377, %v378
  %v380 = vrot.slane %v136, 1
  %v381 = vsel %vm336, %v378, %v380
  %v382 = vrot.slane %v137, 1
  %v383 = vrot.slane %v138, 1
  %v384 = vsel %vm336, %v382, %v383
  %v385 = vrot.slane %v139, 1
  %v386 = vsel %vm336, %v383, %v385
  %v387 = vrot.slane %v140, 1
  %v388 = vrot.slane %v141, 1
  %v389 = vsel %vm336, %v387, %v388
  %v390 = vrot.slane %v142, 1
  %v391 = vsel %vm336, %v388, %v390
  %v392 = vrot.slane %v143, 1
  %v393 = vrot.slane %v144, 1
  %v394 = vsel %vm336, %v392, %v393
  %v395 = vrot.slane %v145, 1
  %v396 = vsel %vm336, %v393, %v395
  %v397 = vrot.slane %v146, 1
  %v398 = vrot.slane %v147, 1
  %v399 = vsel %vm336, %v397, %v398
  %v400 = vrot.slane %v148, 1
  %v401 = vsel %vm336, %v398, %v400
  %v402 = vrot.slane %v149, 1
  %v403 = vrot.slane %v150, 1
  %v404 = vsel %vm336, %v402, %v403
  %v405 = vrot.slane %v151, 1
  %v406 = vsel %vm336, %v403, %v405
  %v407 = vrot.slane %v152, 1
  %v408 = vrot.slane %v153, 1
  %v409 = vsel %vm336, %v407, %v408
  %v410 = vrot.slane %v154, 1
  %v411 = vsel %vm336, %v408, %v410
  %v412 = vrot.slane %v155, 1
  %v413 = vrot.slane %v156, 1
  %v414 = vsel %vm336, %v412, %v413
  %v415 = vrot.slane %v157, 1
  %v416 = vsel %vm336, %v413, %v415
  %v417 = vrot.slane %v158, 1
  %v418 = vrot.slane %v159, 1
  %v419 = vsel %vm336, %v417, %v418
  %v420 = vrot.slane %v160, 1
  %v421 = vsel %vm336, %v418, %v420
  %v422 = vrot.slane %v161, 1
  %v423 = vrot.slane %v162, 1
  %v424 = vsel %vm336, %v422, %v423
  %v425 = vrot.slane %v163, 1
  %v426 = vsel %vm336, %v423, %v425
  %v427 = vrot.slane %v164, 1
  %v428 = vrot.slane %v165, 1
  %v429 = vsel %vm336, %v427, %v428
  %v430 = vrot.slane %v166, 1
  %v431 = vsel %vm336, %v428, %v430
  %v432 = vrot.slane %v167, 1
  %v433 = vrot.slane %v168, 1
  %v434 = vsel %vm336, %v432, %v433
  %v435 = vrot.slane %v169, 1
  %v436 = vsel %vm336, %v433, %v435
  %v437 = vrot.slane %v170, 1
  %v438 = vrot.slane %v171, 1
  %v439 = vsel %vm336, %v437, %v438
  %v440 = vrot.slane %v172, 1
  %v441 = vsel %vm336, %v438, %v440
  %v442 = vrot.slane %v173, 1
  %v443 = vrot.slane %v174, 1
  %v444 = vsel %vm336, %v442, %v443
  %v445 = vrot.slane %v175, 1
  %v446 = vsel %vm336, %v443, %v445
  %v447 = vrot.slane %v176, 1
  %v448 = vrot.slane %v177, 1
  %v449 = vsel %vm336, %v447, %v448
  %v450 = vrot.slane %v178, 1
  %v451 = vsel %vm336, %v448, %v450
  %v452 = vrot.slane %v179, 1
  %v453 = vrot.slane %v180, 1
  %v454 = vsel %vm336, %v452, %v453
  %v455 = vrot.slane %v181, 1
  %v456 = vsel %vm336, %v453, %v455
  %v457 = vrot.slane %v182, 1
  %v458 = vrot.slane %v183, 1
  %v459 = vsel %vm336, %v457, %v458
  %v460 = vrot.slane %v184, 1
  %v461 = vsel %vm336, %v458, %v460
  %v462 = vrot.slane %v185, 1
  %v463 = vrot.slane %v186, 1
  %v464 = vsel %vm336, %v462, %v463
  %v465 = vrot.slane %v187, 1
  %v466 = vsel %vm336, %v463, %v465
  %v467 = vrot.slane %v188, 1
  %v468 = vrot.slane %v189, 1
  %v469 = vsel %vm336, %v467, %v468
  %v470 = vrot.slane %v190, 1
  %v471 = vsel %vm336, %v468, %v470
  %v472 = vrot.slane %v191, 1
  %v473 = vrot.slane %v192, 1
  %v474 = vsel %vm336, %v472, %v473
  %v475 = vrot.slane %v193, 1
  %v476 = vsel %vm336, %v473, %v475
  %v477 = vrot.slane %v194, 1
  %v478 = vrot.slane %v195, 1
  %v479 = vsel %vm336, %v477, %v478
  %v480 = vrot.slane %v196, 1
  %v481 = vsel %vm336, %v478, %v480
  %v482 = vrot.slane %v197, 1
  %v483 = vrot.slane %v198, 1
  %v484 = vsel %vm336, %v482, %v483
  %v485 = vrot.slane %v199, 1
  %v486 = vsel %vm336, %v483, %v485
  %v487 = vrot.slane %v200, 1
  %v488 = vrot.slane %v201, 1
  %v489 = vsel %vm336, %v487, %v488
  %v490 = vrot.slane %v202, 1
  %v491 = vsel %vm336, %v488, %v490
  %v492 = vrot.slane %v203, 1
  %v493 = vrot.slane %v204, 1
  %v494 = vsel %vm336, %v492, %v493
  %v495 = vrot.slane %v205, 1
  %v496 = vsel %vm336, %v493, %v495
  %v561 = vpack.c.bf16 %v341, %v339
  %v562 = vpack.c.bf16 %v346, %v344
  %v563 = vpack.c.bf16 %v351, %v349
  %v564 = vpack.c.bf16 %v356, %v354
  %v565 = vpack.c.bf16 %v361, %v359
  %v566 = vpack.c.bf16 %v366, %v364
  %v567 = vpack.c.bf16 %v371, %v369
  %v568 = vpack.c.bf16 %v376, %v374
  %v569 = vpack.c.bf16 %v381, %v379
  %v570 = vpack.c.bf16 %v386, %v384
  %v571 = vpack.c.bf16 %v391, %v389
  %v572 = vpack.c.bf16 %v396, %v394
  %v573 = vpack.c.bf16 %v401, %v399
  %v574 = vpack.c.bf16 %v406, %v404
  %v575 = vpack.c.bf16 %v411, %v409
  %v576 = vpack.c.bf16 %v416, %v414
  %v577 = vpack.c.bf16 %v421, %v419
  %v578 = vpack.c.bf16 %v426, %v424
  %v579 = vpack.c.bf16 %v431, %v429
  %v580 = vpack.c.bf16 %v436, %v434
  %v581 = vpack.c.bf16 %v441, %v439
  %v582 = vpack.c.bf16 %v446, %v444
  %v583 = vpack.c.bf16 %v451, %v449
  %v584 = vpack.c.bf16 %v456, %v454
  %v585 = vpack.c.bf16 %v461, %v459
  %v586 = vpack.c.bf16 %v466, %v464
  %v587 = vpack.c.bf16 %v471, %v469
  %v588 = vpack.c.bf16 %v476, %v474
  %v589 = vpack.c.bf16 %v481, %v479
  %v590 = vpack.c.bf16 %v486, %v484
  %v591 = vpack.c.bf16 %v491, %v489
  %v592 = vpack.c.bf16 %v496, %v494
  %s593 = scalar_lea.vmem %s1, 8
  %v594 = vld [vmem:[%s593] sm:$0xf]
  %v595 = vld [vmem:[%s593 + $0x4] sm:$0x3]
  %v598 = vunpack.c.l.b16 %v594
  %v599 = vunpack.c.l.b16 %v595
  %v600 = vpack.c.b16 %v599, %v598
  %vm601 = vcmask 97280
  %v603 = vsel %vm601, %v561, 0
  %v606 = vsel %vm601, %v562, 0
  %v609 = vsel %vm601, %v563, 0
  %v612 = vsel %vm601, %v564, 0
  %v615 = vsel %vm601, %v565, 0
  %v618 = vsel %vm601, %v566, 0
  %v621 = vsel %vm601, %v567, 0
  %v624 = vsel %vm601, %v568, 0
  %v627 = vsel %vm601, %v569, 0
  %v630 = vsel %vm601, %v570, 0
  %v633 = vsel %vm601, %v571, 0
  %v636 = vsel %vm601, %v572, 0
  %v639 = vsel %vm601, %v573, 0
  %v642 = vsel %vm601, %v574, 0
  %v645 = vsel %vm601, %v575, 0
  %v648 = vsel %vm601, %v576, 0
  %v651 = vsel %vm601, %v577, 0
  %v654 = vsel %vm601, %v578, 0
  %v657 = vsel %vm601, %v579, 0
  %v660 = vsel %vm601, %v580, 0
  %v663 = vsel %vm601, %v581, 0
  %v666 = vsel %vm601, %v582, 0
  %v669 = vsel %vm601, %v583, 0
  %v672 = vsel %vm601, %v584, 0
  %v675 = vsel %vm601, %v585, 0
  %v678 = vsel %vm601, %v586, 0
  %v681 = vsel %vm601, %v587, 0
  %v684 = vsel %vm601, %v588, 0
  %v687 = vsel %vm601, %v589, 0
  %v690 = vsel %vm601, %v590, 0
  %v693 = vsel %vm601, %v591, 0
  %v696 = vsel %vm601, %v592, 0
  %vm698 = vcmask 1045504
  %v700 = vsel %vm698, %v600, 0
  %702 = vmatpush.bf16.msra.mxu0 0
  %703 = vmatpush.bf16.msra.mxu0 0
  %704 = vmatpush.bf16.msra.mxu0 0
  %705 = vmatpush.bf16.msra.mxu0 0
  %706 = vmatpush.bf16.msra.mxu0 0
  %707 = vmatpush.bf16.msra.mxu0 0
  %708 = vmatpush.bf16.msra.mxu0 0
  %709 = vmatpush.bf16.msra.mxu0 %v700
  %710 = vmatmul.bf16.gmra.mxu0 %v603
  %v711 = vpop.f32.mrf.mxu0
  %v712 = vadd.f32 0.0, %v711
  %v713 = vpop.f32.mrf.mxu0
  %v714 = vadd.f32 0.0, %v713
  %715 = vmatmul.bf16.gmra.mxu0 %v606
  %v716 = vpop.f32.mrf.mxu0
  %v717 = vadd.f32 0.0, %v716
  %v718 = vpop.f32.mrf.mxu0
  %v719 = vadd.f32 0.0, %v718
  %720 = vmatmul.bf16.gmra.mxu0 %v609
  %v721 = vpop.f32.mrf.mxu0
  %v722 = vadd.f32 0.0, %v721
  %v723 = vpop.f32.mrf.mxu0
  %v724 = vadd.f32 0.0, %v723
  %725 = vmatmul.bf16.gmra.mxu0 %v612
  %v726 = vpop.f32.mrf.mxu0
  %v727 = vadd.f32 0.0, %v726
  %v728 = vpop.f32.mrf.mxu0
  %v729 = vadd.f32 0.0, %v728
  %730 = vmatmul.bf16.gmra.mxu0 %v615
  %v731 = vpop.f32.mrf.mxu0
  %v732 = vadd.f32 0.0, %v731
  %v733 = vpop.f32.mrf.mxu0
  %v734 = vadd.f32 0.0, %v733
  %735 = vmatmul.bf16.gmra.mxu0 %v618
  %v736 = vpop.f32.mrf.mxu0
  %v737 = vadd.f32 0.0, %v736
  %v738 = vpop.f32.mrf.mxu0
  %v739 = vadd.f32 0.0, %v738
  %740 = vmatmul.bf16.gmra.mxu0 %v621
  %v741 = vpop.f32.mrf.mxu0
  %v742 = vadd.f32 0.0, %v741
  %v743 = vpop.f32.mrf.mxu0
  %v744 = vadd.f32 0.0, %v743
  %745 = vmatmul.bf16.gmra.mxu0 %v624
  %v746 = vpop.f32.mrf.mxu0
  %v747 = vadd.f32 0.0, %v746
  %v748 = vpop.f32.mrf.mxu0
  %v749 = vadd.f32 0.0, %v748
  %750 = vmatmul.bf16.gmra.mxu0 %v627
  %v751 = vpop.f32.mrf.mxu0
  %v752 = vadd.f32 0.0, %v751
  %v753 = vpop.f32.mrf.mxu0
  %v754 = vadd.f32 0.0, %v753
  %755 = vmatmul.bf16.gmra.mxu0 %v630
  %v756 = vpop.f32.mrf.mxu0
  %v757 = vadd.f32 0.0, %v756
  %v758 = vpop.f32.mrf.mxu0
  %v759 = vadd.f32 0.0, %v758
  %760 = vmatmul.bf16.gmra.mxu0 %v633
  %v761 = vpop.f32.mrf.mxu0
  %v762 = vadd.f32 0.0, %v761
  %v763 = vpop.f32.mrf.mxu0
  %v764 = vadd.f32 0.0, %v763
  %765 = vmatmul.bf16.gmra.mxu0 %v636
  %v766 = vpop.f32.mrf.mxu0
  %v767 = vadd.f32 0.0, %v766
  %v768 = vpop.f32.mrf.mxu0
  %v769 = vadd.f32 0.0, %v768
  %770 = vmatmul.bf16.gmra.mxu0 %v639
  %v771 = vpop.f32.mrf.mxu0
  %v772 = vadd.f32 0.0, %v771
  %v773 = vpop.f32.mrf.mxu0
  %v774 = vadd.f32 0.0, %v773
  %775 = vmatmul.bf16.gmra.mxu0 %v642
  %v776 = vpop.f32.mrf.mxu0
  %v777 = vadd.f32 0.0, %v776
  %v778 = vpop.f32.mrf.mxu0
  %v779 = vadd.f32 0.0, %v778
  %780 = vmatmul.bf16.gmra.mxu0 %v645
  %v781 = vpop.f32.mrf.mxu0
  %v782 = vadd.f32 0.0, %v781
  %v783 = vpop.f32.mrf.mxu0
  %v784 = vadd.f32 0.0, %v783
  %785 = vmatmul.bf16.gmra.mxu0 %v648
  %v786 = vpop.f32.mrf.mxu0
  %v787 = vadd.f32 0.0, %v786
  %v788 = vpop.f32.mrf.mxu0
  %v789 = vadd.f32 0.0, %v788
  %790 = vmatmul.bf16.gmra.mxu0 %v651
  %v791 = vpop.f32.mrf.mxu0
  %v792 = vadd.f32 0.0, %v791
  %v793 = vpop.f32.mrf.mxu0
  %v794 = vadd.f32 0.0, %v793
  %795 = vmatmul.bf16.gmra.mxu0 %v654
  %v796 = vpop.f32.mrf.mxu0
  %v797 = vadd.f32 0.0, %v796
  %v798 = vpop.f32.mrf.mxu0
  %v799 = vadd.f32 0.0, %v798
  %800 = vmatmul.bf16.gmra.mxu0 %v657
  %v801 = vpop.f32.mrf.mxu0
  %v802 = vadd.f32 0.0, %v801
  %v803 = vpop.f32.mrf.mxu0
  %v804 = vadd.f32 0.0, %v803
  %805 = vmatmul.bf16.gmra.mxu0 %v660
  %v806 = vpop.f32.mrf.mxu0
  %v807 = vadd.f32 0.0, %v806
  %v808 = vpop.f32.mrf.mxu0
  %v809 = vadd.f32 0.0, %v808
  %810 = vmatmul.bf16.gmra.mxu0 %v663
  %v811 = vpop.f32.mrf.mxu0
  %v812 = vadd.f32 0.0, %v811
  %v813 = vpop.f32.mrf.mxu0
  %v814 = vadd.f32 0.0, %v813
  %815 = vmatmul.bf16.gmra.mxu0 %v666
  %v816 = vpop.f32.mrf.mxu0
  %v817 = vadd.f32 0.0, %v816
  %v818 = vpop.f32.mrf.mxu0
  %v819 = vadd.f32 0.0, %v818
  %820 = vmatmul.bf16.gmra.mxu0 %v669
  %v821 = vpop.f32.mrf.mxu0
  %v822 = vadd.f32 0.0, %v821
  %v823 = vpop.f32.mrf.mxu0
  %v824 = vadd.f32 0.0, %v823
  %825 = vmatmul.bf16.gmra.mxu0 %v672
  %v826 = vpop.f32.mrf.mxu0
  %v827 = vadd.f32 0.0, %v826
  %v828 = vpop.f32.mrf.mxu0
  %v829 = vadd.f32 0.0, %v828
  %830 = vmatmul.bf16.gmra.mxu0 %v675
  %v831 = vpop.f32.mrf.mxu0
  %v832 = vadd.f32 0.0, %v831
  %v833 = vpop.f32.mrf.mxu0
  %v834 = vadd.f32 0.0, %v833
  %835 = vmatmul.bf16.gmra.mxu0 %v678
  %v836 = vpop.f32.mrf.mxu0
  %v837 = vadd.f32 0.0, %v836
  %v838 = vpop.f32.mrf.mxu0
  %v839 = vadd.f32 0.0, %v838
  %840 = vmatmul.bf16.gmra.mxu0 %v681
  %v841 = vpop.f32.mrf.mxu0
  %v842 = vadd.f32 0.0, %v841
  %v843 = vpop.f32.mrf.mxu0
  %v844 = vadd.f32 0.0, %v843
  %845 = vmatmul.bf16.gmra.mxu0 %v684
  %v846 = vpop.f32.mrf.mxu0
  %v847 = vadd.f32 0.0, %v846
  %v848 = vpop.f32.mrf.mxu0
  %v849 = vadd.f32 0.0, %v848
  %850 = vmatmul.bf16.gmra.mxu0 %v687
  %v851 = vpop.f32.mrf.mxu0
  %v852 = vadd.f32 0.0, %v851
  %v853 = vpop.f32.mrf.mxu0
  %v854 = vadd.f32 0.0, %v853
  %855 = vmatmul.bf16.gmra.mxu0 %v690
  %v856 = vpop.f32.mrf.mxu0
  %v857 = vadd.f32 0.0, %v856
  %v858 = vpop.f32.mrf.mxu0
  %v859 = vadd.f32 0.0, %v858
  %860 = vmatmul.bf16.gmra.mxu0 %v693
  %v861 = vpop.f32.mrf.mxu0
  %v862 = vadd.f32 0.0, %v861
  %v863 = vpop.f32.mrf.mxu0
  %v864 = vadd.f32 0.0, %v863
  %865 = vmatmul.bf16.gmra.mxu0 %v696
  %v866 = vpop.f32.mrf.mxu0
  %v867 = vadd.f32 0.0, %v866
  %v868 = vpop.f32.mrf.mxu0
  %v869 = vadd.f32 0.0, %v868
  %870 = vdwg.mxu0
  %v873 = vunpack.c.l.b16 %v238
  %v874 = vunpack.c.l.b16 %v239
  %v875 = vpack.c.b16 %v874, %v873
  %v877 = vsel %vm601, %v206, 0
  %v880 = vsel %vm601, %v207, 0
  %v883 = vsel %vm601, %v208, 0
  %v886 = vsel %vm601, %v209, 0
  %v889 = vsel %vm601, %v210, 0
  %v892 = vsel %vm601, %v211, 0
  %v895 = vsel %vm601, %v212, 0
  %v898 = vsel %vm601, %v213, 0
  %v901 = vsel %vm601, %v214, 0
  %v904 = vsel %vm601, %v215, 0
  %v907 = vsel %vm601, %v216, 0
  %v910 = vsel %vm601, %v217, 0
  %v913 = vsel %vm601, %v218, 0
  %v916 = vsel %vm601, %v219, 0
  %v919 = vsel %vm601, %v220, 0
  %v922 = vsel %vm601, %v221, 0
  %v925 = vsel %vm601, %v222, 0
  %v928 = vsel %vm601, %v223, 0
  %v931 = vsel %vm601, %v224, 0
  %v934 = vsel %vm601, %v225, 0
  %v937 = vsel %vm601, %v226, 0
  %v940 = vsel %vm601, %v227, 0
  %v943 = vsel %vm601, %v228, 0
  %v946 = vsel %vm601, %v229, 0
  %v949 = vsel %vm601, %v230, 0
  %v952 = vsel %vm601, %v231, 0
  %v955 = vsel %vm601, %v232, 0
  %v958 = vsel %vm601, %v233, 0
  %v961 = vsel %vm601, %v234, 0
  %v964 = vsel %vm601, %v235, 0
  %v967 = vsel %vm601, %v236, 0
  %v970 = vsel %vm601, %v237, 0
  %v973 = vsel %vm698, %v875, 0
  %975 = vmatpush.bf16.msra.mxu0 0
  %976 = vmatpush.bf16.msra.mxu0 0
  %977 = vmatpush.bf16.msra.mxu0 0
  %978 = vmatpush.bf16.msra.mxu0 0
  %979 = vmatpush.bf16.msra.mxu0 0
  %980 = vmatpush.bf16.msra.mxu0 0
  %981 = vmatpush.bf16.msra.mxu0 0
  %982 = vmatpush.bf16.msra.mxu0 %v973
  %983 = vmatmul.bf16.gmra.mxu0 %v877
  %v984 = vpop.f32.mrf.mxu0
  %v985 = vadd.f32 %v712, %v984
  %v986 = vpop.f32.mrf.mxu0
  %v987 = vadd.f32 %v714, %v986
  %988 = vmatmul.bf16.gmra.mxu0 %v880
  %v989 = vpop.f32.mrf.mxu0
  %v990 = vadd.f32 %v717, %v989
  %v991 = vpop.f32.mrf.mxu0
  %v992 = vadd.f32 %v719, %v991
  %993 = vmatmul.bf16.gmra.mxu0 %v883
  %v994 = vpop.f32.mrf.mxu0
  %v995 = vadd.f32 %v722, %v994
  %v996 = vpop.f32.mrf.mxu0
  %v997 = vadd.f32 %v724, %v996
  %998 = vmatmul.bf16.gmra.mxu0 %v886
  %v999 = vpop.f32.mrf.mxu0
  %v1000 = vadd.f32 %v727, %v999
  %v1001 = vpop.f32.mrf.mxu0
  %v1002 = vadd.f32 %v729, %v1001
  %1003 = vmatmul.bf16.gmra.mxu0 %v889
  %v1004 = vpop.f32.mrf.mxu0
  %v1005 = vadd.f32 %v732, %v1004
  %v1006 = vpop.f32.mrf.mxu0
  %v1007 = vadd.f32 %v734, %v1006
  %1008 = vmatmul.bf16.gmra.mxu0 %v892
  %v1009 = vpop.f32.mrf.mxu0
  %v1010 = vadd.f32 %v737, %v1009
  %v1011 = vpop.f32.mrf.mxu0
  %v1012 = vadd.f32 %v739, %v1011
  %1013 = vmatmul.bf16.gmra.mxu0 %v895
  %v1014 = vpop.f32.mrf.mxu0
  %v1015 = vadd.f32 %v742, %v1014
  %v1016 = vpop.f32.mrf.mxu0
  %v1017 = vadd.f32 %v744, %v1016
  %1018 = vmatmul.bf16.gmra.mxu0 %v898
  %v1019 = vpop.f32.mrf.mxu0
  %v1020 = vadd.f32 %v747, %v1019
  %v1021 = vpop.f32.mrf.mxu0
  %v1022 = vadd.f32 %v749, %v1021
  %1023 = vmatmul.bf16.gmra.mxu0 %v901
  %v1024 = vpop.f32.mrf.mxu0
  %v1025 = vadd.f32 %v752, %v1024
  %v1026 = vpop.f32.mrf.mxu0
  %v1027 = vadd.f32 %v754, %v1026
  %1028 = vmatmul.bf16.gmra.mxu0 %v904
  %v1029 = vpop.f32.mrf.mxu0
  %v1030 = vadd.f32 %v757, %v1029
  %v1031 = vpop.f32.mrf.mxu0
  %v1032 = vadd.f32 %v759, %v1031
  %1033 = vmatmul.bf16.gmra.mxu0 %v907
  %v1034 = vpop.f32.mrf.mxu0
  %v1035 = vadd.f32 %v762, %v1034
  %v1036 = vpop.f32.mrf.mxu0
  %v1037 = vadd.f32 %v764, %v1036
  %1038 = vmatmul.bf16.gmra.mxu0 %v910
  %v1039 = vpop.f32.mrf.mxu0
  %v1040 = vadd.f32 %v767, %v1039
  %v1041 = vpop.f32.mrf.mxu0
  %v1042 = vadd.f32 %v769, %v1041
  %1043 = vmatmul.bf16.gmra.mxu0 %v913
  %v1044 = vpop.f32.mrf.mxu0
  %v1045 = vadd.f32 %v772, %v1044
  %v1046 = vpop.f32.mrf.mxu0
  %v1047 = vadd.f32 %v774, %v1046
  %1048 = vmatmul.bf16.gmra.mxu0 %v916
  %v1049 = vpop.f32.mrf.mxu0
  %v1050 = vadd.f32 %v777, %v1049
  %v1051 = vpop.f32.mrf.mxu0
  %v1052 = vadd.f32 %v779, %v1051
  %1053 = vmatmul.bf16.gmra.mxu0 %v919
  %v1054 = vpop.f32.mrf.mxu0
  %v1055 = vadd.f32 %v782, %v1054
  %v1056 = vpop.f32.mrf.mxu0
  %v1057 = vadd.f32 %v784, %v1056
  %1058 = vmatmul.bf16.gmra.mxu0 %v922
  %v1059 = vpop.f32.mrf.mxu0
  %v1060 = vadd.f32 %v787, %v1059
  %v1061 = vpop.f32.mrf.mxu0
  %v1062 = vadd.f32 %v789, %v1061
  %1063 = vmatmul.bf16.gmra.mxu0 %v925
  %v1064 = vpop.f32.mrf.mxu0
  %v1065 = vadd.f32 %v792, %v1064
  %v1066 = vpop.f32.mrf.mxu0
  %v1067 = vadd.f32 %v794, %v1066
  %1068 = vmatmul.bf16.gmra.mxu0 %v928
  %v1069 = vpop.f32.mrf.mxu0
  %v1070 = vadd.f32 %v797, %v1069
  %v1071 = vpop.f32.mrf.mxu0
  %v1072 = vadd.f32 %v799, %v1071
  %1073 = vmatmul.bf16.gmra.mxu0 %v931
  %v1074 = vpop.f32.mrf.mxu0
  %v1075 = vadd.f32 %v802, %v1074
  %v1076 = vpop.f32.mrf.mxu0
  %v1077 = vadd.f32 %v804, %v1076
  %1078 = vmatmul.bf16.gmra.mxu0 %v934
  %v1079 = vpop.f32.mrf.mxu0
  %v1080 = vadd.f32 %v807, %v1079
  %v1081 = vpop.f32.mrf.mxu0
  %v1082 = vadd.f32 %v809, %v1081
  %1083 = vmatmul.bf16.gmra.mxu0 %v937
  %v1084 = vpop.f32.mrf.mxu0
  %v1085 = vadd.f32 %v812, %v1084
  %v1086 = vpop.f32.mrf.mxu0
  %v1087 = vadd.f32 %v814, %v1086
  %1088 = vmatmul.bf16.gmra.mxu0 %v940
  %v1089 = vpop.f32.mrf.mxu0
  %v1090 = vadd.f32 %v817, %v1089
  %v1091 = vpop.f32.mrf.mxu0
  %v1092 = vadd.f32 %v819, %v1091
  %1093 = vmatmul.bf16.gmra.mxu0 %v943
  %v1094 = vpop.f32.mrf.mxu0
  %v1095 = vadd.f32 %v822, %v1094
  %v1096 = vpop.f32.mrf.mxu0
  %v1097 = vadd.f32 %v824, %v1096
  %1098 = vmatmul.bf16.gmra.mxu0 %v946
  %v1099 = vpop.f32.mrf.mxu0
  %v1100 = vadd.f32 %v827, %v1099
  %v1101 = vpop.f32.mrf.mxu0
  %v1102 = vadd.f32 %v829, %v1101
  %1103 = vmatmul.bf16.gmra.mxu0 %v949
  %v1104 = vpop.f32.mrf.mxu0
  %v1105 = vadd.f32 %v832, %v1104
  %v1106 = vpop.f32.mrf.mxu0
  %v1107 = vadd.f32 %v834, %v1106
  %1108 = vmatmul.bf16.gmra.mxu0 %v952
  %v1109 = vpop.f32.mrf.mxu0
  %v1110 = vadd.f32 %v837, %v1109
  %v1111 = vpop.f32.mrf.mxu0
  %v1112 = vadd.f32 %v839, %v1111
  %1113 = vmatmul.bf16.gmra.mxu0 %v955
  %v1114 = vpop.f32.mrf.mxu0
  %v1115 = vadd.f32 %v842, %v1114
  %v1116 = vpop.f32.mrf.mxu0
  %v1117 = vadd.f32 %v844, %v1116
  %1118 = vmatmul.bf16.gmra.mxu0 %v958
  %v1119 = vpop.f32.mrf.mxu0
  %v1120 = vadd.f32 %v847, %v1119
  %v1121 = vpop.f32.mrf.mxu0
  %v1122 = vadd.f32 %v849, %v1121
  %1123 = vmatmul.bf16.gmra.mxu0 %v961
  %v1124 = vpop.f32.mrf.mxu0
  %v1125 = vadd.f32 %v852, %v1124
  %v1126 = vpop.f32.mrf.mxu0
  %v1127 = vadd.f32 %v854, %v1126
  %1128 = vmatmul.bf16.gmra.mxu0 %v964
  %v1129 = vpop.f32.mrf.mxu0
  %v1130 = vadd.f32 %v857, %v1129
  %v1131 = vpop.f32.mrf.mxu0
  %v1132 = vadd.f32 %v859, %v1131
  %1133 = vmatmul.bf16.gmra.mxu0 %v967
  %v1134 = vpop.f32.mrf.mxu0
  %v1135 = vadd.f32 %v862, %v1134
  %v1136 = vpop.f32.mrf.mxu0
  %v1137 = vadd.f32 %v864, %v1136
  %1138 = vmatmul.bf16.gmra.mxu0 %v970
  %v1139 = vpop.f32.mrf.mxu0
  %v1140 = vadd.f32 %v867, %v1139
  %v1141 = vpop.f32.mrf.mxu0
  %v1142 = vadd.f32 %v869, %v1141
  %1143 = vdwg.mxu0
  %v1144 = vrot.slane %v110, 2
  %v1145 = vrot.slane %v111, 2
  %v1146 = vsel %vm698, %v1144, %v1145
  %v1147 = vrot.slane %v112, 2
  %v1148 = vsel %vm698, %v1145, %v1147
  %v1149 = vrot.slane %v113, 2
  %v1150 = vrot.slane %v114, 2
  %v1151 = vsel %vm698, %v1149, %v1150
  %v1152 = vrot.slane %v115, 2
  %v1153 = vsel %vm698, %v1150, %v1152
  %v1154 = vrot.slane %v116, 2
  %v1155 = vrot.slane %v117, 2
  %v1156 = vsel %vm698, %v1154, %v1155
  %v1157 = vrot.slane %v118, 2
  %v1158 = vsel %vm698, %v1155, %v1157
  %v1159 = vrot.slane %v119, 2
  %v1160 = vrot.slane %v120, 2
  %v1161 = vsel %vm698, %v1159, %v1160
  %v1162 = vrot.slane %v121, 2
  %v1163 = vsel %vm698, %v1160, %v1162
  %v1164 = vrot.slane %v122, 2
  %v1165 = vrot.slane %v123, 2
  %v1166 = vsel %vm698, %v1164, %v1165
  %v1167 = vrot.slane %v124, 2
  %v1168 = vsel %vm698, %v1165, %v1167
  %v1169 = vrot.slane %v125, 2
  %v1170 = vrot.slane %v126, 2
  %v1171 = vsel %vm698, %v1169, %v1170
  %v1172 = vrot.slane %v127, 2
  %v1173 = vsel %vm698, %v1170, %v1172
  %v1174 = vrot.slane %v128, 2
  %v1175 = vrot.slane %v129, 2
  %v1176 = vsel %vm698, %v1174, %v1175
  %v1177 = vrot.slane %v130, 2
  %v1178 = vsel %vm698, %v1175, %v1177
  %v1179 = vrot.slane %v131, 2
  %v1180 = vrot.slane %v132, 2
  %v1181 = vsel %vm698, %v1179, %v1180
  %v1182 = vrot.slane %v133, 2
  %v1183 = vsel %vm698, %v1180, %v1182
  %v1184 = vrot.slane %v134, 2
  %v1185 = vrot.slane %v135, 2
  %v1186 = vsel %vm698, %v1184, %v1185
  %v1187 = vrot.slane %v136, 2
  %v1188 = vsel %vm698, %v1185, %v1187
  %v1189 = vrot.slane %v137, 2
  %v1190 = vrot.slane %v138, 2
  %v1191 = vsel %vm698, %v1189, %v1190
  %v1192 = vrot.slane %v139, 2
  %v1193 = vsel %vm698, %v1190, %v1192
  %v1194 = vrot.slane %v140, 2
  %v1195 = vrot.slane %v141, 2
  %v1196 = vsel %vm698, %v1194, %v1195
  %v1197 = vrot.slane %v142, 2
  %v1198 = vsel %vm698, %v1195, %v1197
  %v1199 = vrot.slane %v143, 2
  %v1200 = vrot.slane %v144, 2
  %v1201 = vsel %vm698, %v1199, %v1200
  %v1202 = vrot.slane %v145, 2
  %v1203 = vsel %vm698, %v1200, %v1202
  %v1204 = vrot.slane %v146, 2
  %v1205 = vrot.slane %v147, 2
  %v1206 = vsel %vm698, %v1204, %v1205
  %v1207 = vrot.slane %v148, 2
  %v1208 = vsel %vm698, %v1205, %v1207
  %v1209 = vrot.slane %v149, 2
  %v1210 = vrot.slane %v150, 2
  %v1211 = vsel %vm698, %v1209, %v1210
  %v1212 = vrot.slane %v151, 2
  %v1213 = vsel %vm698, %v1210, %v1212
  %v1214 = vrot.slane %v152, 2
  %v1215 = vrot.slane %v153, 2
  %v1216 = vsel %vm698, %v1214, %v1215
  %v1217 = vrot.slane %v154, 2
  %v1218 = vsel %vm698, %v1215, %v1217
  %v1219 = vrot.slane %v155, 2
  %v1220 = vrot.slane %v156, 2
  %v1221 = vsel %vm698, %v1219, %v1220
  %v1222 = vrot.slane %v157, 2
  %v1223 = vsel %vm698, %v1220, %v1222
  %v1224 = vrot.slane %v158, 2
  %v1225 = vrot.slane %v159, 2
  %v1226 = vsel %vm698, %v1224, %v1225
  %v1227 = vrot.slane %v160, 2
  %v1228 = vsel %vm698, %v1225, %v1227
  %v1229 = vrot.slane %v161, 2
  %v1230 = vrot.slane %v162, 2
  %v1231 = vsel %vm698, %v1229, %v1230
  %v1232 = vrot.slane %v163, 2
  %v1233 = vsel %vm698, %v1230, %v1232
  %v1234 = vrot.slane %v164, 2
  %v1235 = vrot.slane %v165, 2
  %v1236 = vsel %vm698, %v1234, %v1235
  %v1237 = vrot.slane %v166, 2
  %v1238 = vsel %vm698, %v1235, %v1237
  %v1239 = vrot.slane %v167, 2
  %v1240 = vrot.slane %v168, 2
  %v1241 = vsel %vm698, %v1239, %v1240
  %v1242 = vrot.slane %v169, 2
  %v1243 = vsel %vm698, %v1240, %v1242
  %v1244 = vrot.slane %v170, 2
  %v1245 = vrot.slane %v171, 2
  %v1246 = vsel %vm698, %v1244, %v1245
  %v1247 = vrot.slane %v172, 2
  %v1248 = vsel %vm698, %v1245, %v1247
  %v1249 = vrot.slane %v173, 2
  %v1250 = vrot.slane %v174, 2
  %v1251 = vsel %vm698, %v1249, %v1250
  %v1252 = vrot.slane %v175, 2
  %v1253 = vsel %vm698, %v1250, %v1252
  %v1254 = vrot.slane %v176, 2
  %v1255 = vrot.slane %v177, 2
  %v1256 = vsel %vm698, %v1254, %v1255
  %v1257 = vrot.slane %v178, 2
  %v1258 = vsel %vm698, %v1255, %v1257
  %v1259 = vrot.slane %v179, 2
  %v1260 = vrot.slane %v180, 2
  %v1261 = vsel %vm698, %v1259, %v1260
  %v1262 = vrot.slane %v181, 2
  %v1263 = vsel %vm698, %v1260, %v1262
  %v1264 = vrot.slane %v182, 2
  %v1265 = vrot.slane %v183, 2
  %v1266 = vsel %vm698, %v1264, %v1265
  %v1267 = vrot.slane %v184, 2
  %v1268 = vsel %vm698, %v1265, %v1267
  %v1269 = vrot.slane %v185, 2
  %v1270 = vrot.slane %v186, 2
  %v1271 = vsel %vm698, %v1269, %v1270
  %v1272 = vrot.slane %v187, 2
  %v1273 = vsel %vm698, %v1270, %v1272
  %v1274 = vrot.slane %v188, 2
  %v1275 = vrot.slane %v189, 2
  %v1276 = vsel %vm698, %v1274, %v1275
  %v1277 = vrot.slane %v190, 2
  %v1278 = vsel %vm698, %v1275, %v1277
  %v1279 = vrot.slane %v191, 2
  %v1280 = vrot.slane %v192, 2
  %v1281 = vsel %vm698, %v1279, %v1280
  %v1282 = vrot.slane %v193, 2
  %v1283 = vsel %vm698, %v1280, %v1282
  %v1284 = vrot.slane %v194, 2
  %v1285 = vrot.slane %v195, 2
  %v1286 = vsel %vm698, %v1284, %v1285
  %v1287 = vrot.slane %v196, 2
  %v1288 = vsel %vm698, %v1285, %v1287
  %v1289 = vrot.slane %v197, 2
  %v1290 = vrot.slane %v198, 2
  %v1291 = vsel %vm698, %v1289, %v1290
  %v1292 = vrot.slane %v199, 2
  %v1293 = vsel %vm698, %v1290, %v1292
  %v1294 = vrot.slane %v200, 2
  %v1295 = vrot.slane %v201, 2
  %v1296 = vsel %vm698, %v1294, %v1295
  %v1297 = vrot.slane %v202, 2
  %v1298 = vsel %vm698, %v1295, %v1297
  %v1299 = vrot.slane %v203, 2
  %v1300 = vrot.slane %v204, 2
  %v1301 = vsel %vm698, %v1299, %v1300
  %v1302 = vrot.slane %v205, 2
  %v1303 = vsel %vm698, %v1300, %v1302
  %v1368 = vpack.c.bf16 %v1148, %v1146
  %v1369 = vpack.c.bf16 %v1153, %v1151
  %v1370 = vpack.c.bf16 %v1158, %v1156
  %v1371 = vpack.c.bf16 %v1163, %v1161
  %v1372 = vpack.c.bf16 %v1168, %v1166
  %v1373 = vpack.c.bf16 %v1173, %v1171
  %v1374 = vpack.c.bf16 %v1178, %v1176
  %v1375 = vpack.c.bf16 %v1183, %v1181
  %v1376 = vpack.c.bf16 %v1188, %v1186
  %v1377 = vpack.c.bf16 %v1193, %v1191
  %v1378 = vpack.c.bf16 %v1198, %v1196
  %v1379 = vpack.c.bf16 %v1203, %v1201
  %v1380 = vpack.c.bf16 %v1208, %v1206
  %v1381 = vpack.c.bf16 %v1213, %v1211
  %v1382 = vpack.c.bf16 %v1218, %v1216
  %v1383 = vpack.c.bf16 %v1223, %v1221
  %v1384 = vpack.c.bf16 %v1228, %v1226
  %v1385 = vpack.c.bf16 %v1233, %v1231
  %v1386 = vpack.c.bf16 %v1238, %v1236
  %v1387 = vpack.c.bf16 %v1243, %v1241
  %v1388 = vpack.c.bf16 %v1248, %v1246
  %v1389 = vpack.c.bf16 %v1253, %v1251
  %v1390 = vpack.c.bf16 %v1258, %v1256
  %v1391 = vpack.c.bf16 %v1263, %v1261
  %v1392 = vpack.c.bf16 %v1268, %v1266
  %v1393 = vpack.c.bf16 %v1273, %v1271
  %v1394 = vpack.c.bf16 %v1278, %v1276
  %v1395 = vpack.c.bf16 %v1283, %v1281
  %v1396 = vpack.c.bf16 %v1288, %v1286
  %v1397 = vpack.c.bf16 %v1293, %v1291
  %v1398 = vpack.c.bf16 %v1298, %v1296
  %v1399 = vpack.c.bf16 %v1303, %v1301
  %s1400 = scalar_lea.vmem %s1, 16
  %v1401 = vld [vmem:[%s1400] sm:$0xf]
  %v1402 = vld [vmem:[%s1400 + $0x4] sm:$0x3]
  %v1405 = vunpack.c.l.b16 %v1401
  %v1406 = vunpack.c.l.b16 %v1402
  %v1407 = vpack.c.b16 %v1406, %v1405
  %v1409 = vsel %vm601, %v1368, 0
  %v1412 = vsel %vm601, %v1369, 0
  %v1415 = vsel %vm601, %v1370, 0
  %v1418 = vsel %vm601, %v1371, 0
  %v1421 = vsel %vm601, %v1372, 0
  %v1424 = vsel %vm601, %v1373, 0
  %v1427 = vsel %vm601, %v1374, 0
  %v1430 = vsel %vm601, %v1375, 0
  %v1433 = vsel %vm601, %v1376, 0
  %v1436 = vsel %vm601, %v1377, 0
  %v1439 = vsel %vm601, %v1378, 0
  %v1442 = vsel %vm601, %v1379, 0
  %v1445 = vsel %vm601, %v1380, 0
  %v1448 = vsel %vm601, %v1381, 0
  %v1451 = vsel %vm601, %v1382, 0
  %v1454 = vsel %vm601, %v1383, 0
  %v1457 = vsel %vm601, %v1384, 0
  %v1460 = vsel %vm601, %v1385, 0
  %v1463 = vsel %vm601, %v1386, 0
  %v1466 = vsel %vm601, %v1387, 0
  %v1469 = vsel %vm601, %v1388, 0
  %v1472 = vsel %vm601, %v1389, 0
  %v1475 = vsel %vm601, %v1390, 0
  %v1478 = vsel %vm601, %v1391, 0
  %v1481 = vsel %vm601, %v1392, 0
  %v1484 = vsel %vm601, %v1393, 0
  %v1487 = vsel %vm601, %v1394, 0
  %v1490 = vsel %vm601, %v1395, 0
  %v1493 = vsel %vm601, %v1396, 0
  %v1496 = vsel %vm601, %v1397, 0
  %v1499 = vsel %vm601, %v1398, 0
  %v1502 = vsel %vm601, %v1399, 0
  %v1505 = vsel %vm698, %v1407, 0
  %1507 = vmatpush.bf16.msra.mxu0 0
  %1508 = vmatpush.bf16.msra.mxu0 0
  %1509 = vmatpush.bf16.msra.mxu0 0
  %1510 = vmatpush.bf16.msra.mxu0 0
  %1511 = vmatpush.bf16.msra.mxu0 0
  %1512 = vmatpush.bf16.msra.mxu0 0
  %1513 = vmatpush.bf16.msra.mxu0 0
  %1514 = vmatpush.bf16.msra.mxu0 %v1505
  %1515 = vmatmul.bf16.gmra.mxu0 %v1409
  %v1516 = vpop.f32.mrf.mxu0
  %v1517 = vadd.f32 0.0, %v1516
  %v1518 = vpop.f32.mrf.mxu0
  %v1519 = vadd.f32 0.0, %v1518
  %1520 = vmatmul.bf16.gmra.mxu0 %v1412
  %v1521 = vpop.f32.mrf.mxu0
  %v1522 = vadd.f32 0.0, %v1521
  %v1523 = vpop.f32.mrf.mxu0
  %v1524 = vadd.f32 0.0, %v1523
  %1525 = vmatmul.bf16.gmra.mxu0 %v1415
  %v1526 = vpop.f32.mrf.mxu0
  %v1527 = vadd.f32 0.0, %v1526
  %v1528 = vpop.f32.mrf.mxu0
  %v1529 = vadd.f32 0.0, %v1528
  %1530 = vmatmul.bf16.gmra.mxu0 %v1418
  %v1531 = vpop.f32.mrf.mxu0
  %v1532 = vadd.f32 0.0, %v1531
  %v1533 = vpop.f32.mrf.mxu0
  %v1534 = vadd.f32 0.0, %v1533
  %1535 = vmatmul.bf16.gmra.mxu0 %v1421
  %v1536 = vpop.f32.mrf.mxu0
  %v1537 = vadd.f32 0.0, %v1536
  %v1538 = vpop.f32.mrf.mxu0
  %v1539 = vadd.f32 0.0, %v1538
  %1540 = vmatmul.bf16.gmra.mxu0 %v1424
  %v1541 = vpop.f32.mrf.mxu0
  %v1542 = vadd.f32 0.0, %v1541
  %v1543 = vpop.f32.mrf.mxu0
  %v1544 = vadd.f32 0.0, %v1543
  %1545 = vmatmul.bf16.gmra.mxu0 %v1427
  %v1546 = vpop.f32.mrf.mxu0
  %v1547 = vadd.f32 0.0, %v1546
  %v1548 = vpop.f32.mrf.mxu0
  %v1549 = vadd.f32 0.0, %v1548
  %1550 = vmatmul.bf16.gmra.mxu0 %v1430
  %v1551 = vpop.f32.mrf.mxu0
  %v1552 = vadd.f32 0.0, %v1551
  %v1553 = vpop.f32.mrf.mxu0
  %v1554 = vadd.f32 0.0, %v1553
  %1555 = vmatmul.bf16.gmra.mxu0 %v1433
  %v1556 = vpop.f32.mrf.mxu0
  %v1557 = vadd.f32 0.0, %v1556
  %v1558 = vpop.f32.mrf.mxu0
  %v1559 = vadd.f32 0.0, %v1558
  %1560 = vmatmul.bf16.gmra.mxu0 %v1436
  %v1561 = vpop.f32.mrf.mxu0
  %v1562 = vadd.f32 0.0, %v1561
  %v1563 = vpop.f32.mrf.mxu0
  %v1564 = vadd.f32 0.0, %v1563
  %1565 = vmatmul.bf16.gmra.mxu0 %v1439
  %v1566 = vpop.f32.mrf.mxu0
  %v1567 = vadd.f32 0.0, %v1566
  %v1568 = vpop.f32.mrf.mxu0
  %v1569 = vadd.f32 0.0, %v1568
  %1570 = vmatmul.bf16.gmra.mxu0 %v1442
  %v1571 = vpop.f32.mrf.mxu0
  %v1572 = vadd.f32 0.0, %v1571
  %v1573 = vpop.f32.mrf.mxu0
  %v1574 = vadd.f32 0.0, %v1573
  %1575 = vmatmul.bf16.gmra.mxu0 %v1445
  %v1576 = vpop.f32.mrf.mxu0
  %v1577 = vadd.f32 0.0, %v1576
  %v1578 = vpop.f32.mrf.mxu0
  %v1579 = vadd.f32 0.0, %v1578
  %1580 = vmatmul.bf16.gmra.mxu0 %v1448
  %v1581 = vpop.f32.mrf.mxu0
  %v1582 = vadd.f32 0.0, %v1581
  %v1583 = vpop.f32.mrf.mxu0
  %v1584 = vadd.f32 0.0, %v1583
  %1585 = vmatmul.bf16.gmra.mxu0 %v1451
  %v1586 = vpop.f32.mrf.mxu0
  %v1587 = vadd.f32 0.0, %v1586
  %v1588 = vpop.f32.mrf.mxu0
  %v1589 = vadd.f32 0.0, %v1588
  %1590 = vmatmul.bf16.gmra.mxu0 %v1454
  %v1591 = vpop.f32.mrf.mxu0
  %v1592 = vadd.f32 0.0, %v1591
  %v1593 = vpop.f32.mrf.mxu0
  %v1594 = vadd.f32 0.0, %v1593
  %1595 = vmatmul.bf16.gmra.mxu0 %v1457
  %v1596 = vpop.f32.mrf.mxu0
  %v1597 = vadd.f32 0.0, %v1596
  %v1598 = vpop.f32.mrf.mxu0
  %v1599 = vadd.f32 0.0, %v1598
  %1600 = vmatmul.bf16.gmra.mxu0 %v1460
  %v1601 = vpop.f32.mrf.mxu0
  %v1602 = vadd.f32 0.0, %v1601
  %v1603 = vpop.f32.mrf.mxu0
  %v1604 = vadd.f32 0.0, %v1603
  %1605 = vmatmul.bf16.gmra.mxu0 %v1463
  %v1606 = vpop.f32.mrf.mxu0
  %v1607 = vadd.f32 0.0, %v1606
  %v1608 = vpop.f32.mrf.mxu0
  %v1609 = vadd.f32 0.0, %v1608
  %1610 = vmatmul.bf16.gmra.mxu0 %v1466
  %v1611 = vpop.f32.mrf.mxu0
  %v1612 = vadd.f32 0.0, %v1611
  %v1613 = vpop.f32.mrf.mxu0
  %v1614 = vadd.f32 0.0, %v1613
  %1615 = vmatmul.bf16.gmra.mxu0 %v1469
  %v1616 = vpop.f32.mrf.mxu0
  %v1617 = vadd.f32 0.0, %v1616
  %v1618 = vpop.f32.mrf.mxu0
  %v1619 = vadd.f32 0.0, %v1618
  %1620 = vmatmul.bf16.gmra.mxu0 %v1472
  %v1621 = vpop.f32.mrf.mxu0
  %v1622 = vadd.f32 0.0, %v1621
  %v1623 = vpop.f32.mrf.mxu0
  %v1624 = vadd.f32 0.0, %v1623
  %1625 = vmatmul.bf16.gmra.mxu0 %v1475
  %v1626 = vpop.f32.mrf.mxu0
  %v1627 = vadd.f32 0.0, %v1626
  %v1628 = vpop.f32.mrf.mxu0
  %v1629 = vadd.f32 0.0, %v1628
  %1630 = vmatmul.bf16.gmra.mxu0 %v1478
  %v1631 = vpop.f32.mrf.mxu0
  %v1632 = vadd.f32 0.0, %v1631
  %v1633 = vpop.f32.mrf.mxu0
  %v1634 = vadd.f32 0.0, %v1633
  %1635 = vmatmul.bf16.gmra.mxu0 %v1481
  %v1636 = vpop.f32.mrf.mxu0
  %v1637 = vadd.f32 0.0, %v1636
  %v1638 = vpop.f32.mrf.mxu0
  %v1639 = vadd.f32 0.0, %v1638
  %1640 = vmatmul.bf16.gmra.mxu0 %v1484
  %v1641 = vpop.f32.mrf.mxu0
  %v1642 = vadd.f32 0.0, %v1641
  %v1643 = vpop.f32.mrf.mxu0
  %v1644 = vadd.f32 0.0, %v1643
  %1645 = vmatmul.bf16.gmra.mxu0 %v1487
  %v1646 = vpop.f32.mrf.mxu0
  %v1647 = vadd.f32 0.0, %v1646
  %v1648 = vpop.f32.mrf.mxu0
  %v1649 = vadd.f32 0.0, %v1648
  %1650 = vmatmul.bf16.gmra.mxu0 %v1490
  %v1651 = vpop.f32.mrf.mxu0
  %v1652 = vadd.f32 0.0, %v1651
  %v1653 = vpop.f32.mrf.mxu0
  %v1654 = vadd.f32 0.0, %v1653
  %1655 = vmatmul.bf16.gmra.mxu0 %v1493
  %v1656 = vpop.f32.mrf.mxu0
  %v1657 = vadd.f32 0.0, %v1656
  %v1658 = vpop.f32.mrf.mxu0
  %v1659 = vadd.f32 0.0, %v1658
  %1660 = vmatmul.bf16.gmra.mxu0 %v1496
  %v1661 = vpop.f32.mrf.mxu0
  %v1662 = vadd.f32 0.0, %v1661
  %v1663 = vpop.f32.mrf.mxu0
  %v1664 = vadd.f32 0.0, %v1663
  %1665 = vmatmul.bf16.gmra.mxu0 %v1499
  %v1666 = vpop.f32.mrf.mxu0
  %v1667 = vadd.f32 0.0, %v1666
  %v1668 = vpop.f32.mrf.mxu0
  %v1669 = vadd.f32 0.0, %v1668
  %1670 = vmatmul.bf16.gmra.mxu0 %v1502
  %v1671 = vpop.f32.mrf.mxu0
  %v1672 = vadd.f32 0.0, %v1671
  %v1673 = vpop.f32.mrf.mxu0
  %v1674 = vadd.f32 0.0, %v1673
  %1675 = vdwg.mxu0
  %v1676 = vadd.f32 %v985, %v1517
  %v1677 = vadd.f32 %v987, %v1519
  %v1678 = vadd.f32 %v990, %v1522
  %v1679 = vadd.f32 %v992, %v1524
  %v1680 = vadd.f32 %v995, %v1527
  %v1681 = vadd.f32 %v997, %v1529
  %v1682 = vadd.f32 %v1000, %v1532
  %v1683 = vadd.f32 %v1002, %v1534
  %v1684 = vadd.f32 %v1005, %v1537
  %v1685 = vadd.f32 %v1007, %v1539
  %v1686 = vadd.f32 %v1010, %v1542
  %v1687 = vadd.f32 %v1012, %v1544
  %v1688 = vadd.f32 %v1015, %v1547
  %v1689 = vadd.f32 %v1017, %v1549
  %v1690 = vadd.f32 %v1020, %v1552
  %v1691 = vadd.f32 %v1022, %v1554
  %v1692 = vadd.f32 %v1025, %v1557
  %v1693 = vadd.f32 %v1027, %v1559
  %v1694 = vadd.f32 %v1030, %v1562
  %v1695 = vadd.f32 %v1032, %v1564
  %v1696 = vadd.f32 %v1035, %v1567
  %v1697 = vadd.f32 %v1037, %v1569
  %v1698 = vadd.f32 %v1040, %v1572
  %v1699 = vadd.f32 %v1042, %v1574
  %v1700 = vadd.f32 %v1045, %v1577
  %v1701 = vadd.f32 %v1047, %v1579
  %v1702 = vadd.f32 %v1050, %v1582
  %v1703 = vadd.f32 %v1052, %v1584
  %v1704 = vadd.f32 %v1055, %v1587
  %v1705 = vadd.f32 %v1057, %v1589
  %v1706 = vadd.f32 %v1060, %v1592
  %v1707 = vadd.f32 %v1062, %v1594
  %v1708 = vadd.f32 %v1065, %v1597
  %v1709 = vadd.f32 %v1067, %v1599
  %v1710 = vadd.f32 %v1070, %v1602
  %v1711 = vadd.f32 %v1072, %v1604
  %v1712 = vadd.f32 %v1075, %v1607
  %v1713 = vadd.f32 %v1077, %v1609
  %v1714 = vadd.f32 %v1080, %v1612
  %v1715 = vadd.f32 %v1082, %v1614
  %v1716 = vadd.f32 %v1085, %v1617
  %v1717 = vadd.f32 %v1087, %v1619
  %v1718 = vadd.f32 %v1090, %v1622
  %v1719 = vadd.f32 %v1092, %v1624
  %v1720 = vadd.f32 %v1095, %v1627
  %v1721 = vadd.f32 %v1097, %v1629
  %v1722 = vadd.f32 %v1100, %v1632
  %v1723 = vadd.f32 %v1102, %v1634
  %v1724 = vadd.f32 %v1105, %v1637
  %v1725 = vadd.f32 %v1107, %v1639
  %v1726 = vadd.f32 %v1110, %v1642
  %v1727 = vadd.f32 %v1112, %v1644
  %v1728 = vadd.f32 %v1115, %v1647
  %v1729 = vadd.f32 %v1117, %v1649
  %v1730 = vadd.f32 %v1120, %v1652
  %v1731 = vadd.f32 %v1122, %v1654
  %v1732 = vadd.f32 %v1125, %v1657
  %v1733 = vadd.f32 %v1127, %v1659
  %v1734 = vadd.f32 %v1130, %v1662
  %v1735 = vadd.f32 %v1132, %v1664
  %v1736 = vadd.f32 %v1135, %v1667
  %v1737 = vadd.f32 %v1137, %v1669
  %v1738 = vadd.f32 %v1140, %v1672
  %v1739 = vadd.f32 %v1142, %v1674
  %vm1740 = vcmask 64512
  %1741 = vst.msk [vmem:[%s2] sm:$0xff] %vm1740, %v1676
  %1742 = vst.msk [vmem:[%s2 + $0x8] sm:$0xff] %vm1740, %v1677
  %1743 = vst.msk [vmem:[%s2 + $0x10] sm:$0xff] %vm1740, %v1678
  %1744 = vst.msk [vmem:[%s2 + $0x18] sm:$0xff] %vm1740, %v1679
  %1745 = vst.msk [vmem:[%s2 + $0x20] sm:$0xff] %vm1740, %v1680
  %1746 = vst.msk [vmem:[%s2 + $0x28] sm:$0xff] %vm1740, %v1681
  %1747 = vst.msk [vmem:[%s2 + $0x30] sm:$0xff] %vm1740, %v1682
  %1748 = vst.msk [vmem:[%s2 + $0x38] sm:$0xff] %vm1740, %v1683
  %1749 = vst.msk [vmem:[%s2 + $0x40] sm:$0xff] %vm1740, %v1684
  %1750 = vst.msk [vmem:[%s2 + $0x48] sm:$0xff] %vm1740, %v1685
  %1751 = vst.msk [vmem:[%s2 + $0x50] sm:$0xff] %vm1740, %v1686
  %1752 = vst.msk [vmem:[%s2 + $0x58] sm:$0xff] %vm1740, %v1687
  %1753 = vst.msk [vmem:[%s2 + $0x60] sm:$0xff] %vm1740, %v1688
  %1754 = vst.msk [vmem:[%s2 + $0x68] sm:$0xff] %vm1740, %v1689
  %1755 = vst.msk [vmem:[%s2 + $0x70] sm:$0xff] %vm1740, %v1690
  %1756 = vst.msk [vmem:[%s2 + $0x78] sm:$0xff] %vm1740, %v1691
  %1757 = vst.msk [vmem:[%s2 + $0x80] sm:$0xff] %vm1740, %v1692
  %1758 = vst.msk [vmem:[%s2 + $0x88] sm:$0xff] %vm1740, %v1693
  %1759 = vst.msk [vmem:[%s2 + $0x90] sm:$0xff] %vm1740, %v1694
  %1760 = vst.msk [vmem:[%s2 + $0x98] sm:$0xff] %vm1740, %v1695
  %1761 = vst.msk [vmem:[%s2 + $0xa0] sm:$0xff] %vm1740, %v1696
  %1762 = vst.msk [vmem:[%s2 + $0xa8] sm:$0xff] %vm1740, %v1697
  %1763 = vst.msk [vmem:[%s2 + $0xb0] sm:$0xff] %vm1740, %v1698
  %1764 = vst.msk [vmem:[%s2 + $0xb8] sm:$0xff] %vm1740, %v1699
  %1765 = vst.msk [vmem:[%s2 + $0xc0] sm:$0xff] %vm1740, %v1700
  %1766 = vst.msk [vmem:[%s2 + $0xc8] sm:$0xff] %vm1740, %v1701
  %1767 = vst.msk [vmem:[%s2 + $0xd0] sm:$0xff] %vm1740, %v1702
  %1768 = vst.msk [vmem:[%s2 + $0xd8] sm:$0xff] %vm1740, %v1703
  %1769 = vst.msk [vmem:[%s2 + $0xe0] sm:$0xff] %vm1740, %v1704
  %1770 = vst.msk [vmem:[%s2 + $0xe8] sm:$0xff] %vm1740, %v1705
  %1771 = vst.msk [vmem:[%s2 + $0xf0] sm:$0xff] %vm1740, %v1706
  %1772 = vst.msk [vmem:[%s2 + $0xf8] sm:$0xff] %vm1740, %v1707
  %1773 = vst.msk [vmem:[%s2 + $0x100] sm:$0xff] %vm1740, %v1708
  %1774 = vst.msk [vmem:[%s2 + $0x108] sm:$0xff] %vm1740, %v1709
  %1775 = vst.msk [vmem:[%s2 + $0x110] sm:$0xff] %vm1740, %v1710
  %1776 = vst.msk [vmem:[%s2 + $0x118] sm:$0xff] %vm1740, %v1711
  %1777 = vst.msk [vmem:[%s2 + $0x120] sm:$0xff] %vm1740, %v1712
  %1778 = vst.msk [vmem:[%s2 + $0x128] sm:$0xff] %vm1740, %v1713
  %1779 = vst.msk [vmem:[%s2 + $0x130] sm:$0xff] %vm1740, %v1714
  %1780 = vst.msk [vmem:[%s2 + $0x138] sm:$0xff] %vm1740, %v1715
  %1781 = vst.msk [vmem:[%s2 + $0x140] sm:$0xff] %vm1740, %v1716
  %1782 = vst.msk [vmem:[%s2 + $0x148] sm:$0xff] %vm1740, %v1717
  %1783 = vst.msk [vmem:[%s2 + $0x150] sm:$0xff] %vm1740, %v1718
  %1784 = vst.msk [vmem:[%s2 + $0x158] sm:$0xff] %vm1740, %v1719
  %1785 = vst.msk [vmem:[%s2 + $0x160] sm:$0xff] %vm1740, %v1720
  %1786 = vst.msk [vmem:[%s2 + $0x168] sm:$0xff] %vm1740, %v1721
  %1787 = vst.msk [vmem:[%s2 + $0x170] sm:$0xff] %vm1740, %v1722
  %1788 = vst.msk [vmem:[%s2 + $0x178] sm:$0xff] %vm1740, %v1723
  %1789 = vst.msk [vmem:[%s2 + $0x180] sm:$0xff] %vm1740, %v1724
  %1790 = vst.msk [vmem:[%s2 + $0x188] sm:$0xff] %vm1740, %v1725
  %1791 = vst.msk [vmem:[%s2 + $0x190] sm:$0xff] %vm1740, %v1726
  %1792 = vst.msk [vmem:[%s2 + $0x198] sm:$0xff] %vm1740, %v1727
  %1793 = vst.msk [vmem:[%s2 + $0x1a0] sm:$0xff] %vm1740, %v1728
  %1794 = vst.msk [vmem:[%s2 + $0x1a8] sm:$0xff] %vm1740, %v1729
  %1795 = vst.msk [vmem:[%s2 + $0x1b0] sm:$0xff] %vm1740, %v1730
  %1796 = vst.msk [vmem:[%s2 + $0x1b8] sm:$0xff] %vm1740, %v1731
  %1797 = vst.msk [vmem:[%s2 + $0x1c0] sm:$0xff] %vm1740, %v1732
  %1798 = vst.msk [vmem:[%s2 + $0x1c8] sm:$0xff] %vm1740, %v1733
  %1799 = vst.msk [vmem:[%s2 + $0x1d0] sm:$0xff] %vm1740, %v1734
  %1800 = vst.msk [vmem:[%s2 + $0x1d8] sm:$0xff] %vm1740, %v1735
  %1801 = vst.msk [vmem:[%s2 + $0x1e0] sm:$0xff] %vm1740, %v1736
  %1802 = vst.msk [vmem:[%s2 + $0x1e8] sm:$0xff] %vm1740, %v1737
  %1803 = vst.msk [vmem:[%s2 + $0x1f0] sm:$0xff] %vm1740, %v1738
  %1804 = vst.msk [vmem:[%s2 + $0x1f8] sm:$0xff] %vm1740, %v1739
  %v1805 = vsel %vm1740, %v1676, 0.0
  %v1806 = vsel %vm1740, %v1677, 0.0
  %v1807 = vadd.f32 %v1805, %v1806
  %v1808 = vsel %vm1740, %v1678, 0.0
  %v1809 = vadd.f32 %v1807, %v1808
  %v1810 = vsel %vm1740, %v1679, 0.0
  %v1811 = vadd.f32 %v1809, %v1810
  %v1812 = vsel %vm1740, %v1680, 0.0
  %v1813 = vadd.f32 %v1811, %v1812
  %v1814 = vsel %vm1740, %v1681, 0.0
  %v1815 = vadd.f32 %v1813, %v1814
  %v1816 = vsel %vm1740, %v1682, 0.0
  %v1817 = vadd.f32 %v1815, %v1816
  %v1818 = vsel %vm1740, %v1683, 0.0
  %v1819 = vadd.f32 %v1817, %v1818
  %v1820 = vsel %vm1740, %v1684, 0.0
  %v1821 = vadd.f32 %v1819, %v1820
  %v1822 = vsel %vm1740, %v1685, 0.0
  %v1823 = vadd.f32 %v1821, %v1822
  %v1824 = vsel %vm1740, %v1686, 0.0
  %v1825 = vadd.f32 %v1823, %v1824
  %v1826 = vsel %vm1740, %v1687, 0.0
  %v1827 = vadd.f32 %v1825, %v1826
  %v1828 = vsel %vm1740, %v1688, 0.0
  %v1829 = vadd.f32 %v1827, %v1828
  %v1830 = vsel %vm1740, %v1689, 0.0
  %v1831 = vadd.f32 %v1829, %v1830
  %v1832 = vsel %vm1740, %v1690, 0.0
  %v1833 = vadd.f32 %v1831, %v1832
  %v1834 = vsel %vm1740, %v1691, 0.0
  %v1835 = vadd.f32 %v1833, %v1834
  %v1836 = vsel %vm1740, %v1692, 0.0
  %v1837 = vadd.f32 %v1835, %v1836
  %v1838 = vsel %vm1740, %v1693, 0.0
  %v1839 = vadd.f32 %v1837, %v1838
  %v1840 = vsel %vm1740, %v1694, 0.0
  %v1841 = vadd.f32 %v1839, %v1840
  %v1842 = vsel %vm1740, %v1695, 0.0
  %v1843 = vadd.f32 %v1841, %v1842
  %v1844 = vsel %vm1740, %v1696, 0.0
  %v1845 = vadd.f32 %v1843, %v1844
  %v1846 = vsel %vm1740, %v1697, 0.0
  %v1847 = vadd.f32 %v1845, %v1846
  %v1848 = vsel %vm1740, %v1698, 0.0
  %v1849 = vadd.f32 %v1847, %v1848
  %v1850 = vsel %vm1740, %v1699, 0.0
  %v1851 = vadd.f32 %v1849, %v1850
  %v1852 = vsel %vm1740, %v1700, 0.0
  %v1853 = vadd.f32 %v1851, %v1852
  %v1854 = vsel %vm1740, %v1701, 0.0
  %v1855 = vadd.f32 %v1853, %v1854
  %v1856 = vsel %vm1740, %v1702, 0.0
  %v1857 = vadd.f32 %v1855, %v1856
  %v1858 = vsel %vm1740, %v1703, 0.0
  %v1859 = vadd.f32 %v1857, %v1858
  %v1860 = vsel %vm1740, %v1704, 0.0
  %v1861 = vadd.f32 %v1859, %v1860
  %v1862 = vsel %vm1740, %v1705, 0.0
  %v1863 = vadd.f32 %v1861, %v1862
  %v1864 = vsel %vm1740, %v1706, 0.0
  %v1865 = vadd.f32 %v1863, %v1864
  %v1866 = vsel %vm1740, %v1707, 0.0
  %v1867 = vadd.f32 %v1865, %v1866
  %v1868 = vsel %vm1740, %v1708, 0.0
  %v1869 = vadd.f32 %v1867, %v1868
  %v1870 = vsel %vm1740, %v1709, 0.0
  %v1871 = vadd.f32 %v1869, %v1870
  %v1872 = vsel %vm1740, %v1710, 0.0
  %v1873 = vadd.f32 %v1871, %v1872
  %v1874 = vsel %vm1740, %v1711, 0.0
  %v1875 = vadd.f32 %v1873, %v1874
  %v1876 = vsel %vm1740, %v1712, 0.0
  %v1877 = vadd.f32 %v1875, %v1876
  %v1878 = vsel %vm1740, %v1713, 0.0
  %v1879 = vadd.f32 %v1877, %v1878
  %v1880 = vsel %vm1740, %v1714, 0.0
  %v1881 = vadd.f32 %v1879, %v1880
  %v1882 = vsel %vm1740, %v1715, 0.0
  %v1883 = vadd.f32 %v1881, %v1882
  %v1884 = vsel %vm1740, %v1716, 0.0
  %v1885 = vadd.f32 %v1883, %v1884
  %v1886 = vsel %vm1740, %v1717, 0.0
  %v1887 = vadd.f32 %v1885, %v1886
  %v1888 = vsel %vm1740, %v1718, 0.0
  %v1889 = vadd.f32 %v1887, %v1888
  %v1890 = vsel %vm1740, %v1719, 0.0
  %v1891 = vadd.f32 %v1889, %v1890
  %v1892 = vsel %vm1740, %v1720, 0.0
  %v1893 = vadd.f32 %v1891, %v1892
  %v1894 = vsel %vm1740, %v1721, 0.0
  %v1895 = vadd.f32 %v1893, %v1894
  %v1896 = vsel %vm1740, %v1722, 0.0
  %v1897 = vadd.f32 %v1895, %v1896
  %v1898 = vsel %vm1740, %v1723, 0.0
  %v1899 = vadd.f32 %v1897, %v1898
  %v1900 = vsel %vm1740, %v1724, 0.0
  %v1901 = vadd.f32 %v1899, %v1900
  %v1902 = vsel %vm1740, %v1725, 0.0
  %v1903 = vadd.f32 %v1901, %v1902
  %v1904 = vsel %vm1740, %v1726, 0.0
  %v1905 = vadd.f32 %v1903, %v1904
  %v1906 = vsel %vm1740, %v1727, 0.0
  %v1907 = vadd.f32 %v1905, %v1906
  %v1908 = vsel %vm1740, %v1728, 0.0
  %v1909 = vadd.f32 %v1907, %v1908
  %v1910 = vsel %vm1740, %v1729, 0.0
  %v1911 = vadd.f32 %v1909, %v1910
  %v1912 = vsel %vm1740, %v1730, 0.0
  %v1913 = vadd.f32 %v1911, %v1912
  %v1914 = vsel %vm1740, %v1731, 0.0
  %v1915 = vadd.f32 %v1913, %v1914
  %v1916 = vsel %vm1740, %v1732, 0.0
  %v1917 = vadd.f32 %v1915, %v1916
  %v1918 = vsel %vm1740, %v1733, 0.0
  %v1919 = vadd.f32 %v1917, %v1918
  %v1920 = vsel %vm1740, %v1734, 0.0
  %v1921 = vadd.f32 %v1919, %v1920
  %v1922 = vsel %vm1740, %v1735, 0.0
  %v1923 = vadd.f32 %v1921, %v1922
  %v1924 = vsel %vm1740, %v1736, 0.0
  %v1925 = vadd.f32 %v1923, %v1924
  %v1926 = vsel %vm1740, %v1737, 0.0
  %v1927 = vadd.f32 %v1925, %v1926
  %v1928 = vsel %vm1740, %v1738, 0.0
  %v1929 = vadd.f32 %v1927, %v1928
  %v1930 = vsel %vm1740, %v1739, 0.0
  %v1931 = vadd.f32 %v1929, %v1930
  %v1932 = vrot.slane %v1931, 4
  %v1933 = vadd.f32 %v1931, %v1932
  %v1934 = vrot.slane %v1933, 2
  %v1935 = vadd.f32 %v1933, %v1934
  %v1936 = vrot.slane %v1935, 1
  %v1937 = vadd.f32 %v1935, %v1936
  %v1938 = vmul.f32 %v1676, %v1676
  %v1939 = vmul.f32 %v1677, %v1677
  %v1940 = vmul.f32 %v1678, %v1678
  %v1941 = vmul.f32 %v1679, %v1679
  %v1942 = vmul.f32 %v1680, %v1680
  %v1943 = vmul.f32 %v1681, %v1681
  %v1944 = vmul.f32 %v1682, %v1682
  %v1945 = vmul.f32 %v1683, %v1683
  %v1946 = vmul.f32 %v1684, %v1684
  %v1947 = vmul.f32 %v1685, %v1685
  %v1948 = vmul.f32 %v1686, %v1686
  %v1949 = vmul.f32 %v1687, %v1687
  %v1950 = vmul.f32 %v1688, %v1688
  %v1951 = vmul.f32 %v1689, %v1689
  %v1952 = vmul.f32 %v1690, %v1690
  %v1953 = vmul.f32 %v1691, %v1691
  %v1954 = vmul.f32 %v1692, %v1692
  %v1955 = vmul.f32 %v1693, %v1693
  %v1956 = vmul.f32 %v1694, %v1694
  %v1957 = vmul.f32 %v1695, %v1695
  %v1958 = vmul.f32 %v1696, %v1696
  %v1959 = vmul.f32 %v1697, %v1697
  %v1960 = vmul.f32 %v1698, %v1698
  %v1961 = vmul.f32 %v1699, %v1699
  %v1962 = vmul.f32 %v1700, %v1700
  %v1963 = vmul.f32 %v1701, %v1701
  %v1964 = vmul.f32 %v1702, %v1702
  %v1965 = vmul.f32 %v1703, %v1703
  %v1966 = vmul.f32 %v1704, %v1704
  %v1967 = vmul.f32 %v1705, %v1705
  %v1968 = vmul.f32 %v1706, %v1706
  %v1969 = vmul.f32 %v1707, %v1707
  %v1970 = vmul.f32 %v1708, %v1708
  %v1971 = vmul.f32 %v1709, %v1709
  %v1972 = vmul.f32 %v1710, %v1710
  %v1973 = vmul.f32 %v1711, %v1711
  %v1974 = vmul.f32 %v1712, %v1712
  %v1975 = vmul.f32 %v1713, %v1713
  %v1976 = vmul.f32 %v1714, %v1714
  %v1977 = vmul.f32 %v1715, %v1715
  %v1978 = vmul.f32 %v1716, %v1716
  %v1979 = vmul.f32 %v1717, %v1717
  %v1980 = vmul.f32 %v1718, %v1718
  %v1981 = vmul.f32 %v1719, %v1719
  %v1982 = vmul.f32 %v1720, %v1720
  %v1983 = vmul.f32 %v1721, %v1721
  %v1984 = vmul.f32 %v1722, %v1722
  %v1985 = vmul.f32 %v1723, %v1723
  %v1986 = vmul.f32 %v1724, %v1724
  %v1987 = vmul.f32 %v1725, %v1725
  %v1988 = vmul.f32 %v1726, %v1726
  %v1989 = vmul.f32 %v1727, %v1727
  %v1990 = vmul.f32 %v1728, %v1728
  %v1991 = vmul.f32 %v1729, %v1729
  %v1992 = vmul.f32 %v1730, %v1730
  %v1993 = vmul.f32 %v1731, %v1731
  %v1994 = vmul.f32 %v1732, %v1732
  %v1995 = vmul.f32 %v1733, %v1733
  %v1996 = vmul.f32 %v1734, %v1734
  %v1997 = vmul.f32 %v1735, %v1735
  %v1998 = vmul.f32 %v1736, %v1736
  %v1999 = vmul.f32 %v1737, %v1737
  %v2000 = vmul.f32 %v1738, %v1738
  %v2001 = vmul.f32 %v1739, %v1739
  %v2002 = vsel %vm1740, %v1938, 0.0
  %v2003 = vsel %vm1740, %v1939, 0.0
  %v2004 = vadd.f32 %v2002, %v2003
  %v2005 = vsel %vm1740, %v1940, 0.0
  %v2006 = vadd.f32 %v2004, %v2005
  %v2007 = vsel %vm1740, %v1941, 0.0
  %v2008 = vadd.f32 %v2006, %v2007
  %v2009 = vsel %vm1740, %v1942, 0.0
  %v2010 = vadd.f32 %v2008, %v2009
  %v2011 = vsel %vm1740, %v1943, 0.0
  %v2012 = vadd.f32 %v2010, %v2011
  %v2013 = vsel %vm1740, %v1944, 0.0
  %v2014 = vadd.f32 %v2012, %v2013
  %v2015 = vsel %vm1740, %v1945, 0.0
  %v2016 = vadd.f32 %v2014, %v2015
  %v2017 = vsel %vm1740, %v1946, 0.0
  %v2018 = vadd.f32 %v2016, %v2017
  %v2019 = vsel %vm1740, %v1947, 0.0
  %v2020 = vadd.f32 %v2018, %v2019
  %v2021 = vsel %vm1740, %v1948, 0.0
  %v2022 = vadd.f32 %v2020, %v2021
  %v2023 = vsel %vm1740, %v1949, 0.0
  %v2024 = vadd.f32 %v2022, %v2023
  %v2025 = vsel %vm1740, %v1950, 0.0
  %v2026 = vadd.f32 %v2024, %v2025
  %v2027 = vsel %vm1740, %v1951, 0.0
  %v2028 = vadd.f32 %v2026, %v2027
  %v2029 = vsel %vm1740, %v1952, 0.0
  %v2030 = vadd.f32 %v2028, %v2029
  %v2031 = vsel %vm1740, %v1953, 0.0
  %v2032 = vadd.f32 %v2030, %v2031
  %v2033 = vsel %vm1740, %v1954, 0.0
  %v2034 = vadd.f32 %v2032, %v2033
  %v2035 = vsel %vm1740, %v1955, 0.0
  %v2036 = vadd.f32 %v2034, %v2035
  %v2037 = vsel %vm1740, %v1956, 0.0
  %v2038 = vadd.f32 %v2036, %v2037
  %v2039 = vsel %vm1740, %v1957, 0.0
  %v2040 = vadd.f32 %v2038, %v2039
  %v2041 = vsel %vm1740, %v1958, 0.0
  %v2042 = vadd.f32 %v2040, %v2041
  %v2043 = vsel %vm1740, %v1959, 0.0
  %v2044 = vadd.f32 %v2042, %v2043
  %v2045 = vsel %vm1740, %v1960, 0.0
  %v2046 = vadd.f32 %v2044, %v2045
  %v2047 = vsel %vm1740, %v1961, 0.0
  %v2048 = vadd.f32 %v2046, %v2047
  %v2049 = vsel %vm1740, %v1962, 0.0
  %v2050 = vadd.f32 %v2048, %v2049
  %v2051 = vsel %vm1740, %v1963, 0.0
  %v2052 = vadd.f32 %v2050, %v2051
  %v2053 = vsel %vm1740, %v1964, 0.0
  %v2054 = vadd.f32 %v2052, %v2053
  %v2055 = vsel %vm1740, %v1965, 0.0
  %v2056 = vadd.f32 %v2054, %v2055
  %v2057 = vsel %vm1740, %v1966, 0.0
  %v2058 = vadd.f32 %v2056, %v2057
  %v2059 = vsel %vm1740, %v1967, 0.0
  %v2060 = vadd.f32 %v2058, %v2059
  %v2061 = vsel %vm1740, %v1968, 0.0
  %v2062 = vadd.f32 %v2060, %v2061
  %v2063 = vsel %vm1740, %v1969, 0.0
  %v2064 = vadd.f32 %v2062, %v2063
  %v2065 = vsel %vm1740, %v1970, 0.0
  %v2066 = vadd.f32 %v2064, %v2065
  %v2067 = vsel %vm1740, %v1971, 0.0
  %v2068 = vadd.f32 %v2066, %v2067
  %v2069 = vsel %vm1740, %v1972, 0.0
  %v2070 = vadd.f32 %v2068, %v2069
  %v2071 = vsel %vm1740, %v1973, 0.0
  %v2072 = vadd.f32 %v2070, %v2071
  %v2073 = vsel %vm1740, %v1974, 0.0
  %v2074 = vadd.f32 %v2072, %v2073
  %v2075 = vsel %vm1740, %v1975, 0.0
  %v2076 = vadd.f32 %v2074, %v2075
  %v2077 = vsel %vm1740, %v1976, 0.0
  %v2078 = vadd.f32 %v2076, %v2077
  %v2079 = vsel %vm1740, %v1977, 0.0
  %v2080 = vadd.f32 %v2078, %v2079
  %v2081 = vsel %vm1740, %v1978, 0.0
  %v2082 = vadd.f32 %v2080, %v2081
  %v2083 = vsel %vm1740, %v1979, 0.0
  %v2084 = vadd.f32 %v2082, %v2083
  %v2085 = vsel %vm1740, %v1980, 0.0
  %v2086 = vadd.f32 %v2084, %v2085
  %v2087 = vsel %vm1740, %v1981, 0.0
  %v2088 = vadd.f32 %v2086, %v2087
  %v2089 = vsel %vm1740, %v1982, 0.0
  %v2090 = vadd.f32 %v2088, %v2089
  %v2091 = vsel %vm1740, %v1983, 0.0
  %v2092 = vadd.f32 %v2090, %v2091
  %v2093 = vsel %vm1740, %v1984, 0.0
  %v2094 = vadd.f32 %v2092, %v2093
  %v2095 = vsel %vm1740, %v1985, 0.0
  %v2096 = vadd.f32 %v2094, %v2095
  %v2097 = vsel %vm1740, %v1986, 0.0
  %v2098 = vadd.f32 %v2096, %v2097
  %v2099 = vsel %vm1740, %v1987, 0.0
  %v2100 = vadd.f32 %v2098, %v2099
  %v2101 = vsel %vm1740, %v1988, 0.0
  %v2102 = vadd.f32 %v2100, %v2101
  %v2103 = vsel %vm1740, %v1989, 0.0
  %v2104 = vadd.f32 %v2102, %v2103
  %v2105 = vsel %vm1740, %v1990, 0.0
  %v2106 = vadd.f32 %v2104, %v2105
  %v2107 = vsel %vm1740, %v1991, 0.0
  %v2108 = vadd.f32 %v2106, %v2107
  %v2109 = vsel %vm1740, %v1992, 0.0
  %v2110 = vadd.f32 %v2108, %v2109
  %v2111 = vsel %vm1740, %v1993, 0.0
  %v2112 = vadd.f32 %v2110, %v2111
  %v2113 = vsel %vm1740, %v1994, 0.0
  %v2114 = vadd.f32 %v2112, %v2113
  %v2115 = vsel %vm1740, %v1995, 0.0
  %v2116 = vadd.f32 %v2114, %v2115
  %v2117 = vsel %vm1740, %v1996, 0.0
  %v2118 = vadd.f32 %v2116, %v2117
  %v2119 = vsel %vm1740, %v1997, 0.0
  %v2120 = vadd.f32 %v2118, %v2119
  %v2121 = vsel %vm1740, %v1998, 0.0
  %v2122 = vadd.f32 %v2120, %v2121
  %v2123 = vsel %vm1740, %v1999, 0.0
  %v2124 = vadd.f32 %v2122, %v2123
  %v2125 = vsel %vm1740, %v2000, 0.0
  %v2126 = vadd.f32 %v2124, %v2125
  %v2127 = vsel %vm1740, %v2001, 0.0
  %v2128 = vadd.f32 %v2126, %v2127
  %v2129 = vrot.slane %v2128, 4
  %v2130 = vadd.f32 %v2128, %v2129
  %v2131 = vrot.slane %v2130, 2
  %v2132 = vadd.f32 %v2130, %v2131
  %v2133 = vrot.slane %v2132, 1
  %v2134 = vadd.f32 %v2132, %v2133
  %vm2135 = vcmask 1040384
  %v2136 = vsel %vm2135, %v1937, %v2134
  %vm2137 = vcmask 58368
  %2138 = vst.msk [vmem:[%s3] sm:$0x3] %vm2137, %v2136
  // Predicated region
  $region10: #{convblock_forward.6} parent=0 // pred_check
    _
  $region11: #{convblock_forward.6} parent=0 // pred_check_branch
    %2140 = sbr.rel (0) target = $region13
  $region12: #{convblock_forward.6} parent=0 // pred_region
    _
  $region13: #{convblock_forward.6} parent=0 // pred_fallthru
    _
  // Predicated region
  $region14: #{convblock_forward.6} parent=0 // pred_check
    _
  $region15: #{convblock_forward.6} parent=0 // pred_check_branch
    %2142 = sbr.rel (0) target = $region17
  $region16: #{convblock_forward.6} parent=0 // pred_region
    _
  $region17: #{convblock_forward.6} parent=0 // pred_fallthru
    _
  // Predicated region
  $region18: #{convblock_forward.6} parent=0 // pred_check
    _
  $region19: #{convblock_forward.6} parent=0 // pred_check_branch
    %2144 = sbr.rel (0) target = $region21
  $region20: #{convblock_forward.6} parent=0 // pred_region
    _
  $region21: #{convblock_forward.6} parent=0 // pred_fallthru
    _
  // Predicated region
  $region22: #{convblock_forward.6} parent=0 // pred_check
    _
  $region23: #{convblock_forward.6} parent=0 // pred_check_branch
    %2146 = sbr.rel (0) target = $region25
  $region24: #{convblock_forward.6} parent=0 // pred_region
    _
  $region25: #{convblock_forward.6} parent=0 // pred_fallthru
    _

// kernel: convblock_forward.11
$region0: #{convblock_forward.11}
  #allocation0 [shape = 'u32[]', space=smem, size = 0x4, offset = 0x4, fixed_abs, tag = 'smem constant byte address 0x4 - core index']
  #allocation1 [shape = 'u32[72,128]{1,0:T(1,128)}', space=vmem, size = 0x9000, scoped, tag = 'internal scratch']
  %s0 = inlined_call_operand.vmem [shape: f32[16,2,8,16], index: 0, kind: input, shape index: {}]
  %s1 = inlined_call_operand.vmem [shape: f32[1,8], index: 1, kind: input, shape index: {}]
  %s2 = inlined_call_operand.vmem [shape: f32[1,8], index: 2, kind: input, shape index: {}]
  %s3 = inlined_call_operand.vmem [shape: bf16[2,2,8,8], index: 3, kind: input, shape index: {}]
  %s4 = inlined_call_operand.vmem [shape: f32[1,8], index: 4, kind: input, shape index: {}]
  %s5 = inlined_call_operand.vmem [shape: f32[128,8], index: 5, kind: output, shape index: {}]
  %s6 = sld [smem:[#allocation0]]
  $region30: #{convblock_forward.11} parent=0
    _
  %s8 = ssub.s32 1, %s6
  %s9 = scalar_select 0, %s8, %s6
  // Predicated region
  $region2: #{convblock_forward.11} parent=0 // pred_check
    _
  $region3: #{convblock_forward.11} parent=0 // pred_check_branch
    %11 = sbr.rel (0) target = $region5
  $region4: #{convblock_forward.11} parent=0 // pred_region
    _
  $region5: #{convblock_forward.11} parent=0 // pred_fallthru
    _
  // Predicated region
  $region6: #{convblock_forward.11} parent=0 // pred_check
    _
  $region7: #{convblock_forward.11} parent=0 // pred_check_branch
    %13 = sbr.rel (0) target = $region9
  $region8: #{convblock_forward.11} parent=0 // pred_region
    _
  $region9: #{convblock_forward.11} parent=0 // pred_fallthru
    _
  // Predicated region
  $region10: #{convblock_forward.11} parent=0 // pred_check
    _
  $region11: #{convblock_forward.11} parent=0 // pred_check_branch
    %15 = sbr.rel (0) target = $region13
  $region12: #{convblock_forward.11} parent=0 // pred_region
    _
  $region13: #{convblock_forward.11} parent=0 // pred_fallthru
    _
  // Predicated region
  $region14: #{convblock_forward.11} parent=0 // pred_check
    _
  $region15: #{convblock_forward.11} parent=0 // pred_check_branch
    %17 = sbr.rel (0) target = $region17
  $region16: #{convblock_forward.11} parent=0 // pred_region
    _
  $region17: #{convblock_forward.11} parent=0 // pred_fallthru
    _
  // Predicated region
  $region18: #{convblock_forward.11} parent=0 // pred_check
    _
  $region19: #{convblock_forward.11} parent=0 // pred_check_branch
    %19 = sbr.rel (0) target = $region21
  $region20: #{convblock_forward.11} parent=0 // pred_region
    _
  $region21: #{convblock_forward.11} parent=0 // pred_fallthru
    _
  %v21 = vld [vmem:[%s0] sm:$0xff]
  %v22 = vld [vmem:[%s0 + $0x8] sm:$0xff]
  %v23 = vld [vmem:[%s0 + $0x10] sm:$0xff]
  %v24 = vld [vmem:[%s0 + $0x18] sm:$0xff]
  %v25 = vld [vmem:[%s0 + $0x20] sm:$0xff]
  %v26 = vld [vmem:[%s0 + $0x28] sm:$0xff]
  %v27 = vld [vmem:[%s0 + $0x30] sm:$0xff]
  %v28 = vld [vmem:[%s0 + $0x38] sm:$0xff]
  %v29 = vld [vmem:[%s0 + $0x40] sm:$0xff]
  %v30 = vld [vmem:[%s0 + $0x48] sm:$0xff]
  %v31 = vld [vmem:[%s0 + $0x50] sm:$0xff]
  %v32 = vld [vmem:[%s0 + $0x58] sm:$0xff]
  %v33 = vld [vmem:[%s0 + $0x60] sm:$0xff]
  %v34 = vld [vmem:[%s0 + $0x68] sm:$0xff]
  %v35 = vld [vmem:[%s0 + $0x70] sm:$0xff]
  %v36 = vld [vmem:[%s0 + $0x78] sm:$0xff]
  %v37 = vld [vmem:[%s0 + $0x80] sm:$0xff]
  %v38 = vld [vmem:[%s0 + $0x88] sm:$0xff]
  %v39 = vld [vmem:[%s0 + $0x90] sm:$0xff]
  %v40 = vld [vmem:[%s0 + $0x98] sm:$0xff]
  %v41 = vld [vmem:[%s0 + $0xa0] sm:$0xff]
  %v42 = vld [vmem:[%s0 + $0xa8] sm:$0xff]
  %v43 = vld [vmem:[%s0 + $0xb0] sm:$0xff]
  %v44 = vld [vmem:[%s0 + $0xb8] sm:$0xff]
  %v45 = vld [vmem:[%s0 + $0xc0] sm:$0xff]
  %v46 = vld [vmem:[%s0 + $0xc8] sm:$0xff]
  %v47 = vld [vmem:[%s0 + $0xd0] sm:$0xff]
  %v48 = vld [vmem:[%s0 + $0xd8] sm:$0xff]
  %v49 = vld [vmem:[%s0 + $0xe0] sm:$0xff]
  %v50 = vld [vmem:[%s0 + $0xe8] sm:$0xff]
  %v51 = vld [vmem:[%s0 + $0xf0] sm:$0xff]
  %v52 = vld [vmem:[%s0 + $0xf8] sm:$0xff]
  %v53 = vld [vmem:[%s1] sm:$0x1]
  %v54 = vld [vmem:[%s2] sm:$0x1]
  %v56 = vperm.slane %v53, 0
  %v58 = vmul.f32 %v21, %v56
  %v59 = vmul.f32 %v23, %v56
  %v60 = vmul.f32 %v25, %v56
  %v61 = vmul.f32 %v27, %v56
  %v62 = vmul.f32 %v29, %v56
  %v63 = vmul.f32 %v31, %v56
  %v64 = vmul.f32 %v33, %v56
  %v65 = vmul.f32 %v35, %v56
  %v66 = vmul.f32 %v37, %v56
  %v67 = vmul.f32 %v39, %v56
  %v68 = vmul.f32 %v41, %v56
  %v69 = vmul.f32 %v43, %v56
  %v70 = vmul.f32 %v45, %v56
  %v71 = vmul.f32 %v47, %v56
  %v72 = vmul.f32 %v49, %v56
  %v73 = vmul.f32 %v51, %v56
  %v75 = vperm.slane %v54, 0
  %v77 = vadd.f32 %v58, %v75
  %v78 = vadd.f32 %v59, %v75
  %v79 = vadd.f32 %v60, %v75
  %v80 = vadd.f32 %v61, %v75
  %v81 = vadd.f32 %v62, %v75
  %v82 = vadd.f32 %v63, %v75
  %v83 = vadd.f32 %v64, %v75
  %v84 = vadd.f32 %v65, %v75
  %v85 = vadd.f32 %v66, %v75
  %v86 = vadd.f32 %v67, %v75
  %v87 = vadd.f32 %v68, %v75
  %v88 = vadd.f32 %v69, %v75
  %v89 = vadd.f32 %v70, %v75
  %v90 = vadd.f32 %v71, %v75
  %v91 = vadd.f32 %v72, %v75
  %v92 = vadd.f32 %v73, %v75
  %vm93 = vcmp.gt.f32.partialorder %v77, 0.0
  %vm94 = vcmp.gt.f32.partialorder %v78, 0.0
  %vm95 = vcmp.gt.f32.partialorder %v79, 0.0
  %vm96 = vcmp.gt.f32.partialorder %v80, 0.0
  %vm97 = vcmp.gt.f32.partialorder %v81, 0.0
  %vm98 = vcmp.gt.f32.partialorder %v82, 0.0
  %vm99 = vcmp.gt.f32.partialorder %v83, 0.0
  %vm100 = vcmp.gt.f32.partialorder %v84, 0.0
  %vm101 = vcmp.gt.f32.partialorder %v85, 0.0
  %vm102 = vcmp.gt.f32.partialorder %v86, 0.0
  %vm103 = vcmp.gt.f32.partialorder %v87, 0.0
  %vm104 = vcmp.gt.f32.partialorder %v88, 0.0
  %vm105 = vcmp.gt.f32.partialorder %v89, 0.0
  %vm106 = vcmp.gt.f32.partialorder %v90, 0.0
  %vm107 = vcmp.gt.f32.partialorder %v91, 0.0
  %vm108 = vcmp.gt.f32.partialorder %v92, 0.0
  %v109 = vmul.f32 %v77, 0.1
  %v110 = vmul.f32 %v78, 0.1
  %v111 = vmul.f32 %v79, 0.1
  %v112 = vmul.f32 %v80, 0.1
  %v113 = vmul.f32 %v81, 0.1
  %v114 = vmul.f32 %v82, 0.1
  %v115 = vmul.f32 %v83, 0.1
  %v116 = vmul.f32 %v84, 0.1
  %v117 = vmul.f32 %v85, 0.1
  %v118 = vmul.f32 %v86, 0.1
  %v119 = vmul.f32 %v87, 0.1
  %v120 = vmul.f32 %v88, 0.1
  %v121 = vmul.f32 %v89, 0.1
  %v122 = vmul.f32 %v90, 0.1
  %v123 = vmul.f32 %v91, 0.1
  %v124 = vmul.f32 %v92, 0.1
  %v125 = vsel %vm93, %v77, %v109
  %v126 = vsel %vm94, %v78, %v110
  %v127 = vsel %vm95, %v79, %v111
  %v128 = vsel %vm96, %v80, %v112
  %v129 = vsel %vm97, %v81, %v113
  %v130 = vsel %vm98, %v82, %v114
  %v131 = vsel %vm99, %v83, %v115
  %v132 = vsel %vm100, %v84, %v116
  %v133 = vsel %vm101, %v85, %v117
  %v134 = vsel %vm102, %v86, %v118
  %v135 = vsel %vm103, %v87, %v119
  %v136 = vsel %vm104, %v88, %v120
  %v137 = vsel %vm105, %v89, %v121
  %v138 = vsel %vm106, %v90, %v122
  %v139 = vsel %vm107, %v91, %v123
  %v140 = vsel %vm108, %v92, %v124
  %v141 = vpack.c.bf16 %v126, %v125
  %v142 = vpack.c.bf16 %v128, %v127
  %v143 = vpack.c.bf16 %v130, %v129
  %v144 = vpack.c.bf16 %v132, %v131
  %v145 = vpack.c.bf16 %v134, %v133
  %v146 = vpack.c.bf16 %v136, %v135
  %v147 = vpack.c.bf16 %v138, %v137
  %v148 = vpack.c.bf16 %v140, %v139
  %v149 = vld [vmem:[%s3] sm:$0xf]
  %150 = vrot.lane.b32.xlu0 %v56, 8
  %v151 = vpop.permute.xlu0 %150
  %v153 = vmul.f32 %v21, %v151
  %v154 = vmul.f32 %v23, %v151
  %v155 = vmul.f32 %v25, %v151
  %v156 = vmul.f32 %v27, %v151
  %v157 = vmul.f32 %v29, %v151
  %v158 = vmul.f32 %v31, %v151
  %v159 = vmul.f32 %v33, %v151
  %v160 = vmul.f32 %v35, %v151
  %v161 = vmul.f32 %v37, %v151
  %v162 = vmul.f32 %v39, %v151
  %v163 = vmul.f32 %v41, %v151
  %v164 = vmul.f32 %v43, %v151
  %v165 = vmul.f32 %v45, %v151
  %v166 = vmul.f32 %v47, %v151
  %v167 = vmul.f32 %v49, %v151
  %v168 = vmul.f32 %v51, %v151
  %169 = vrot.lane.b32.xlu0 %v75, 8
  %v170 = vpop.permute.xlu0 %169
  %v172 = vadd.f32 %v153, %v170
  %v173 = vadd.f32 %v154, %v170
  %v174 = vadd.f32 %v155, %v170
  %v175 = vadd.f32 %v156, %v170
  %v176 = vadd.f32 %v157, %v170
  %v177 = vadd.f32 %v158, %v170
  %v178 = vadd.f32 %v159, %v170
  %v179 = vadd.f32 %v160, %v170
  %v180 = vadd.f32 %v161, %v170
  %v181 = vadd.f32 %v162, %v170
  %v182 = vadd.f32 %v163, %v170
  %v183 = vadd.f32 %v164, %v170
  %v184 = vadd.f32 %v165, %v170
  %v185 = vadd.f32 %v166, %v170
  %v186 = vadd.f32 %v167, %v170
  %v187 = vadd.f32 %v168, %v170
  %vm188 = vcmp.gt.f32.partialorder %v172, 0.0
  %vm189 = vcmp.gt.f32.partialorder %v173, 0.0
  %vm190 = vcmp.gt.f32.partialorder %v174, 0.0
  %vm191 = vcmp.gt.f32.partialorder %v175, 0.0
  %vm192 = vcmp.gt.f32.partialorder %v176, 0.0
  %vm193 = vcmp.gt.f32.partialorder %v177, 0.0
  %vm194 = vcmp.gt.f32.partialorder %v178, 0.0
  %vm195 = vcmp.gt.f32.partialorder %v179, 0.0
  %vm196 = vcmp.gt.f32.partialorder %v180, 0.0
  %vm197 = vcmp.gt.f32.partialorder %v181, 0.0
  %vm198 = vcmp.gt.f32.partialorder %v182, 0.0
  %vm199 = vcmp.gt.f32.partialorder %v183, 0.0
  %vm200 = vcmp.gt.f32.partialorder %v184, 0.0
  %vm201 = vcmp.gt.f32.partialorder %v185, 0.0
  %vm202 = vcmp.gt.f32.partialorder %v186, 0.0
  %vm203 = vcmp.gt.f32.partialorder %v187, 0.0
  %v204 = vmul.f32 %v172, 0.1
  %v205 = vmul.f32 %v173, 0.1
  %v206 = vmul.f32 %v174, 0.1
  %v207 = vmul.f32 %v175, 0.1
  %v208 = vmul.f32 %v176, 0.1
  %v209 = vmul.f32 %v177, 0.1
  %v210 = vmul.f32 %v178, 0.1
  %v211 = vmul.f32 %v179, 0.1
  %v212 = vmul.f32 %v180, 0.1
  %v213 = vmul.f32 %v181, 0.1
  %v214 = vmul.f32 %v182, 0.1
  %v215 = vmul.f32 %v183, 0.1
  %v216 = vmul.f32 %v184, 0.1
  %v217 = vmul.f32 %v185, 0.1
  %v218 = vmul.f32 %v186, 0.1
  %v219 = vmul.f32 %v187, 0.1
  %v220 = vsel %vm188, %v172, %v204
  %v221 = vsel %vm189, %v173, %v205
  %v222 = vsel %vm190, %v174, %v206
  %v223 = vsel %vm191, %v175, %v207
  %v224 = vsel %vm192, %v176, %v208
  %v225 = vsel %vm193, %v177, %v209
  %v226 = vsel %vm194, %v178, %v210
  %v227 = vsel %vm195, %v179, %v211
  %v228 = vsel %vm196, %v180, %v212
  %v229 = vsel %vm197, %v181, %v213
  %v230 = vsel %vm198, %v182, %v214
  %v231 = vsel %vm199, %v183, %v215
  %v232 = vsel %vm200, %v184, %v216
  %v233 = vsel %vm201, %v185, %v217
  %v234 = vsel %vm202, %v186, %v218
  %v235 = vsel %vm203, %v187, %v219
  %v236 = vpack.c.bf16 %v221, %v220
  %v237 = vpack.c.bf16 %v223, %v222
  %v238 = vpack.c.bf16 %v225, %v224
  %v239 = vpack.c.bf16 %v227, %v226
  %v240 = vpack.c.bf16 %v229, %v228
  %v241 = vpack.c.bf16 %v231, %v230
  %v242 = vpack.c.bf16 %v233, %v232
  %v243 = vpack.c.bf16 %v235, %v234
  %s244 = scalar_lea.vmem %s3, 4
  %v245 = vld [vmem:[%s244] sm:$0xf]
  %254 = vrot.lane.b32.xlu0 %v236, 120
  %v255 = vpop.permute.xlu0 %254
  %256 = vrot.lane.b32.xlu0 %v237, 120
  %v257 = vpop.permute.xlu0 %256
  %258 = vrot.lane.b32.xlu0 %v238, 120
  %v259 = vpop.permute.xlu0 %258
  %260 = vrot.lane.b32.xlu0 %v239, 120
  %v261 = vpop.permute.xlu0 %260
  %262 = vrot.lane.b32.xlu0 %v240, 120
  %v263 = vpop.permute.xlu0 %262
  %264 = vrot.lane.b32.xlu0 %v241, 120
  %v265 = vpop.permute.xlu0 %264
  %266 = vrot.lane.b32.xlu0 %v242, 120
  %v267 = vpop.permute.xlu0 %266
  %268 = vrot.lane.b32.xlu0 %v243, 120
  %v269 = vpop.permute.xlu0 %268
  %vm270 = vcmask 64512
  %v272 = vsel %vm270, %v255, 0
  %v275 = vsel %vm270, %v257, 0
  %v278 = vsel %vm270, %v259, 0
  %v281 = vsel %vm270, %v261, 0
  %v284 = vsel %vm270, %v263, 0
  %v287 = vsel %vm270, %v265, 0
  %v290 = vsel %vm270, %v267, 0
  %v293 = vsel %vm270, %v269, 0
  %vm295 = vcmask 1043456
  %v297 = vsel %vm295, %v245, 0
  %299 = vmatpush.bf16.msra.mxu0 0
  %300 = vmatpush.bf16.msra.mxu0 0
  %301 = vmatpush.bf16.msra.mxu0 0
  %302 = vmatpush.bf16.msra.mxu0 0
  %303 = vmatpush.bf16.msra.mxu0 0
  %304 = vmatpush.bf16.msra.mxu0 0
  %305 = vmatpush.bf16.msra.mxu0 0
  %306 = vmatpush.bf16.msra.mxu0 %v297
  %307 = vmatmul.bf16.gmra.mxu0 %v272
  %v308 = vpop.f32.mrf.mxu0
  %v309 = vadd.f32 0.0, %v308
  %v310 = vpop.f32.mrf.mxu0
  %v311 = vadd.f32 0.0, %v310
  %312 = vmatmul.bf16.gmra.mxu0 %v275
  %v313 = vpop.f32.mrf.mxu0
  %v314 = vadd.f32 0.0, %v313
  %v315 = vpop.f32.mrf.mxu0
  %v316 = vadd.f32 0.0, %v315
  %317 = vmatmul.bf16.gmra.mxu0 %v278
  %v318 = vpop.f32.mrf.mxu0
  %v319 = vadd.f32 0.0, %v318
  %v320 = vpop.f32.mrf.mxu0
  %v321 = vadd.f32 0.0, %v320
  %322 = vmatmul.bf16.gmra.mxu0 %v281
  %v323 = vpop.f32.mrf.mxu0
  %v324 = vadd.f32 0.0, %v323
  %v325 = vpop.f32.mrf.mxu0
  %v326 = vadd.f32 0.0, %v325
  %327 = vmatmul.bf16.gmra.mxu0 %v284
  %v328 = vpop.f32.mrf.mxu0
  %v329 = vadd.f32 0.0, %v328
  %v330 = vpop.f32.mrf.mxu0
  %v331 = vadd.f32 0.0, %v330
  %332 = vmatmul.bf16.gmra.mxu0 %v287
  %v333 = vpop.f32.mrf.mxu0
  %v334 = vadd.f32 0.0, %v333
  %v335 = vpop.f32.mrf.mxu0
  %v336 = vadd.f32 0.0, %v335
  %337 = vmatmul.bf16.gmra.mxu0 %v290
  %v338 = vpop.f32.mrf.mxu0
  %v339 = vadd.f32 0.0, %v338
  %v340 = vpop.f32.mrf.mxu0
  %v341 = vadd.f32 0.0, %v340
  %342 = vmatmul.bf16.gmra.mxu0 %v293
  %v343 = vpop.f32.mrf.mxu0
  %v344 = vadd.f32 0.0, %v343
  %v345 = vpop.f32.mrf.mxu0
  %v346 = vadd.f32 0.0, %v345
  %347 = vdwg.mxu0
  %v349 = vsel %vm270, %v141, 0
  %v352 = vsel %vm270, %v142, 0
  %v355 = vsel %vm270, %v143, 0
  %v358 = vsel %vm270, %v144, 0
  %v361 = vsel %vm270, %v145, 0
  %v364 = vsel %vm270, %v146, 0
  %v367 = vsel %vm270, %v147, 0
  %v370 = vsel %vm270, %v148, 0
  %v373 = vsel %vm295, %v149, 0
  %375 = vmatpush.bf16.msra.mxu0 0
  %376 = vmatpush.bf16.msra.mxu0 0
  %377 = vmatpush.bf16.msra.mxu0 0
  %378 = vmatpush.bf16.msra.mxu0 0
  %379 = vmatpush.bf16.msra.mxu0 0
  %380 = vmatpush.bf16.msra.mxu0 0
  %381 = vmatpush.bf16.msra.mxu0 0
  %382 = vmatpush.bf16.msra.mxu0 %v373
  %383 = vmatmul.bf16.gmra.mxu0 %v349
  %v384 = vpop.f32.mrf.mxu0
  %v385 = vadd.f32 %v309, %v384
  %v386 = vpop.f32.mrf.mxu0
  %v387 = vadd.f32 %v311, %v386
  %388 = vmatmul.bf16.gmra.mxu0 %v352
  %v389 = vpop.f32.mrf.mxu0
  %v390 = vadd.f32 %v314, %v389
  %v391 = vpop.f32.mrf.mxu0
  %v392 = vadd.f32 %v316, %v391
  %393 = vmatmul.bf16.gmra.mxu0 %v355
  %v394 = vpop.f32.mrf.mxu0
  %v395 = vadd.f32 %v319, %v394
  %v396 = vpop.f32.mrf.mxu0
  %v397 = vadd.f32 %v321, %v396
  %398 = vmatmul.bf16.gmra.mxu0 %v358
  %v399 = vpop.f32.mrf.mxu0
  %v400 = vadd.f32 %v324, %v399
  %v401 = vpop.f32.mrf.mxu0
  %v402 = vadd.f32 %v326, %v401
  %403 = vmatmul.bf16.gmra.mxu0 %v361
  %v404 = vpop.f32.mrf.mxu0
  %v405 = vadd.f32 %v329, %v404
  %v406 = vpop.f32.mrf.mxu0
  %v407 = vadd.f32 %v331, %v406
  %408 = vmatmul.bf16.gmra.mxu0 %v364
  %v409 = vpop.f32.mrf.mxu0
  %v410 = vadd.f32 %v334, %v409
  %v411 = vpop.f32.mrf.mxu0
  %v412 = vadd.f32 %v336, %v411
  %413 = vmatmul.bf16.gmra.mxu0 %v367
  %v414 = vpop.f32.mrf.mxu0
  %v415 = vadd.f32 %v339, %v414
  %v416 = vpop.f32.mrf.mxu0
  %v417 = vadd.f32 %v341, %v416
  %418 = vmatmul.bf16.gmra.mxu0 %v370
  %v419 = vpop.f32.mrf.mxu0
  %v420 = vadd.f32 %v344, %v419
  %v421 = vpop.f32.mrf.mxu0
  %v422 = vadd.f32 %v346, %v421
  %423 = vdwg.mxu0
  %v424 = vmul.f32 %v22, %v56
  %v425 = vmul.f32 %v24, %v56
  %v426 = vmul.f32 %v26, %v56
  %v427 = vmul.f32 %v28, %v56
  %v428 = vmul.f32 %v30, %v56
  %v429 = vmul.f32 %v32, %v56
  %v430 = vmul.f32 %v34, %v56
  %v431 = vmul.f32 %v36, %v56
  %v432 = vmul.f32 %v38, %v56
  %v433 = vmul.f32 %v40, %v56
  %v434 = vmul.f32 %v42, %v56
  %v435 = vmul.f32 %v44, %v56
  %v436 = vmul.f32 %v46, %v56
  %v437 = vmul.f32 %v48, %v56
  %v438 = vmul.f32 %v50, %v56
  %v439 = vmul.f32 %v52, %v56
  %v440 = vadd.f32 %v424, %v75
  %v441 = vadd.f32 %v425, %v75
  %v442 = vadd.f32 %v426, %v75
  %v443 = vadd.f32 %v427, %v75
  %v444 = vadd.f32 %v428, %v75
  %v445 = vadd.f32 %v429, %v75
  %v446 = vadd.f32 %v430, %v75
  %v447 = vadd.f32 %v431, %v75
  %v448 = vadd.f32 %v432, %v75
  %v449 = vadd.f32 %v433, %v75
  %v450 = vadd.f32 %v434, %v75
  %v451 = vadd.f32 %v435, %v75
  %v452 = vadd.f32 %v436, %v75
  %v453 = vadd.f32 %v437, %v75
  %v454 = vadd.f32 %v438, %v75
  %v455 = vadd.f32 %v439, %v75
  %vm456 = vcmp.gt.f32.partialorder %v440, 0.0
  %vm457 = vcmp.gt.f32.partialorder %v441, 0.0
  %vm458 = vcmp.gt.f32.partialorder %v442, 0.0
  %vm459 = vcmp.gt.f32.partialorder %v443, 0.0
  %vm460 = vcmp.gt.f32.partialorder %v444, 0.0
  %vm461 = vcmp.gt.f32.partialorder %v445, 0.0
  %vm462 = vcmp.gt.f32.partialorder %v446, 0.0
  %vm463 = vcmp.gt.f32.partialorder %v447, 0.0
  %vm464 = vcmp.gt.f32.partialorder %v448, 0.0
  %vm465 = vcmp.gt.f32.partialorder %v449, 0.0
  %vm466 = vcmp.gt.f32.partialorder %v450, 0.0
  %vm467 = vcmp.gt.f32.partialorder %v451, 0.0
  %vm468 = vcmp.gt.f32.partialorder %v452, 0.0
  %vm469 = vcmp.gt.f32.partialorder %v453, 0.0
  %vm470 = vcmp.gt.f32.partialorder %v454, 0.0
  %vm471 = vcmp.gt.f32.partialorder %v455, 0.0
  %v472 = vmul.f32 %v440, 0.1
  %v473 = vmul.f32 %v441, 0.1
  %v474 = vmul.f32 %v442, 0.1
  %v475 = vmul.f32 %v443, 0.1
  %v476 = vmul.f32 %v444, 0.1
  %v477 = vmul.f32 %v445, 0.1
  %v478 = vmul.f32 %v446, 0.1
  %v479 = vmul.f32 %v447, 0.1
  %v480 = vmul.f32 %v448, 0.1
  %v481 = vmul.f32 %v449, 0.1
  %v482 = vmul.f32 %v450, 0.1
  %v483 = vmul.f32 %v451, 0.1
  %v484 = vmul.f32 %v452, 0.1
  %v485 = vmul.f32 %v453, 0.1
  %v486 = vmul.f32 %v454, 0.1
  %v487 = vmul.f32 %v455, 0.1
  %v488 = vsel %vm456, %v440, %v472
  %v489 = vsel %vm457, %v441, %v473
  %v490 = vsel %vm458, %v442, %v474
  %v491 = vsel %vm459, %v443, %v475
  %v492 = vsel %vm460, %v444, %v476
  %v493 = vsel %vm461, %v445, %v477
  %v494 = vsel %vm462, %v446, %v478
  %v495 = vsel %vm463, %v447, %v479
  %v496 = vsel %vm464, %v448, %v480
  %v497 = vsel %vm465, %v449, %v481
  %v498 = vsel %vm466, %v450, %v482
  %v499 = vsel %vm467, %v451, %v483
  %v500 = vsel %vm468, %v452, %v484
  %v501 = vsel %vm469, %v453, %v485
  %v502 = vsel %vm470, %v454, %v486
  %v503 = vsel %vm471, %v455, %v487
  %v504 = vpack.c.bf16 %v489, %v488
  %v505 = vpack.c.bf16 %v491, %v490
  %v506 = vpack.c.bf16 %v493, %v492
  %v507 = vpack.c.bf16 %v495, %v494
  %v508 = vpack.c.bf16 %v497, %v496
  %v509 = vpack.c.bf16 %v499, %v498
  %v510 = vpack.c.bf16 %v501, %v500
  %v511 = vpack.c.bf16 %v503, %v502
  %s512 = scalar_lea.vmem %s3, 8
  %v513 = vld [vmem:[%s512] sm:$0xf]
  %v515 = vsel %vm270, %v504, 0
  %v518 = vsel %vm270, %v505, 0
  %v521 = vsel %vm270, %v506, 0
  %v524 = vsel %vm270, %v507, 0
  %v527 = vsel %vm270, %v508, 0
  %v530 = vsel %vm270, %v509, 0
  %v533 = vsel %vm270, %v510, 0
  %v536 = vsel %vm270, %v511, 0
  %v539 = vsel %vm295, %v513, 0
  %541 = vmatpush.bf16.msra.mxu0 0
  %542 = vmatpush.bf16.msra.mxu0 0
  %543 = vmatpush.bf16.msra.mxu0 0
  %544 = vmatpush.bf16.msra.mxu0 0
  %545 = vmatpush.bf16.msra.mxu0 0
  %546 = vmatpush.bf16.msra.mxu0 0
  %547 = vmatpush.bf16.msra.mxu0 0
  %548 = vmatpush.bf16.msra.mxu0 %v539
  %549 = vmatmul.bf16.gmra.mxu0 %v515
  %v550 = vpop.f32.mrf.mxu0
  %v551 = vadd.f32 0.0, %v550
  %v552 = vpop.f32.mrf.mxu0
  %v553 = vadd.f32 0.0, %v552
  %554 = vmatmul.bf16.gmra.mxu0 %v518
  %v555 = vpop.f32.mrf.mxu0
  %v556 = vadd.f32 0.0, %v555
  %v557 = vpop.f32.mrf.mxu0
  %v558 = vadd.f32 0.0, %v557
  %559 = vmatmul.bf16.gmra.mxu0 %v521
  %v560 = vpop.f32.mrf.mxu0
  %v561 = vadd.f32 0.0, %v560
  %v562 = vpop.f32.mrf.mxu0
  %v563 = vadd.f32 0.0, %v562
  %564 = vmatmul.bf16.gmra.mxu0 %v524
  %v565 = vpop.f32.mrf.mxu0
  %v566 = vadd.f32 0.0, %v565
  %v567 = vpop.f32.mrf.mxu0
  %v568 = vadd.f32 0.0, %v567
  %569 = vmatmul.bf16.gmra.mxu0 %v527
  %v570 = vpop.f32.mrf.mxu0
  %v571 = vadd.f32 0.0, %v570
  %v572 = vpop.f32.mrf.mxu0
  %v573 = vadd.f32 0.0, %v572
  %574 = vmatmul.bf16.gmra.mxu0 %v530
  %v575 = vpop.f32.mrf.mxu0
  %v576 = vadd.f32 0.0, %v575
  %v577 = vpop.f32.mrf.mxu0
  %v578 = vadd.f32 0.0, %v577
  %579 = vmatmul.bf16.gmra.mxu0 %v533
  %v580 = vpop.f32.mrf.mxu0
  %v581 = vadd.f32 0.0, %v580
  %v582 = vpop.f32.mrf.mxu0
  %v583 = vadd.f32 0.0, %v582
  %584 = vmatmul.bf16.gmra.mxu0 %v536
  %v585 = vpop.f32.mrf.mxu0
  %v586 = vadd.f32 0.0, %v585
  %v587 = vpop.f32.mrf.mxu0
  %v588 = vadd.f32 0.0, %v587
  %589 = vdwg.mxu0
  %v590 = vadd.f32 %v385, %v551
  %v591 = vadd.f32 %v387, %v553
  %v592 = vadd.f32 %v390, %v556
  %v593 = vadd.f32 %v392, %v558
  %v594 = vadd.f32 %v395, %v561
  %v595 = vadd.f32 %v397, %v563
  %v596 = vadd.f32 %v400, %v566
  %v597 = vadd.f32 %v402, %v568
  %v598 = vadd.f32 %v405, %v571
  %v599 = vadd.f32 %v407, %v573
  %v600 = vadd.f32 %v410, %v576
  %v601 = vadd.f32 %v412, %v578
  %v602 = vadd.f32 %v415, %v581
  %v603 = vadd.f32 %v417, %v583
  %v604 = vadd.f32 %v420, %v586
  %v605 = vadd.f32 %v422, %v588
  %v606 = vmul.f32 %v22, %v151
  %v607 = vmul.f32 %v24, %v151
  %v608 = vmul.f32 %v26, %v151
  %v609 = vmul.f32 %v28, %v151
  %v610 = vmul.f32 %v30, %v151
  %v611 = vmul.f32 %v32, %v151
  %v612 = vmul.f32 %v34, %v151
  %v613 = vmul.f32 %v36, %v151
  %v614 = vmul.f32 %v38, %v151
  %v615 = vmul.f32 %v40, %v151
  %v616 = vmul.f32 %v42, %v151
  %v617 = vmul.f32 %v44, %v151
  %v618 = vmul.f32 %v46, %v151
  %v619 = vmul.f32 %v48, %v151
  %v620 = vmul.f32 %v50, %v151
  %v621 = vmul.f32 %v52, %v151
  %v622 = vadd.f32 %v606, %v170
  %v623 = vadd.f32 %v607, %v170
  %v624 = vadd.f32 %v608, %v170
  %v625 = vadd.f32 %v609, %v170
  %v626 = vadd.f32 %v610, %v170
  %v627 = vadd.f32 %v611, %v170
  %v628 = vadd.f32 %v612, %v170
  %v629 = vadd.f32 %v613, %v170
  %v630 = vadd.f32 %v614, %v170
  %v631 = vadd.f32 %v615, %v170
  %v632 = vadd.f32 %v616, %v170
  %v633 = vadd.f32 %v617, %v170
  %v634 = vadd.f32 %v618, %v170
  %v635 = vadd.f32 %v619, %v170
  %v636 = vadd.f32 %v620, %v170
  %v637 = vadd.f32 %v621, %v170
  %vm638 = vcmp.gt.f32.partialorder %v622, 0.0
  %vm639 = vcmp.gt.f32.partialorder %v623, 0.0
  %vm640 = vcmp.gt.f32.partialorder %v624, 0.0
  %vm641 = vcmp.gt.f32.partialorder %v625, 0.0
  %vm642 = vcmp.gt.f32.partialorder %v626, 0.0
  %vm643 = vcmp.gt.f32.partialorder %v627, 0.0
  %vm644 = vcmp.gt.f32.partialorder %v628, 0.0
  %vm645 = vcmp.gt.f32.partialorder %v629, 0.0
  %vm646 = vcmp.gt.f32.partialorder %v630, 0.0
  %vm647 = vcmp.gt.f32.partialorder %v631, 0.0
  %vm648 = vcmp.gt.f32.partialorder %v632, 0.0
  %vm649 = vcmp.gt.f32.partialorder %v633, 0.0
  %vm650 = vcmp.gt.f32.partialorder %v634, 0.0
  %vm651 = vcmp.gt.f32.partialorder %v635, 0.0
  %vm652 = vcmp.gt.f32.partialorder %v636, 0.0
  %vm653 = vcmp.gt.f32.partialorder %v637, 0.0
  %v654 = vmul.f32 %v622, 0.1
  %v655 = vmul.f32 %v623, 0.1
  %v656 = vmul.f32 %v624, 0.1
  %v657 = vmul.f32 %v625, 0.1
  %v658 = vmul.f32 %v626, 0.1
  %v659 = vmul.f32 %v627, 0.1
  %v660 = vmul.f32 %v628, 0.1
  %v661 = vmul.f32 %v629, 0.1
  %v662 = vmul.f32 %v630, 0.1
  %v663 = vmul.f32 %v631, 0.1
  %v664 = vmul.f32 %v632, 0.1
  %v665 = vmul.f32 %v633, 0.1
  %v666 = vmul.f32 %v634, 0.1
  %v667 = vmul.f32 %v635, 0.1
  %v668 = vmul.f32 %v636, 0.1
  %v669 = vmul.f32 %v637, 0.1
  %v670 = vsel %vm638, %v622, %v654
  %v671 = vsel %vm639, %v623, %v655
  %v672 = vsel %vm640, %v624, %v656
  %v673 = vsel %vm641, %v625, %v657
  %v674 = vsel %vm642, %v626, %v658
  %v675 = vsel %vm643, %v627, %v659
  %v676 = vsel %vm644, %v628, %v660
  %v677 = vsel %vm645, %v629, %v661
  %v678 = vsel %vm646, %v630, %v662
  %v679 = vsel %vm647, %v631, %v663
  %v680 = vsel %vm648, %v632, %v664
  %v681 = vsel %vm649, %v633, %v665
  %v682 = vsel %vm650, %v634, %v666
  %v683 = vsel %vm651, %v635, %v667
  %v684 = vsel %vm652, %v636, %v668
  %v685 = vsel %vm653, %v637, %v669
  %v686 = vpack.c.bf16 %v671, %v670
  %v687 = vpack.c.bf16 %v673, %v672
  %v688 = vpack.c.bf16 %v675, %v674
  %v689 = vpack.c.bf16 %v677, %v676
  %v690 = vpack.c.bf16 %v679, %v678
  %v691 = vpack.c.bf16 %v681, %v680
  %v692 = vpack.c.bf16 %v683, %v682
  %v693 = vpack.c.bf16 %v685, %v684
  %s694 = scalar_lea.vmem %s3, 12
  %v695 = vld [vmem:[%s694] sm:$0xf]
  %704 = vrot.lane.b32.xlu0 %v686, 120
  %v705 = vpop.permute.xlu0 %704
  %706 = vrot.lane.b32.xlu0 %v687, 120
  %v707 = vpop.permute.xlu0 %706
  %708 = vrot.lane.b32.xlu0 %v688, 120
  %v709 = vpop.permute.xlu0 %708
  %710 = vrot.lane.b32.xlu0 %v689, 120
  %v711 = vpop.permute.xlu0 %710
  %712 = vrot.lane.b32.xlu0 %v690, 120
  %v713 = vpop.permute.xlu0 %712
  %714 = vrot.lane.b32.xlu0 %v691, 120
  %v715 = vpop.permute.xlu0 %714
  %716 = vrot.lane.b32.xlu0 %v692, 120
  %v717 = vpop.permute.xlu0 %716
  %718 = vrot.lane.b32.xlu0 %v693, 120
  %v719 = vpop.permute.xlu0 %718
  %v721 = vsel %vm270, %v705, 0
  %v724 = vsel %vm270, %v707, 0
  %v727 = vsel %vm270, %v709, 0
  %v730 = vsel %vm270, %v711, 0
  %v733 = vsel %vm270, %v713, 0
  %v736 = vsel %vm270, %v715, 0
  %v739 = vsel %vm270, %v717, 0
  %v742 = vsel %vm270, %v719, 0
  %v745 = vsel %vm295, %v695, 0
  %747 = vmatpush.bf16.msra.mxu0 0
  %748 = vmatpush.bf16.msra.mxu0 0
  %749 = vmatpush.bf16.msra.mxu0 0
  %750 = vmatpush.bf16.msra.mxu0 0
  %751 = vmatpush.bf16.msra.mxu0 0
  %752 = vmatpush.bf16.msra.mxu0 0
  %753 = vmatpush.bf16.msra.mxu0 0
  %754 = vmatpush.bf16.msra.mxu0 %v745
  %755 = vmatmul.bf16.gmra.mxu0 %v721
  %v756 = vpop.f32.mrf.mxu0
  %v757 = vadd.f32 0.0, %v756
  %v758 = vpop.f32.mrf.mxu0
  %v759 = vadd.f32 0.0, %v758
  %760 = vmatmul.bf16.gmra.mxu0 %v724
  %v761 = vpop.f32.mrf.mxu0
  %v762 = vadd.f32 0.0, %v761
  %v763 = vpop.f32.mrf.mxu0
  %v764 = vadd.f32 0.0, %v763
  %765 = vmatmul.bf16.gmra.mxu0 %v727
  %v766 = vpop.f32.mrf.mxu0
  %v767 = vadd.f32 0.0, %v766
  %v768 = vpop.f32.mrf.mxu0
  %v769 = vadd.f32 0.0, %v768
  %770 = vmatmul.bf16.gmra.mxu0 %v730
  %v771 = vpop.f32.mrf.mxu0
  %v772 = vadd.f32 0.0, %v771
  %v773 = vpop.f32.mrf.mxu0
  %v774 = vadd.f32 0.0, %v773
  %775 = vmatmul.bf16.gmra.mxu0 %v733
  %v776 = vpop.f32.mrf.mxu0
  %v777 = vadd.f32 0.0, %v776
  %v778 = vpop.f32.mrf.mxu0
  %v779 = vadd.f32 0.0, %v778
  %780 = vmatmul.bf16.gmra.mxu0 %v736
  %v781 = vpop.f32.mrf.mxu0
  %v782 = vadd.f32 0.0, %v781
  %v783 = vpop.f32.mrf.mxu0
  %v784 = vadd.f32 0.0, %v783
  %785 = vmatmul.bf16.gmra.mxu0 %v739
  %v786 = vpop.f32.mrf.mxu0
  %v787 = vadd.f32 0.0, %v786
  %v788 = vpop.f32.mrf.mxu0
  %v789 = vadd.f32 0.0, %v788
  %790 = vmatmul.bf16.gmra.mxu0 %v742
  %v791 = vpop.f32.mrf.mxu0
  %v792 = vadd.f32 0.0, %v791
  %v793 = vpop.f32.mrf.mxu0
  %v794 = vadd.f32 0.0, %v793
  %795 = vdwg.mxu0
  %v796 = vadd.f32 %v590, %v757
  %v797 = vadd.f32 %v591, %v759
  %v798 = vadd.f32 %v592, %v762
  %v799 = vadd.f32 %v593, %v764
  %v800 = vadd.f32 %v594, %v767
  %v801 = vadd.f32 %v595, %v769
  %v802 = vadd.f32 %v596, %v772
  %v803 = vadd.f32 %v597, %v774
  %v804 = vadd.f32 %v598, %v777
  %v805 = vadd.f32 %v599, %v779
  %v806 = vadd.f32 %v600, %v782
  %v807 = vadd.f32 %v601, %v784
  %v808 = vadd.f32 %v602, %v787
  %v809 = vadd.f32 %v603, %v789
  %v810 = vadd.f32 %v604, %v792
  %v811 = vadd.f32 %v605, %v794
  %v812 = vld [vmem:[%s4] sm:$0x1]
  %v814 = vperm.slane %v812, 0
  %v816 = vadd.f32 %v796, %v814
  %v817 = vadd.f32 %v797, %v814
  %v818 = vadd.f32 %v798, %v814
  %v819 = vadd.f32 %v799, %v814
  %v820 = vadd.f32 %v800, %v814
  %v821 = vadd.f32 %v801, %v814
  %v822 = vadd.f32 %v802, %v814
  %v823 = vadd.f32 %v803, %v814
  %v824 = vadd.f32 %v804, %v814
  %v825 = vadd.f32 %v805, %v814
  %v826 = vadd.f32 %v806, %v814
  %v827 = vadd.f32 %v807, %v814
  %v828 = vadd.f32 %v808, %v814
  %v829 = vadd.f32 %v809, %v814
  %v830 = vadd.f32 %v810, %v814
  %v831 = vadd.f32 %v811, %v814
  %v832 = vmax.f32 %v816, 0.0
  %v833 = vmax.f32 %v817, 0.0
  %v834 = vmax.f32 %v818, 0.0
  %v835 = vmax.f32 %v819, 0.0
  %v836 = vmax.f32 %v820, 0.0
  %v837 = vmax.f32 %v821, 0.0
  %v838 = vmax.f32 %v822, 0.0
  %v839 = vmax.f32 %v823, 0.0
  %v840 = vmax.f32 %v824, 0.0
  %v841 = vmax.f32 %v825, 0.0
  %v842 = vmax.f32 %v826, 0.0
  %v843 = vmax.f32 %v827, 0.0
  %v844 = vmax.f32 %v828, 0.0
  %v845 = vmax.f32 %v829, 0.0
  %v846 = vmax.f32 %v830, 0.0
  %v847 = vmax.f32 %v831, 0.0
  %848 = vst.msk [vmem:[%s5] sm:$0xff] %vm270, %v832
  %849 = vst.msk [vmem:[%s5 + $0x8] sm:$0xff] %vm270, %v833
  %850 = vst.msk [vmem:[%s5 + $0x10] sm:$0xff] %vm270, %v834
  %851 = vst.msk [vmem:[%s5 + $0x18] sm:$0xff] %vm270, %v835
  %852 = vst.msk [vmem:[%s5 + $0x20] sm:$0xff] %vm270, %v836
  %853 = vst.msk [vmem:[%s5 + $0x28] sm:$0xff] %vm270, %v837
  %854 = vst.msk [vmem:[%s5 + $0x30] sm:$0xff] %vm270, %v838
  %855 = vst.msk [vmem:[%s5 + $0x38] sm:$0xff] %vm270, %v839
  %856 = vst.msk [vmem:[%s5 + $0x40] sm:$0xff] %vm270, %v840
  %857 = vst.msk [vmem:[%s5 + $0x48] sm:$0xff] %vm270, %v841
  %858 = vst.msk [vmem:[%s5 + $0x50] sm:$0xff] %vm270, %v842
  %859 = vst.msk [vmem:[%s5 + $0x58] sm:$0xff] %vm270, %v843
  %860 = vst.msk [vmem:[%s5 + $0x60] sm:$0xff] %vm270, %v844
  %861 = vst.msk [vmem:[%s5 + $0x68] sm:$0xff] %vm270, %v845
  %862 = vst.msk [vmem:[%s5 + $0x70] sm:$0xff] %vm270, %v846
  %863 = vst.msk [vmem:[%s5 + $0x78] sm:$0xff] %vm270, %v847
  // Predicated region
  $region22: #{convblock_forward.11} parent=0 // pred_check
    _
  $region23: #{convblock_forward.11} parent=0 // pred_check_branch
    %865 = sbr.rel (0) target = $region25
  $region24: #{convblock_forward.11} parent=0 // pred_region
    _
  $region25: #{convblock_forward.11} parent=0 // pred_fallthru
    _
  // Predicated region
  $region26: #{convblock_forward.11} parent=0 // pred_check
    _
  $region27: #{convblock_forward.11} parent=0 // pred_check_branch
    %867 = sbr.rel (0) target = $region29
  $region28: #{convblock_forward.11} parent=0 // pred_region
    _
  $region29: #{convblock_forward.11} parent=0 // pred_fallthru
    _

// kernel: convblock_forward.8
$region0: #{convblock_forward.8}
  #allocation0 [shape = 'u32[]', space=smem, size = 0x4, offset = 0x4, fixed_abs, tag = 'smem constant byte address 0x4 - core index']
  #allocation1 [shape = 'u32[72,128]{1,0:T(1,128)}', space=vmem, size = 0x9000, scoped, tag = 'internal scratch']
  %s0 = inlined_call_operand.vmem [shape: bf16[32,18,24], index: 0, kind: input, shape index: {}]
  %s1 = inlined_call_operand.vmem [shape: bf16[3,24,8], index: 1, kind: input, shape index: {}]
  %s2 = inlined_call_operand.vmem [shape: f32[512,8], index: 2, kind: output, shape index: {0}]
  %s3 = inlined_call_operand.vmem [shape: f32[1,2,8], index: 3, kind: output, shape index: {1}]
  %4 = xla_tuple %s2, %s3
  %s5 = sld [smem:[#allocation0]]
  $region26: #{convblock_forward.8} parent=0
    _
  %s7 = ssub.s32 1, %s5
  %s8 = scalar_select 0, %s7, %s5
  // Predicated region
  $region2: #{convblock_forward.8} parent=0 // pred_check
    _
  $region3: #{convblock_forward.8} parent=0 // pred_check_branch
    %10 = sbr.rel (0) target = $region5
  $region4: #{convblock_forward.8} parent=0 // pred_region
    _
  $region5: #{convblock_forward.8} parent=0 // pred_fallthru
    _
  // Predicated region
  $region6: #{convblock_forward.8} parent=0 // pred_check
    _
  $region7: #{convblock_forward.8} parent=0 // pred_check_branch
    %12 = sbr.rel (0) target = $region9
  $region8: #{convblock_forward.8} parent=0 // pred_region
    _
  $region9: #{convblock_forward.8} parent=0 // pred_fallthru
    _
  %v14 = vld [vmem:[%s0] sm:$0xf]
  %v15 = vld [vmem:[%s0 + $0x4] sm:$0xf]
  %v16 = vld [vmem:[%s0 + $0x8] sm:$0x1]
  %v17 = vld [vmem:[%s0 + $0xc] sm:$0xf]
  %v18 = vld [vmem:[%s0 + $0x10] sm:$0xf]
  %v19 = vld [vmem:[%s0 + $0x14] sm:$0x1]
  %v20 = vld [vmem:[%s0 + $0x18] sm:$0xf]
  %v21 = vld [vmem:[%s0 + $0x1c] sm:$0xf]
  %v22 = vld [vmem:[%s0 + $0x20] sm:$0x1]
  %v23 = vld [vmem:[%s0 + $0x24] sm:$0xf]
  %v24 = vld [vmem:[%s0 + $0x28] sm:$0xf]
  %v25 = vld [vmem:[%s0 + $0x2c] sm:$0x1]
  %v26 = vld [vmem:[%s0 + $0x30] sm:$0xf]
  %v27 = vld [vmem:[%s0 + $0x34] sm:$0xf]
  %v28 = vld [vmem:[%s0 + $0x38] sm:$0x1]
  %v29 = vld [vmem:[%s0 + $0x3c] sm:$0xf]
  %v30 = vld [vmem:[%s0 + $0x40] sm:$0xf]
  %v31 = vld [vmem:[%s0 + $0x44] sm:$0x1]
  %v32 = vld [vmem:[%s0 + $0x48] sm:$0xf]
  %v33 = vld [vmem:[%s0 + $0x4c] sm:$0xf]
  %v34 = vld [vmem:[%s0 + $0x50] sm:$0x1]
  %v35 = vld [vmem:[%s0 + $0x54] sm:$0xf]
  %v36 = vld [vmem:[%s0 + $0x58] sm:$0xf]
  %v37 = vld [vmem:[%s0 + $0x5c] sm:$0x1]
  %v38 = vld [vmem:[%s0 + $0x60] sm:$0xf]
  %v39 = vld [vmem:[%s0 + $0x64] sm:$0xf]
  %v40 = vld [vmem:[%s0 + $0x68] sm:$0x1]
  %v41 = vld [vmem:[%s0 + $0x6c] sm:$0xf]
  %v42 = vld [vmem:[%s0 + $0x70] sm:$0xf]
  %v43 = vld [vmem:[%s0 + $0x74] sm:$0x1]
  %v44 = vld [vmem:[%s0 + $0x78] sm:$0xf]
  %v45 = vld [vmem:[%s0 + $0x7c] sm:$0xf]
  %v46 = vld [vmem:[%s0 + $0x80] sm:$0x1]
  %v47 = vld [vmem:[%s0 + $0x84] sm:$0xf]
  %v48 = vld [vmem:[%s0 + $0x88] sm:$0xf]
  %v49 = vld [vmem:[%s0 + $0x8c] sm:$0x1]
  %v50 = vld [vmem:[%s0 + $0x90] sm:$0xf]
  %v51 = vld [vmem:[%s0 + $0x94] sm:$0xf]
  %v52 = vld [vmem:[%s0 + $0x98] sm:$0x1]
  %v53 = vld [vmem:[%s0 + $0x9c] sm:$0xf]
  %v54 = vld [vmem:[%s0 + $0xa0] sm:$0xf]
  %v55 = vld [vmem:[%s0 + $0xa4] sm:$0x1]
  %v56 = vld [vmem:[%s0 + $0xa8] sm:$0xf]
  %v57 = vld [vmem:[%s0 + $0xac] sm:$0xf]
  %v58 = vld [vmem:[%s0 + $0xb0] sm:$0x1]
  %v59 = vld [vmem:[%s0 + $0xb4] sm:$0xf]
  %v60 = vld [vmem:[%s0 + $0xb8] sm:$0xf]
  %v61 = vld [vmem:[%s0 + $0xbc] sm:$0x1]
  %v62 = vld [vmem:[%s0 + $0xc0] sm:$0xf]
  %v63 = vld [vmem:[%s0 + $0xc4] sm:$0xf]
  %v64 = vld [vmem:[%s0 + $0xc8] sm:$0x1]
  %v65 = vld [vmem:[%s0 + $0xcc] sm:$0xf]
  %v66 = vld [vmem:[%s0 + $0xd0] sm:$0xf]
  %v67 = vld [vmem:[%s0 + $0xd4] sm:$0x1]
  %v68 = vld [vmem:[%s0 + $0xd8] sm:$0xf]
  %v69 = vld [vmem:[%s0 + $0xdc] sm:$0xf]
  %v70 = vld [vmem:[%s0 + $0xe0] sm:$0x1]
  %v71 = vld [vmem:[%s0 + $0xe4] sm:$0xf]
  %v72 = vld [vmem:[%s0 + $0xe8] sm:$0xf]
  %v73 = vld [vmem:[%s0 + $0xec] sm:$0x1]
  %v74 = vld [vmem:[%s0 + $0xf0] sm:$0xf]
  %v75 = vld [vmem:[%s0 + $0xf4] sm:$0xf]
  %v76 = vld [vmem:[%s0 + $0xf8] sm:$0x1]
  %v77 = vld [vmem:[%s0 + $0xfc] sm:$0xf]
  %v78 = vld [vmem:[%s0 + $0x100] sm:$0xf]
  %v79 = vld [vmem:[%s0 + $0x104] sm:$0x1]
  %v80 = vld [vmem:[%s0 + $0x108] sm:$0xf]
  %v81 = vld [vmem:[%s0 + $0x10c] sm:$0xf]
  %v82 = vld [vmem:[%s0 + $0x110] sm:$0x1]
  %v83 = vld [vmem:[%s0 + $0x114] sm:$0xf]
  %v84 = vld [vmem:[%s0 + $0x118] sm:$0xf]
  %v85 = vld [vmem:[%s0 + $0x11c] sm:$0x1]
  %v86 = vld [vmem:[%s0 + $0x120] sm:$0xf]
  %v87 = vld [vmem:[%s0 + $0x124] sm:$0xf]
  %v88 = vld [vmem:[%s0 + $0x128] sm:$0x1]
  %v89 = vld [vmem:[%s0 + $0x12c] sm:$0xf]
  %v90 = vld [vmem:[%s0 + $0x130] sm:$0xf]
  %v91 = vld [vmem:[%s0 + $0x134] sm:$0x1]
  %v92 = vld [vmem:[%s0 + $0x138] sm:$0xf]
  %v93 = vld [vmem:[%s0 + $0x13c] sm:$0xf]
  %v94 = vld [vmem:[%s0 + $0x140] sm:$0x1]
  %v95 = vld [vmem:[%s0 + $0x144] sm:$0xf]
  %v96 = vld [vmem:[%s0 + $0x148] sm:$0xf]
  %v97 = vld [vmem:[%s0 + $0x14c] sm:$0x1]
  %v98 = vld [vmem:[%s0 + $0x150] sm:$0xf]
  %v99 = vld [vmem:[%s0 + $0x154] sm:$0xf]
  %v100 = vld [vmem:[%s0 + $0x158] sm:$0x1]
  %v101 = vld [vmem:[%s0 + $0x15c] sm:$0xf]
  %v102 = vld [vmem:[%s0 + $0x160] sm:$0xf]
  %v103 = vld [vmem:[%s0 + $0x164] sm:$0x1]
  %v104 = vld [vmem:[%s0 + $0x168] sm:$0xf]
  %v105 = vld [vmem:[%s0 + $0x16c] sm:$0xf]
  %v106 = vld [vmem:[%s0 + $0x170] sm:$0x1]
  %v107 = vld [vmem:[%s0 + $0x174] sm:$0xf]
  %v108 = vld [vmem:[%s0 + $0x178] sm:$0xf]
  %v109 = vld [vmem:[%s0 + $0x17c] sm:$0x1]
  %v110 = vunpack.c.l.bf16 %v14
  %v111 = vunpack.c.l.bf16 %v15
  %v112 = vunpack.c.l.bf16 %v16
  %v113 = vunpack.c.l.bf16 %v17
  %v114 = vunpack.c.l.bf16 %v18
  %v115 = vunpack.c.l.bf16 %v19
  %v116 = vunpack.c.l.bf16 %v20
  %v117 = vunpack.c.l.bf16 %v21
  %v118 = vunpack.c.l.bf16 %v22
  %v119 = vunpack.c.l.bf16 %v23
  %v120 = vunpack.c.l.bf16 %v24
  %v121 = vunpack.c.l.bf16 %v25
  %v122 = vunpack.c.l.bf16 %v26
  %v123 = vunpack.c.l.bf16 %v27
  %v124 = vunpack.c.l.bf16 %v28
  %v125 = vunpack.c.l.bf16 %v29
  %v126 = vunpack.c.l.bf16 %v30
  %v127 = vunpack.c.l.bf16 %v31
  %v128 = vunpack.c.l.bf16 %v32
  %v129 = vunpack.c.l.bf16 %v33
  %v130 = vunpack.c.l.bf16 %v34
  %v131 = vunpack.c.l.bf16 %v35
  %v132 = vunpack.c.l.bf16 %v36
  %v133 = vunpack.c.l.bf16 %v37
  %v134 = vunpack.c.l.bf16 %v38
  %v135 = vunpack.c.l.bf16 %v39
  %v136 = vunpack.c.l.bf16 %v40
  %v137 = vunpack.c.l.bf16 %v41
  %v138 = vunpack.c.l.bf16 %v42
  %v139 = vunpack.c.l.bf16 %v43
  %v140 = vunpack.c.l.bf16 %v44
  %v141 = vunpack.c.l.bf16 %v45
  %v142 = vunpack.c.l.bf16 %v46
  %v143 = vunpack.c.l.bf16 %v47
  %v144 = vunpack.c.l.bf16 %v48
  %v145 = vunpack.c.l.bf16 %v49
  %v146 = vunpack.c.l.bf16 %v50
  %v147 = vunpack.c.l.bf16 %v51
  %v148 = vunpack.c.l.bf16 %v52
  %v149 = vunpack.c.l.bf16 %v53
  %v150 = vunpack.c.l.bf16 %v54
  %v151 = vunpack.c.l.bf16 %v55
  %v152 = vunpack.c.l.bf16 %v56
  %v153 = vunpack.c.l.bf16 %v57
  %v154 = vunpack.c.l.bf16 %v58
  %v155 = vunpack.c.l.bf16 %v59
  %v156 = vunpack.c.l.bf16 %v60
  %v157 = vunpack.c.l.bf16 %v61
  %v158 = vunpack.c.l.bf16 %v62
  %v159 = vunpack.c.l.bf16 %v63
  %v160 = vunpack.c.l.bf16 %v64
  %v161 = vunpack.c.l.bf16 %v65
  %v162 = vunpack.c.l.bf16 %v66
  %v163 = vunpack.c.l.bf16 %v67
  %v164 = vunpack.c.l.bf16 %v68
  %v165 = vunpack.c.l.bf16 %v69
  %v166 = vunpack.c.l.bf16 %v70
  %v167 = vunpack.c.l.bf16 %v71
  %v168 = vunpack.c.l.bf16 %v72
  %v169 = vunpack.c.l.bf16 %v73
  %v170 = vunpack.c.l.bf16 %v74
  %v171 = vunpack.c.l.bf16 %v75
  %v172 = vunpack.c.l.bf16 %v76
  %v173 = vunpack.c.l.bf16 %v77
  %v174 = vunpack.c.l.bf16 %v78
  %v175 = vunpack.c.l.bf16 %v79
  %v176 = vunpack.c.l.bf16 %v80
  %v177 = vunpack.c.l.bf16 %v81
  %v178 = vunpack.c.l.bf16 %v82
  %v179 = vunpack.c.l.bf16 %v83
  %v180 = vunpack.c.l.bf16 %v84
  %v181 = vunpack.c.l.bf16 %v85
  %v182 = vunpack.c.l.bf16 %v86
  %v183 = vunpack.c.l.bf16 %v87
  %v184 = vunpack.c.l.bf16 %v88
  %v185 = vunpack.c.l.bf16 %v89
  %v186 = vunpack.c.l.bf16 %v90
  %v187 = vunpack.c.l.bf16 %v91
  %v188 = vunpack.c.l.bf16 %v92
  %v189 = vunpack.c.l.bf16 %v93
  %v190 = vunpack.c.l.bf16 %v94
  %v191 = vunpack.c.l.bf16 %v95
  %v192 = vunpack.c.l.bf16 %v96
  %v193 = vunpack.c.l.bf16 %v97
  %v194 = vunpack.c.l.bf16 %v98
  %v195 = vunpack.c.l.bf16 %v99
  %v196 = vunpack.c.l.bf16 %v100
  %v197 = vunpack.c.l.bf16 %v101
  %v198 = vunpack.c.l.bf16 %v102
  %v199 = vunpack.c.l.bf16 %v103
  %v200 = vunpack.c.l.bf16 %v104
  %v201 = vunpack.c.l.bf16 %v105
  %v202 = vunpack.c.l.bf16 %v106
  %v203 = vunpack.c.l.bf16 %v107
  %v204 = vunpack.c.l.bf16 %v108
  %v205 = vunpack.c.l.bf16 %v109
  %v206 = vpack.c.bf16 %v111, %v110
  %v207 = vpack.c.bf16 %v114, %v113
  %v208 = vpack.c.bf16 %v117, %v116
  %v209 = vpack.c.bf16 %v120, %v119
  %v210 = vpack.c.bf16 %v123, %v122
  %v211 = vpack.c.bf16 %v126, %v125
  %v212 = vpack.c.bf16 %v129, %v128
  %v213 = vpack.c.bf16 %v132, %v131
  %v214 = vpack.c.bf16 %v135, %v134
  %v215 = vpack.c.bf16 %v138, %v137
  %v216 = vpack.c.bf16 %v141, %v140
  %v217 = vpack.c.bf16 %v144, %v143
  %v218 = vpack.c.bf16 %v147, %v146
  %v219 = vpack.c.bf16 %v150, %v149
  %v220 = vpack.c.bf16 %v153, %v152
  %v221 = vpack.c.bf16 %v156, %v155
  %v222 = vpack.c.bf16 %v159, %v158
  %v223 = vpack.c.bf16 %v162, %v161
  %v224 = vpack.c.bf16 %v165, %v164
  %v225 = vpack.c.bf16 %v168, %v167
  %v226 = vpack.c.bf16 %v171, %v170
  %v227 = vpack.c.bf16 %v174, %v173
  %v228 = vpack.c.bf16 %v177, %v176
  %v229 = vpack.c.bf16 %v180, %v179
  %v230 = vpack.c.bf16 %v183, %v182
  %v231 = vpack.c.bf16 %v186, %v185
  %v232 = vpack.c.bf16 %v189, %v188
  %v233 = vpack.c.bf16 %v192, %v191
  %v234 = vpack.c.bf16 %v195, %v194
  %v235 = vpack.c.bf16 %v198, %v197
  %v236 = vpack.c.bf16 %v201, %v200
  %v237 = vpack.c.bf16 %v204, %v203
  %v238 = vld [vmem:[%s1] sm:$0xf]
  %v239 = vld [vmem:[%s1 + $0x4] sm:$0xf]
  %v240 = vld [vmem:[%s1 + $0x8] sm:$0xf]
  %vm337 = vcmask 1046528
  %v338 = vrot.slane %v110, 1
  %v339 = vrot.slane %v111, 1
  %v340 = vsel %vm337, %v338, %v339
  %v341 = vrot.slane %v112, 1
  %v342 = vsel %vm337, %v339, %v341
  %v343 = vrot.slane %v113, 1
  %v344 = vrot.slane %v114, 1
  %v345 = vsel %vm337, %v343, %v344
  %v346 = vrot.slane %v115, 1
  %v347 = vsel %vm337, %v344, %v346
  %v348 = vrot.slane %v116, 1
  %v349 = vrot.slane %v117, 1
  %v350 = vsel %vm337, %v348, %v349
  %v351 = vrot.slane %v118, 1
  %v352 = vsel %vm337, %v349, %v351
  %v353 = vrot.slane %v119, 1
  %v354 = vrot.slane %v120, 1
  %v355 = vsel %vm337, %v353, %v354
  %v356 = vrot.slane %v121, 1
  %v357 = vsel %vm337, %v354, %v356
  %v358 = vrot.slane %v122, 1
  %v359 = vrot.slane %v123, 1
  %v360 = vsel %vm337, %v358, %v359
  %v361 = vrot.slane %v124, 1
  %v362 = vsel %vm337, %v359, %v361
  %v363 = vrot.slane %v125, 1
  %v364 = vrot.slane %v126, 1
  %v365 = vsel %vm337, %v363, %v364
  %v366 = vrot.slane %v127, 1
  %v367 = vsel %vm337, %v364, %v366
  %v368 = vrot.slane %v128, 1
  %v369 = vrot.slane %v129, 1
  %v370 = vsel %vm337, %v368, %v369
  %v371 = vrot.slane %v130, 1
  %v372 = vsel %vm337, %v369, %v371
  %v373 = vrot.slane %v131, 1
  %v374 = vrot.slane %v132, 1
  %v375 = vsel %vm337, %v373, %v374
  %v376 = vrot.slane %v133, 1
  %v377 = vsel %vm337, %v374, %v376
  %v378 = vrot.slane %v134, 1
  %v379 = vrot.slane %v135, 1
  %v380 = vsel %vm337, %v378, %v379
  %v381 = vrot.slane %v136, 1
  %v382 = vsel %vm337, %v379, %v381
  %v383 = vrot.slane %v137, 1
  %v384 = vrot.slane %v138, 1
  %v385 = vsel %vm337, %v383, %v384
  %v386 = vrot.slane %v139, 1
  %v387 = vsel %vm337, %v384, %v386
  %v388 = vrot.slane %v140, 1
  %v389 = vrot.slane %v141, 1
  %v390 = vsel %vm337, %v388, %v389
  %v391 = vrot.slane %v142, 1
  %v392 = vsel %vm337, %v389, %v391
  %v393 = vrot.slane %v143, 1
  %v394 = vrot.slane %v144, 1
  %v395 = vsel %vm337, %v393, %v394
  %v396 = vrot.slane %v145, 1
  %v397 = vsel %vm337, %v394, %v396
  %v398 = vrot.slane %v146, 1
  %v399 = vrot.slane %v147, 1
  %v400 = vsel %vm337, %v398, %v399
  %v401 = vrot.slane %v148, 1
  %v402 = vsel %vm337, %v399, %v401
  %v403 = vrot.slane %v149, 1
  %v404 = vrot.slane %v150, 1
  %v405 = vsel %vm337, %v403, %v404
  %v406 = vrot.slane %v151, 1
  %v407 = vsel %vm337, %v404, %v406
  %v408 = vrot.slane %v152, 1
  %v409 = vrot.slane %v153, 1
  %v410 = vsel %vm337, %v408, %v409
  %v411 = vrot.slane %v154, 1
  %v412 = vsel %vm337, %v409, %v411
  %v413 = vrot.slane %v155, 1
  %v414 = vrot.slane %v156, 1
  %v415 = vsel %vm337, %v413, %v414
  %v416 = vrot.slane %v157, 1
  %v417 = vsel %vm337, %v414, %v416
  %v418 = vrot.slane %v158, 1
  %v419 = vrot.slane %v159, 1
  %v420 = vsel %vm337, %v418, %v419
  %v421 = vrot.slane %v160, 1
  %v422 = vsel %vm337, %v419, %v421
  %v423 = vrot.slane %v161, 1
  %v424 = vrot.slane %v162, 1
  %v425 = vsel %vm337, %v423, %v424
  %v426 = vrot.slane %v163, 1
  %v427 = vsel %vm337, %v424, %v426
  %v428 = vrot.slane %v164, 1
  %v429 = vrot.slane %v165, 1
  %v430 = vsel %vm337, %v428, %v429
  %v431 = vrot.slane %v166, 1
  %v432 = vsel %vm337, %v429, %v431
  %v433 = vrot.slane %v167, 1
  %v434 = vrot.slane %v168, 1
  %v435 = vsel %vm337, %v433, %v434
  %v436 = vrot.slane %v169, 1
  %v437 = vsel %vm337, %v434, %v436
  %v438 = vrot.slane %v170, 1
  %v439 = vrot.slane %v171, 1
  %v440 = vsel %vm337, %v438, %v439
  %v441 = vrot.slane %v172, 1
  %v442 = vsel %vm337, %v439, %v441
  %v443 = vrot.slane %v173, 1
  %v444 = vrot.slane %v174, 1
  %v445 = vsel %vm337, %v443, %v444
  %v446 = vrot.slane %v175, 1
  %v447 = vsel %vm337, %v444, %v446
  %v448 = vrot.slane %v176, 1
  %v449 = vrot.slane %v177, 1
  %v450 = vsel %vm337, %v448, %v449
  %v451 = vrot.slane %v178, 1
  %v452 = vsel %vm337, %v449, %v451
  %v453 = vrot.slane %v179, 1
  %v454 = vrot.slane %v180, 1
  %v455 = vsel %vm337, %v453, %v454
  %v456 = vrot.slane %v181, 1
  %v457 = vsel %vm337, %v454, %v456
  %v458 = vrot.slane %v182, 1
  %v459 = vrot.slane %v183, 1
  %v460 = vsel %vm337, %v458, %v459
  %v461 = vrot.slane %v184, 1
  %v462 = vsel %vm337, %v459, %v461
  %v463 = vrot.slane %v185, 1
  %v464 = vrot.slane %v186, 1
  %v465 = vsel %vm337, %v463, %v464
  %v466 = vrot.slane %v187, 1
  %v467 = vsel %vm337, %v464, %v466
  %v468 = vrot.slane %v188, 1
  %v469 = vrot.slane %v189, 1
  %v470 = vsel %vm337, %v468, %v469
  %v471 = vrot.slane %v190, 1
  %v472 = vsel %vm337, %v469, %v471
  %v473 = vrot.slane %v191, 1
  %v474 = vrot.slane %v192, 1
  %v475 = vsel %vm337, %v473, %v474
  %v476 = vrot.slane %v193, 1
  %v477 = vsel %vm337, %v474, %v476
  %v478 = vrot.slane %v194, 1
  %v479 = vrot.slane %v195, 1
  %v480 = vsel %vm337, %v478, %v479
  %v481 = vrot.slane %v196, 1
  %v482 = vsel %vm337, %v479, %v481
  %v483 = vrot.slane %v197, 1
  %v484 = vrot.slane %v198, 1
  %v485 = vsel %vm337, %v483, %v484
  %v486 = vrot.slane %v199, 1
  %v487 = vsel %vm337, %v484, %v486
  %v488 = vrot.slane %v200, 1
  %v489 = vrot.slane %v201, 1
  %v490 = vsel %vm337, %v488, %v489
  %v491 = vrot.slane %v202, 1
  %v492 = vsel %vm337, %v489, %v491
  %v493 = vrot.slane %v203, 1
  %v494 = vrot.slane %v204, 1
  %v495 = vsel %vm337, %v493, %v494
  %v496 = vrot.slane %v205, 1
  %v497 = vsel %vm337, %v494, %v496
  %v562 = vpack.c.bf16 %v342, %v340
  %v563 = vpack.c.bf16 %v347, %v345
  %v564 = vpack.c.bf16 %v352, %v350
  %v565 = vpack.c.bf16 %v357, %v355
  %v566 = vpack.c.bf16 %v362, %v360
  %v567 = vpack.c.bf16 %v367, %v365
  %v568 = vpack.c.bf16 %v372, %v370
  %v569 = vpack.c.bf16 %v377, %v375
  %v570 = vpack.c.bf16 %v382, %v380
  %v571 = vpack.c.bf16 %v387, %v385
  %v572 = vpack.c.bf16 %v392, %v390
  %v573 = vpack.c.bf16 %v397, %v395
  %v574 = vpack.c.bf16 %v402, %v400
  %v575 = vpack.c.bf16 %v407, %v405
  %v576 = vpack.c.bf16 %v412, %v410
  %v577 = vpack.c.bf16 %v417, %v415
  %v578 = vpack.c.bf16 %v422, %v420
  %v579 = vpack.c.bf16 %v427, %v425
  %v580 = vpack.c.bf16 %v432, %v430
  %v581 = vpack.c.bf16 %v437, %v435
  %v582 = vpack.c.bf16 %v442, %v440
  %v583 = vpack.c.bf16 %v447, %v445
  %v584 = vpack.c.bf16 %v452, %v450
  %v585 = vpack.c.bf16 %v457, %v455
  %v586 = vpack.c.bf16 %v462, %v460
  %v587 = vpack.c.bf16 %v467, %v465
  %v588 = vpack.c.bf16 %v472, %v470
  %v589 = vpack.c.bf16 %v477, %v475
  %v590 = vpack.c.bf16 %v482, %v480
  %v591 = vpack.c.bf16 %v487, %v485
  %v592 = vpack.c.bf16 %v492, %v490
  %v593 = vpack.c.bf16 %v497, %v495
  %s594 = scalar_lea.vmem %s1, 12
  %v595 = vld [vmem:[%s594] sm:$0xf]
  %v596 = vld [vmem:[%s594 + $0x4] sm:$0xf]
  %v597 = vld [vmem:[%s594 + $0x8] sm:$0xf]
  %v601 = vunpack.c.l.b16 %v595
  %v602 = vunpack.c.l.b16 %v596
  %v603 = vunpack.c.l.b16 %v597
  %v604 = vpack.c.b16 %v602, %v601
  %v605 = vpack.c.b16 %v603, %v603
  %vm607 = vcmask 195584
  %v609 = vsel %vm607, %v562, 0
  %v612 = vsel %vm607, %v563, 0
  %v615 = vsel %vm607, %v564, 0
  %v618 = vsel %vm607, %v565, 0
  %v621 = vsel %vm607, %v566, 0
  %v624 = vsel %vm607, %v567, 0
  %v627 = vsel %vm607, %v568, 0
  %v630 = vsel %vm607, %v569, 0
  %v633 = vsel %vm607, %v570, 0
  %v636 = vsel %vm607, %v571, 0
  %v639 = vsel %vm607, %v572, 0
  %v642 = vsel %vm607, %v573, 0
  %v645 = vsel %vm607, %v574, 0
  %v648 = vsel %vm607, %v575, 0
  %v651 = vsel %vm607, %v576, 0
  %v654 = vsel %vm607, %v577, 0
  %v657 = vsel %vm607, %v578, 0
  %v660 = vsel %vm607, %v579, 0
  %v663 = vsel %vm607, %v580, 0
  %v666 = vsel %vm607, %v581, 0
  %v669 = vsel %vm607, %v582, 0
  %v672 = vsel %vm607, %v583, 0
  %v675 = vsel %vm607, %v584, 0
  %v678 = vsel %vm607, %v585, 0
  %v681 = vsel %vm607, %v586, 0
  %v684 = vsel %vm607, %v587, 0
  %v687 = vsel %vm607, %v588, 0
  %v690 = vsel %vm607, %v589, 0
  %v693 = vsel %vm607, %v590, 0
  %v696 = vsel %vm607, %v591, 0
  %v699 = vsel %vm607, %v592, 0
  %v702 = vsel %vm607, %v593, 0
  %vm704 = vcmask 1043456
  %v706 = vsel %vm704, %v605, 0
  %708 = vmatpush.bf16.msra.mxu0 0
  %709 = vmatpush.bf16.msra.mxu0 0
  %710 = vmatpush.bf16.msra.mxu0 0
  %711 = vmatpush.bf16.msra.mxu0 0
  %712 = vmatpush.bf16.msra.mxu0 0
  %713 = vmatpush.bf16.msra.mxu0 0
  %714 = vmatpush.bf16.msra.mxu0 %v706
  %715 = vmatpush.bf16.msra.mxu0 %v604
  %716 = vmatmul.bf16.gmra.mxu0 %v609
  %v717 = vpop.f32.mrf.mxu0
  %v718 = vadd.f32 0.0, %v717
  %v719 = vpop.f32.mrf.mxu0
  %v720 = vadd.f32 0.0, %v719
  %721 = vmatmul.bf16.gmra.mxu0 %v612
  %v722 = vpop.f32.mrf.mxu0
  %v723 = vadd.f32 0.0, %v722
  %v724 = vpop.f32.mrf.mxu0
  %v725 = vadd.f32 0.0, %v724
  %726 = vmatmul.bf16.gmra.mxu0 %v615
  %v727 = vpop.f32.mrf.mxu0
  %v728 = vadd.f32 0.0, %v727
  %v729 = vpop.f32.mrf.mxu0
  %v730 = vadd.f32 0.0, %v729
  %731 = vmatmul.bf16.gmra.mxu0 %v618
  %v732 = vpop.f32.mrf.mxu0
  %v733 = vadd.f32 0.0, %v732
  %v734 = vpop.f32.mrf.mxu0
  %v735 = vadd.f32 0.0, %v734
  %736 = vmatmul.bf16.gmra.mxu0 %v621
  %v737 = vpop.f32.mrf.mxu0
  %v738 = vadd.f32 0.0, %v737
  %v739 = vpop.f32.mrf.mxu0
  %v740 = vadd.f32 0.0, %v739
  %741 = vmatmul.bf16.gmra.mxu0 %v624
  %v742 = vpop.f32.mrf.mxu0
  %v743 = vadd.f32 0.0, %v742
  %v744 = vpop.f32.mrf.mxu0
  %v745 = vadd.f32 0.0, %v744
  %746 = vmatmul.bf16.gmra.mxu0 %v627
  %v747 = vpop.f32.mrf.mxu0
  %v748 = vadd.f32 0.0, %v747
  %v749 = vpop.f32.mrf.mxu0
  %v750 = vadd.f32 0.0, %v749
  %751 = vmatmul.bf16.gmra.mxu0 %v630
  %v752 = vpop.f32.mrf.mxu0
  %v753 = vadd.f32 0.0, %v752
  %v754 = vpop.f32.mrf.mxu0
  %v755 = vadd.f32 0.0, %v754
  %756 = vmatmul.bf16.gmra.mxu0 %v633
  %v757 = vpop.f32.mrf.mxu0
  %v758 = vadd.f32 0.0, %v757
  %v759 = vpop.f32.mrf.mxu0
  %v760 = vadd.f32 0.0, %v759
  %761 = vmatmul.bf16.gmra.mxu0 %v636
  %v762 = vpop.f32.mrf.mxu0
  %v763 = vadd.f32 0.0, %v762
  %v764 = vpop.f32.mrf.mxu0
  %v765 = vadd.f32 0.0, %v764
  %766 = vmatmul.bf16.gmra.mxu0 %v639
  %v767 = vpop.f32.mrf.mxu0
  %v768 = vadd.f32 0.0, %v767
  %v769 = vpop.f32.mrf.mxu0
  %v770 = vadd.f32 0.0, %v769
  %771 = vmatmul.bf16.gmra.mxu0 %v642
  %v772 = vpop.f32.mrf.mxu0
  %v773 = vadd.f32 0.0, %v772
  %v774 = vpop.f32.mrf.mxu0
  %v775 = vadd.f32 0.0, %v774
  %776 = vmatmul.bf16.gmra.mxu0 %v645
  %v777 = vpop.f32.mrf.mxu0
  %v778 = vadd.f32 0.0, %v777
  %v779 = vpop.f32.mrf.mxu0
  %v780 = vadd.f32 0.0, %v779
  %781 = vmatmul.bf16.gmra.mxu0 %v648
  %v782 = vpop.f32.mrf.mxu0
  %v783 = vadd.f32 0.0, %v782
  %v784 = vpop.f32.mrf.mxu0
  %v785 = vadd.f32 0.0, %v784
  %786 = vmatmul.bf16.gmra.mxu0 %v651
  %v787 = vpop.f32.mrf.mxu0
  %v788 = vadd.f32 0.0, %v787
  %v789 = vpop.f32.mrf.mxu0
  %v790 = vadd.f32 0.0, %v789
  %791 = vmatmul.bf16.gmra.mxu0 %v654
  %v792 = vpop.f32.mrf.mxu0
  %v793 = vadd.f32 0.0, %v792
  %v794 = vpop.f32.mrf.mxu0
  %v795 = vadd.f32 0.0, %v794
  %796 = vmatmul.bf16.gmra.mxu0 %v657
  %v797 = vpop.f32.mrf.mxu0
  %v798 = vadd.f32 0.0, %v797
  %v799 = vpop.f32.mrf.mxu0
  %v800 = vadd.f32 0.0, %v799
  %801 = vmatmul.bf16.gmra.mxu0 %v660
  %v802 = vpop.f32.mrf.mxu0
  %v803 = vadd.f32 0.0, %v802
  %v804 = vpop.f32.mrf.mxu0
  %v805 = vadd.f32 0.0, %v804
  %806 = vmatmul.bf16.gmra.mxu0 %v663
  %v807 = vpop.f32.mrf.mxu0
  %v808 = vadd.f32 0.0, %v807
  %v809 = vpop.f32.mrf.mxu0
  %v810 = vadd.f32 0.0, %v809
  %811 = vmatmul.bf16.gmra.mxu0 %v666
  %v812 = vpop.f32.mrf.mxu0
  %v813 = vadd.f32 0.0, %v812
  %v814 = vpop.f32.mrf.mxu0
  %v815 = vadd.f32 0.0, %v814
  %816 = vmatmul.bf16.gmra.mxu0 %v669
  %v817 = vpop.f32.mrf.mxu0
  %v818 = vadd.f32 0.0, %v817
  %v819 = vpop.f32.mrf.mxu0
  %v820 = vadd.f32 0.0, %v819
  %821 = vmatmul.bf16.gmra.mxu0 %v672
  %v822 = vpop.f32.mrf.mxu0
  %v823 = vadd.f32 0.0, %v822
  %v824 = vpop.f32.mrf.mxu0
  %v825 = vadd.f32 0.0, %v824
  %826 = vmatmul.bf16.gmra.mxu0 %v675
  %v827 = vpop.f32.mrf.mxu0
  %v828 = vadd.f32 0.0, %v827
  %v829 = vpop.f32.mrf.mxu0
  %v830 = vadd.f32 0.0, %v829
  %831 = vmatmul.bf16.gmra.mxu0 %v678
  %v832 = vpop.f32.mrf.mxu0
  %v833 = vadd.f32 0.0, %v832
  %v834 = vpop.f32.mrf.mxu0
  %v835 = vadd.f32 0.0, %v834
  %836 = vmatmul.bf16.gmra.mxu0 %v681
  %v837 = vpop.f32.mrf.mxu0
  %v838 = vadd.f32 0.0, %v837
  %v839 = vpop.f32.mrf.mxu0
  %v840 = vadd.f32 0.0, %v839
  %841 = vmatmul.bf16.gmra.mxu0 %v684
  %v842 = vpop.f32.mrf.mxu0
  %v843 = vadd.f32 0.0, %v842
  %v844 = vpop.f32.mrf.mxu0
  %v845 = vadd.f32 0.0, %v844
  %846 = vmatmul.bf16.gmra.mxu0 %v687
  %v847 = vpop.f32.mrf.mxu0
  %v848 = vadd.f32 0.0, %v847
  %v849 = vpop.f32.mrf.mxu0
  %v850 = vadd.f32 0.0, %v849
  %851 = vmatmul.bf16.gmra.mxu0 %v690
  %v852 = vpop.f32.mrf.mxu0
  %v853 = vadd.f32 0.0, %v852
  %v854 = vpop.f32.mrf.mxu0
  %v855 = vadd.f32 0.0, %v854
  %856 = vmatmul.bf16.gmra.mxu0 %v693
  %v857 = vpop.f32.mrf.mxu0
  %v858 = vadd.f32 0.0, %v857
  %v859 = vpop.f32.mrf.mxu0
  %v860 = vadd.f32 0.0, %v859
  %861 = vmatmul.bf16.gmra.mxu0 %v696
  %v862 = vpop.f32.mrf.mxu0
  %v863 = vadd.f32 0.0, %v862
  %v864 = vpop.f32.mrf.mxu0
  %v865 = vadd.f32 0.0, %v864
  %866 = vmatmul.bf16.gmra.mxu0 %v699
  %v867 = vpop.f32.mrf.mxu0
  %v868 = vadd.f32 0.0, %v867
  %v869 = vpop.f32.mrf.mxu0
  %v870 = vadd.f32 0.0, %v869
  %871 = vmatmul.bf16.gmra.mxu0 %v702
  %v872 = vpop.f32.mrf.mxu0
  %v873 = vadd.f32 0.0, %v872
  %v874 = vpop.f32.mrf.mxu0
  %v875 = vadd.f32 0.0, %v874
  %876 = vdwg.mxu0
  %v880 = vunpack.c.l.b16 %v238
  %v881 = vunpack.c.l.b16 %v239
  %v882 = vunpack.c.l.b16 %v240
  %v883 = vpack.c.b16 %v881, %v880
  %v884 = vpack.c.b16 %v882, %v882
  %v887 = vsel %vm607, %v206, 0
  %v890 = vsel %vm607, %v207, 0
  %v893 = vsel %vm607, %v208, 0
  %v896 = vsel %vm607, %v209, 0
  %v899 = vsel %vm607, %v210, 0
  %v902 = vsel %vm607, %v211, 0
  %v905 = vsel %vm607, %v212, 0
  %v908 = vsel %vm607, %v213, 0
  %v911 = vsel %vm607, %v214, 0
  %v914 = vsel %vm607, %v215, 0
  %v917 = vsel %vm607, %v216, 0
  %v920 = vsel %vm607, %v217, 0
  %v923 = vsel %vm607, %v218, 0
  %v926 = vsel %vm607, %v219, 0
  %v929 = vsel %vm607, %v220, 0
  %v932 = vsel %vm607, %v221, 0
  %v935 = vsel %vm607, %v222, 0
  %v938 = vsel %vm607, %v223, 0
  %v941 = vsel %vm607, %v224, 0
  %v944 = vsel %vm607, %v225, 0
  %v947 = vsel %vm607, %v226, 0
  %v950 = vsel %vm607, %v227, 0
  %v953 = vsel %vm607, %v228, 0
  %v956 = vsel %vm607, %v229, 0
  %v959 = vsel %vm607, %v230, 0
  %v962 = vsel %vm607, %v231, 0
  %v965 = vsel %vm607, %v232, 0
  %v968 = vsel %vm607, %v233, 0
  %v971 = vsel %vm607, %v234, 0
  %v974 = vsel %vm607, %v235, 0
  %v977 = vsel %vm607, %v236, 0
  %v980 = vsel %vm607, %v237, 0
  %v983 = vsel %vm704, %v884, 0
  %985 = vmatpush.bf16.msra.mxu0 0
  %986 = vmatpush.bf16.msra.mxu0 0
  %987 = vmatpush.bf16.msra.mxu0 0
  %988 = vmatpush.bf16.msra.mxu0 0
  %989 = vmatpush.bf16.msra.mxu0 0
  %990 = vmatpush.bf16.msra.mxu0 0
  %991 = vmatpush.bf16.msra.mxu0 %v983
  %992 = vmatpush.bf16.msra.mxu0 %v883
  %993 = vmatmul.bf16.gmra.mxu0 %v887
  %v994 = vpop.f32.mrf.mxu0
  %v995 = vadd.f32 %v718, %v994
  %v996 = vpop.f32.mrf.mxu0
  %v997 = vadd.f32 %v720, %v996
  %998 = vmatmul.bf16.gmra.mxu0 %v890
  %v999 = vpop.f32.mrf.mxu0
  %v1000 = vadd.f32 %v723, %v999
  %v1001 = vpop.f32.mrf.mxu0
  %v1002 = vadd.f32 %v725, %v1001
  %1003 = vmatmul.bf16.gmra.mxu0 %v893
  %v1004 = vpop.f32.mrf.mxu0
  %v1005 = vadd.f32 %v728, %v1004
  %v1006 = vpop.f32.mrf.mxu0
  %v1007 = vadd.f32 %v730, %v1006
  %1008 = vmatmul.bf16.gmra.mxu0 %v896
  %v1009 = vpop.f32.mrf.mxu0
  %v1010 = vadd.f32 %v733, %v1009
  %v1011 = vpop.f32.mrf.mxu0
  %v1012 = vadd.f32 %v735, %v1011
  %1013 = vmatmul.bf16.gmra.mxu0 %v899
  %v1014 = vpop.f32.mrf.mxu0
  %v1015 = vadd.f32 %v738, %v1014
  %v1016 = vpop.f32.mrf.mxu0
  %v1017 = vadd.f32 %v740, %v1016
  %1018 = vmatmul.bf16.gmra.mxu0 %v902
  %v1019 = vpop.f32.mrf.mxu0
  %v1020 = vadd.f32 %v743, %v1019
  %v1021 = vpop.f32.mrf.mxu0
  %v1022 = vadd.f32 %v745, %v1021
  %1023 = vmatmul.bf16.gmra.mxu0 %v905
  %v1024 = vpop.f32.mrf.mxu0
  %v1025 = vadd.f32 %v748, %v1024
  %v1026 = vpop.f32.mrf.mxu0
  %v1027 = vadd.f32 %v750, %v1026
  %1028 = vmatmul.bf16.gmra.mxu0 %v908
  %v1029 = vpop.f32.mrf.mxu0
  %v1030 = vadd.f32 %v753, %v1029
  %v1031 = vpop.f32.mrf.mxu0
  %v1032 = vadd.f32 %v755, %v1031
  %1033 = vmatmul.bf16.gmra.mxu0 %v911
  %v1034 = vpop.f32.mrf.mxu0
  %v1035 = vadd.f32 %v758, %v1034
  %v1036 = vpop.f32.mrf.mxu0
  %v1037 = vadd.f32 %v760, %v1036
  %1038 = vmatmul.bf16.gmra.mxu0 %v914
  %v1039 = vpop.f32.mrf.mxu0
  %v1040 = vadd.f32 %v763, %v1039
  %v1041 = vpop.f32.mrf.mxu0
  %v1042 = vadd.f32 %v765, %v1041
  %1043 = vmatmul.bf16.gmra.mxu0 %v917
  %v1044 = vpop.f32.mrf.mxu0
  %v1045 = vadd.f32 %v768, %v1044
  %v1046 = vpop.f32.mrf.mxu0
  %v1047 = vadd.f32 %v770, %v1046
  %1048 = vmatmul.bf16.gmra.mxu0 %v920
  %v1049 = vpop.f32.mrf.mxu0
  %v1050 = vadd.f32 %v773, %v1049
  %v1051 = vpop.f32.mrf.mxu0
  %v1052 = vadd.f32 %v775, %v1051
  %1053 = vmatmul.bf16.gmra.mxu0 %v923
  %v1054 = vpop.f32.mrf.mxu0
  %v1055 = vadd.f32 %v778, %v1054
  %v1056 = vpop.f32.mrf.mxu0
  %v1057 = vadd.f32 %v780, %v1056
  %1058 = vmatmul.bf16.gmra.mxu0 %v926
  %v1059 = vpop.f32.mrf.mxu0
  %v1060 = vadd.f32 %v783, %v1059
  %v1061 = vpop.f32.mrf.mxu0
  %v1062 = vadd.f32 %v785, %v1061
  %1063 = vmatmul.bf16.gmra.mxu0 %v929
  %v1064 = vpop.f32.mrf.mxu0
  %v1065 = vadd.f32 %v788, %v1064
  %v1066 = vpop.f32.mrf.mxu0
  %v1067 = vadd.f32 %v790, %v1066
  %1068 = vmatmul.bf16.gmra.mxu0 %v932
  %v1069 = vpop.f32.mrf.mxu0
  %v1070 = vadd.f32 %v793, %v1069
  %v1071 = vpop.f32.mrf.mxu0
  %v1072 = vadd.f32 %v795, %v1071
  %1073 = vmatmul.bf16.gmra.mxu0 %v935
  %v1074 = vpop.f32.mrf.mxu0
  %v1075 = vadd.f32 %v798, %v1074
  %v1076 = vpop.f32.mrf.mxu0
  %v1077 = vadd.f32 %v800, %v1076
  %1078 = vmatmul.bf16.gmra.mxu0 %v938
  %v1079 = vpop.f32.mrf.mxu0
  %v1080 = vadd.f32 %v803, %v1079
  %v1081 = vpop.f32.mrf.mxu0
  %v1082 = vadd.f32 %v805, %v1081
  %1083 = vmatmul.bf16.gmra.mxu0 %v941
  %v1084 = vpop.f32.mrf.mxu0
  %v1085 = vadd.f32 %v808, %v1084
  %v1086 = vpop.f32.mrf.mxu0
  %v1087 = vadd.f32 %v810, %v1086
  %1088 = vmatmul.bf16.gmra.mxu0 %v944
  %v1089 = vpop.f32.mrf.mxu0
  %v1090 = vadd.f32 %v813, %v1089
  %v1091 = vpop.f32.mrf.mxu0
  %v1092 = vadd.f32 %v815, %v1091
  %1093 = vmatmul.bf16.gmra.mxu0 %v947
  %v1094 = vpop.f32.mrf.mxu0
  %v1095 = vadd.f32 %v818, %v1094
  %v1096 = vpop.f32.mrf.mxu0
  %v1097 = vadd.f32 %v820, %v1096
  %1098 = vmatmul.bf16.gmra.mxu0 %v950
  %v1099 = vpop.f32.mrf.mxu0
  %v1100 = vadd.f32 %v823, %v1099
  %v1101 = vpop.f32.mrf.mxu0
  %v1102 = vadd.f32 %v825, %v1101
  %1103 = vmatmul.bf16.gmra.mxu0 %v953
  %v1104 = vpop.f32.mrf.mxu0
  %v1105 = vadd.f32 %v828, %v1104
  %v1106 = vpop.f32.mrf.mxu0
  %v1107 = vadd.f32 %v830, %v1106
  %1108 = vmatmul.bf16.gmra.mxu0 %v956
  %v1109 = vpop.f32.mrf.mxu0
  %v1110 = vadd.f32 %v833, %v1109
  %v1111 = vpop.f32.mrf.mxu0
  %v1112 = vadd.f32 %v835, %v1111
  %1113 = vmatmul.bf16.gmra.mxu0 %v959
  %v1114 = vpop.f32.mrf.mxu0
  %v1115 = vadd.f32 %v838, %v1114
  %v1116 = vpop.f32.mrf.mxu0
  %v1117 = vadd.f32 %v840, %v1116
  %1118 = vmatmul.bf16.gmra.mxu0 %v962
  %v1119 = vpop.f32.mrf.mxu0
  %v1120 = vadd.f32 %v843, %v1119
  %v1121 = vpop.f32.mrf.mxu0
  %v1122 = vadd.f32 %v845, %v1121
  %1123 = vmatmul.bf16.gmra.mxu0 %v965
  %v1124 = vpop.f32.mrf.mxu0
  %v1125 = vadd.f32 %v848, %v1124
  %v1126 = vpop.f32.mrf.mxu0
  %v1127 = vadd.f32 %v850, %v1126
  %1128 = vmatmul.bf16.gmra.mxu0 %v968
  %v1129 = vpop.f32.mrf.mxu0
  %v1130 = vadd.f32 %v853, %v1129
  %v1131 = vpop.f32.mrf.mxu0
  %v1132 = vadd.f32 %v855, %v1131
  %1133 = vmatmul.bf16.gmra.mxu0 %v971
  %v1134 = vpop.f32.mrf.mxu0
  %v1135 = vadd.f32 %v858, %v1134
  %v1136 = vpop.f32.mrf.mxu0
  %v1137 = vadd.f32 %v860, %v1136
  %1138 = vmatmul.bf16.gmra.mxu0 %v974
  %v1139 = vpop.f32.mrf.mxu0
  %v1140 = vadd.f32 %v863, %v1139
  %v1141 = vpop.f32.mrf.mxu0
  %v1142 = vadd.f32 %v865, %v1141
  %1143 = vmatmul.bf16.gmra.mxu0 %v977
  %v1144 = vpop.f32.mrf.mxu0
  %v1145 = vadd.f32 %v868, %v1144
  %v1146 = vpop.f32.mrf.mxu0
  %v1147 = vadd.f32 %v870, %v1146
  %1148 = vmatmul.bf16.gmra.mxu0 %v980
  %v1149 = vpop.f32.mrf.mxu0
  %v1150 = vadd.f32 %v873, %v1149
  %v1151 = vpop.f32.mrf.mxu0
  %v1152 = vadd.f32 %v875, %v1151
  %1153 = vdwg.mxu0
  %vm1154 = vcmask 1045504
  %v1155 = vrot.slane %v110, 2
  %v1156 = vrot.slane %v111, 2
  %v1157 = vsel %vm1154, %v1155, %v1156
  %v1158 = vrot.slane %v112, 2
  %v1159 = vsel %vm1154, %v1156, %v1158
  %v1160 = vrot.slane %v113, 2
  %v1161 = vrot.slane %v114, 2
  %v1162 = vsel %vm1154, %v1160, %v1161
  %v1163 = vrot.slane %v115, 2
  %v1164 = vsel %vm1154, %v1161, %v1163
  %v1165 = vrot.slane %v116, 2
  %v1166 = vrot.slane %v117, 2
  %v1167 = vsel %vm1154, %v1165, %v1166
  %v1168 = vrot.slane %v118, 2
  %v1169 = vsel %vm1154, %v1166, %v1168
  %v1170 = vrot.slane %v119, 2
  %v1171 = vrot.slane %v120, 2
  %v1172 = vsel %vm1154, %v1170, %v1171
  %v1173 = vrot.slane %v121, 2
  %v1174 = vsel %vm1154, %v1171, %v1173
  %v1175 = vrot.slane %v122, 2
  %v1176 = vrot.slane %v123, 2
  %v1177 = vsel %vm1154, %v1175, %v1176
  %v1178 = vrot.slane %v124, 2
  %v1179 = vsel %vm1154, %v1176, %v1178
  %v1180 = vrot.slane %v125, 2
  %v1181 = vrot.slane %v126, 2
  %v1182 = vsel %vm1154, %v1180, %v1181
  %v1183 = vrot.slane %v127, 2
  %v1184 = vsel %vm1154, %v1181, %v1183
  %v1185 = vrot.slane %v128, 2
  %v1186 = vrot.slane %v129, 2
  %v1187 = vsel %vm1154, %v1185, %v1186
  %v1188 = vrot.slane %v130, 2
  %v1189 = vsel %vm1154, %v1186, %v1188
  %v1190 = vrot.slane %v131, 2
  %v1191 = vrot.slane %v132, 2
  %v1192 = vsel %vm1154, %v1190, %v1191
  %v1193 = vrot.slane %v133, 2
  %v1194 = vsel %vm1154, %v1191, %v1193
  %v1195 = vrot.slane %v134, 2
  %v1196 = vrot.slane %v135, 2
  %v1197 = vsel %vm1154, %v1195, %v1196
  %v1198 = vrot.slane %v136, 2
  %v1199 = vsel %vm1154, %v1196, %v1198
  %v1200 = vrot.slane %v137, 2
  %v1201 = vrot.slane %v138, 2
  %v1202 = vsel %vm1154, %v1200, %v1201
  %v1203 = vrot.slane %v139, 2
  %v1204 = vsel %vm1154, %v1201, %v1203
  %v1205 = vrot.slane %v140, 2
  %v1206 = vrot.slane %v141, 2
  %v1207 = vsel %vm1154, %v1205, %v1206
  %v1208 = vrot.slane %v142, 2
  %v1209 = vsel %vm1154, %v1206, %v1208
  %v1210 = vrot.slane %v143, 2
  %v1211 = vrot.slane %v144, 2
  %v1212 = vsel %vm1154, %v1210, %v1211
  %v1213 = vrot.slane %v145, 2
  %v1214 = vsel %vm1154, %v1211, %v1213
  %v1215 = vrot.slane %v146, 2
  %v1216 = vrot.slane %v147, 2
  %v1217 = vsel %vm1154, %v1215, %v1216
  %v1218 = vrot.slane %v148, 2
  %v1219 = vsel %vm1154, %v1216, %v1218
  %v1220 = vrot.slane %v149, 2
  %v1221 = vrot.slane %v150, 2
  %v1222 = vsel %vm1154, %v1220, %v1221
  %v1223 = vrot.slane %v151, 2
  %v1224 = vsel %vm1154, %v1221, %v1223
  %v1225 = vrot.slane %v152, 2
  %v1226 = vrot.slane %v153, 2
  %v1227 = vsel %vm1154, %v1225, %v1226
  %v1228 = vrot.slane %v154, 2
  %v1229 = vsel %vm1154, %v1226, %v1228
  %v1230 = vrot.slane %v155, 2
  %v1231 = vrot.slane %v156, 2
  %v1232 = vsel %vm1154, %v1230, %v1231
  %v1233 = vrot.slane %v157, 2
  %v1234 = vsel %vm1154, %v1231, %v1233
  %v1235 = vrot.slane %v158, 2
  %v1236 = vrot.slane %v159, 2
  %v1237 = vsel %vm1154, %v1235, %v1236
  %v1238 = vrot.slane %v160, 2
  %v1239 = vsel %vm1154, %v1236, %v1238
  %v1240 = vrot.slane %v161, 2
  %v1241 = vrot.slane %v162, 2
  %v1242 = vsel %vm1154, %v1240, %v1241
  %v1243 = vrot.slane %v163, 2
  %v1244 = vsel %vm1154, %v1241, %v1243
  %v1245 = vrot.slane %v164, 2
  %v1246 = vrot.slane %v165, 2
  %v1247 = vsel %vm1154, %v1245, %v1246
  %v1248 = vrot.slane %v166, 2
  %v1249 = vsel %vm1154, %v1246, %v1248
  %v1250 = vrot.slane %v167, 2
  %v1251 = vrot.slane %v168, 2
  %v1252 = vsel %vm1154, %v1250, %v1251
  %v1253 = vrot.slane %v169, 2
  %v1254 = vsel %vm1154, %v1251, %v1253
  %v1255 = vrot.slane %v170, 2
  %v1256 = vrot.slane %v171, 2
  %v1257 = vsel %vm1154, %v1255, %v1256
  %v1258 = vrot.slane %v172, 2
  %v1259 = vsel %vm1154, %v1256, %v1258
  %v1260 = vrot.slane %v173, 2
  %v1261 = vrot.slane %v174, 2
  %v1262 = vsel %vm1154, %v1260, %v1261
  %v1263 = vrot.slane %v175, 2
  %v1264 = vsel %vm1154, %v1261, %v1263
  %v1265 = vrot.slane %v176, 2
  %v1266 = vrot.slane %v177, 2
  %v1267 = vsel %vm1154, %v1265, %v1266
  %v1268 = vrot.slane %v178, 2
  %v1269 = vsel %vm1154, %v1266, %v1268
  %v1270 = vrot.slane %v179, 2
  %v1271 = vrot.slane %v180, 2
  %v1272 = vsel %vm1154, %v1270, %v1271
  %v1273 = vrot.slane %v181, 2
  %v1274 = vsel %vm1154, %v1271, %v1273
  %v1275 = vrot.slane %v182, 2
  %v1276 = vrot.slane %v183, 2
  %v1277 = vsel %vm1154, %v1275, %v1276
  %v1278 = vrot.slane %v184, 2
  %v1279 = vsel %vm1154, %v1276, %v1278
  %v1280 = vrot.slane %v185, 2
  %v1281 = vrot.slane %v186, 2
  %v1282 = vsel %vm1154, %v1280, %v1281
  %v1283 = vrot.slane %v187, 2
  %v1284 = vsel %vm1154, %v1281, %v1283
  %v1285 = vrot.slane %v188, 2
  %v1286 = vrot.slane %v189, 2
  %v1287 = vsel %vm1154, %v1285, %v1286
  %v1288 = vrot.slane %v190, 2
  %v1289 = vsel %vm1154, %v1286, %v1288
  %v1290 = vrot.slane %v191, 2
  %v1291 = vrot.slane %v192, 2
  %v1292 = vsel %vm1154, %v1290, %v1291
  %v1293 = vrot.slane %v193, 2
  %v1294 = vsel %vm1154, %v1291, %v1293
  %v1295 = vrot.slane %v194, 2
  %v1296 = vrot.slane %v195, 2
  %v1297 = vsel %vm1154, %v1295, %v1296
  %v1298 = vrot.slane %v196, 2
  %v1299 = vsel %vm1154, %v1296, %v1298
  %v1300 = vrot.slane %v197, 2
  %v1301 = vrot.slane %v198, 2
  %v1302 = vsel %vm1154, %v1300, %v1301
  %v1303 = vrot.slane %v199, 2
  %v1304 = vsel %vm1154, %v1301, %v1303
  %v1305 = vrot.slane %v200, 2
  %v1306 = vrot.slane %v201, 2
  %v1307 = vsel %vm1154, %v1305, %v1306
  %v1308 = vrot.slane %v202, 2
  %v1309 = vsel %vm1154, %v1306, %v1308
  %v1310 = vrot.slane %v203, 2
  %v1311 = vrot.slane %v204, 2
  %v1312 = vsel %vm1154, %v1310, %v1311
  %v1313 = vrot.slane %v205, 2
  %v1314 = vsel %vm1154, %v1311, %v1313
  %v1379 = vpack.c.bf16 %v1159, %v1157
  %v1380 = vpack.c.bf16 %v1164, %v1162
  %v1381 = vpack.c.bf16 %v1169, %v1167
  %v1382 = vpack.c.bf16 %v1174, %v1172
  %v1383 = vpack.c.bf16 %v1179, %v1177
  %v1384 = vpack.c.bf16 %v1184, %v1182
  %v1385 = vpack.c.bf16 %v1189, %v1187
  %v1386 = vpack.c.bf16 %v1194, %v1192
  %v1387 = vpack.c.bf16 %v1199, %v1197
  %v1388 = vpack.c.bf16 %v1204, %v1202
  %v1389 = vpack.c.bf16 %v1209, %v1207
  %v1390 = vpack.c.bf16 %v1214, %v1212
  %v1391 = vpack.c.bf16 %v1219, %v1217
  %v1392 = vpack.c.bf16 %v1224, %v1222
  %v1393 = vpack.c.bf16 %v1229, %v1227
  %v1394 = vpack.c.bf16 %v1234, %v1232
  %v1395 = vpack.c.bf16 %v1239, %v1237
  %v1396 = vpack.c.bf16 %v1244, %v1242
  %v1397 = vpack.c.bf16 %v1249, %v1247
  %v1398 = vpack.c.bf16 %v1254, %v1252
  %v1399 = vpack.c.bf16 %v1259, %v1257
  %v1400 = vpack.c.bf16 %v1264, %v1262
  %v1401 = vpack.c.bf16 %v1269, %v1267
  %v1402 = vpack.c.bf16 %v1274, %v1272
  %v1403 = vpack.c.bf16 %v1279, %v1277
  %v1404 = vpack.c.bf16 %v1284, %v1282
  %v1405 = vpack.c.bf16 %v1289, %v1287
  %v1406 = vpack.c.bf16 %v1294, %v1292
  %v1407 = vpack.c.bf16 %v1299, %v1297
  %v1408 = vpack.c.bf16 %v1304, %v1302
  %v1409 = vpack.c.bf16 %v1309, %v1307
  %v1410 = vpack.c.bf16 %v1314, %v1312
  %s1411 = scalar_lea.vmem %s1, 24
  %v1412 = vld [vmem:[%s1411] sm:$0xf]
  %v1413 = vld [vmem:[%s1411 + $0x4] sm:$0xf]
  %v1414 = vld [vmem:[%s1411 + $0x8] sm:$0xf]
  %v1418 = vunpack.c.l.b16 %v1412
  %v1419 = vunpack.c.l.b16 %v1413
  %v1420 = vunpack.c.l.b16 %v1414
  %v1421 = vpack.c.b16 %v1419, %v1418
  %v1422 = vpack.c.b16 %v1420, %v1420
  %v1425 = vsel %vm607, %v1379, 0
  %v1428 = vsel %vm607, %v1380, 0
  %v1431 = vsel %vm607, %v1381, 0
  %v1434 = vsel %vm607, %v1382, 0
  %v1437 = vsel %vm607, %v1383, 0
  %v1440 = vsel %vm607, %v1384, 0
  %v1443 = vsel %vm607, %v1385, 0
  %v1446 = vsel %vm607, %v1386, 0
  %v1449 = vsel %vm607, %v1387, 0
  %v1452 = vsel %vm607, %v1388, 0
  %v1455 = vsel %vm607, %v1389, 0
  %v1458 = vsel %vm607, %v1390, 0
  %v1461 = vsel %vm607, %v1391, 0
  %v1464 = vsel %vm607, %v1392, 0
  %v1467 = vsel %vm607, %v1393, 0
  %v1470 = vsel %vm607, %v1394, 0
  %v1473 = vsel %vm607, %v1395, 0
  %v1476 = vsel %vm607, %v1396, 0
  %v1479 = vsel %vm607, %v1397, 0
  %v1482 = vsel %vm607, %v1398, 0
  %v1485 = vsel %vm607, %v1399, 0
  %v1488 = vsel %vm607, %v1400, 0
  %v1491 = vsel %vm607, %v1401, 0
  %v1494 = vsel %vm607, %v1402, 0
  %v1497 = vsel %vm607, %v1403, 0
  %v1500 = vsel %vm607, %v1404, 0
  %v1503 = vsel %vm607, %v1405, 0
  %v1506 = vsel %vm607, %v1406, 0
  %v1509 = vsel %vm607, %v1407, 0
  %v1512 = vsel %vm607, %v1408, 0
  %v1515 = vsel %vm607, %v1409, 0
  %v1518 = vsel %vm607, %v1410, 0
  %v1521 = vsel %vm704, %v1422, 0
  %1523 = vmatpush.bf16.msra.mxu0 0
  %1524 = vmatpush.bf16.msra.mxu0 0
  %1525 = vmatpush.bf16.msra.mxu0 0
  %1526 = vmatpush.bf16.msra.mxu0 0
  %1527 = vmatpush.bf16.msra.mxu0 0
  %1528 = vmatpush.bf16.msra.mxu0 0
  %1529 = vmatpush.bf16.msra.mxu0 %v1521
  %1530 = vmatpush.bf16.msra.mxu0 %v1421
  %1531 = vmatmul.bf16.gmra.mxu0 %v1425
  %v1532 = vpop.f32.mrf.mxu0
  %v1533 = vadd.f32 0.0, %v1532
  %v1534 = vpop.f32.mrf.mxu0
  %v1535 = vadd.f32 0.0, %v1534
  %1536 = vmatmul.bf16.gmra.mxu0 %v1428
  %v1537 = vpop.f32.mrf.mxu0
  %v1538 = vadd.f32 0.0, %v1537
  %v1539 = vpop.f32.mrf.mxu0
  %v1540 = vadd.f32 0.0, %v1539
  %1541 = vmatmul.bf16.gmra.mxu0 %v1431
  %v1542 = vpop.f32.mrf.mxu0
  %v1543 = vadd.f32 0.0, %v1542
  %v1544 = vpop.f32.mrf.mxu0
  %v1545 = vadd.f32 0.0, %v1544
  %1546 = vmatmul.bf16.gmra.mxu0 %v1434
  %v1547 = vpop.f32.mrf.mxu0
  %v1548 = vadd.f32 0.0, %v1547
  %v1549 = vpop.f32.mrf.mxu0
  %v1550 = vadd.f32 0.0, %v1549
  %1551 = vmatmul.bf16.gmra.mxu0 %v1437
  %v1552 = vpop.f32.mrf.mxu0
  %v1553 = vadd.f32 0.0, %v1552
  %v1554 = vpop.f32.mrf.mxu0
  %v1555 = vadd.f32 0.0, %v1554
  %1556 = vmatmul.bf16.gmra.mxu0 %v1440
  %v1557 = vpop.f32.mrf.mxu0
  %v1558 = vadd.f32 0.0, %v1557
  %v1559 = vpop.f32.mrf.mxu0
  %v1560 = vadd.f32 0.0, %v1559
  %1561 = vmatmul.bf16.gmra.mxu0 %v1443
  %v1562 = vpop.f32.mrf.mxu0
  %v1563 = vadd.f32 0.0, %v1562
  %v1564 = vpop.f32.mrf.mxu0
  %v1565 = vadd.f32 0.0, %v1564
  %1566 = vmatmul.bf16.gmra.mxu0 %v1446
  %v1567 = vpop.f32.mrf.mxu0
  %v1568 = vadd.f32 0.0, %v1567
  %v1569 = vpop.f32.mrf.mxu0
  %v1570 = vadd.f32 0.0, %v1569
  %1571 = vmatmul.bf16.gmra.mxu0 %v1449
  %v1572 = vpop.f32.mrf.mxu0
  %v1573 = vadd.f32 0.0, %v1572
  %v1574 = vpop.f32.mrf.mxu0
  %v1575 = vadd.f32 0.0, %v1574
  %1576 = vmatmul.bf16.gmra.mxu0 %v1452
  %v1577 = vpop.f32.mrf.mxu0
  %v1578 = vadd.f32 0.0, %v1577
  %v1579 = vpop.f32.mrf.mxu0
  %v1580 = vadd.f32 0.0, %v1579
  %1581 = vmatmul.bf16.gmra.mxu0 %v1455
  %v1582 = vpop.f32.mrf.mxu0
  %v1583 = vadd.f32 0.0, %v1582
  %v1584 = vpop.f32.mrf.mxu0
  %v1585 = vadd.f32 0.0, %v1584
  %1586 = vmatmul.bf16.gmra.mxu0 %v1458
  %v1587 = vpop.f32.mrf.mxu0
  %v1588 = vadd.f32 0.0, %v1587
  %v1589 = vpop.f32.mrf.mxu0
  %v1590 = vadd.f32 0.0, %v1589
  %1591 = vmatmul.bf16.gmra.mxu0 %v1461
  %v1592 = vpop.f32.mrf.mxu0
  %v1593 = vadd.f32 0.0, %v1592
  %v1594 = vpop.f32.mrf.mxu0
  %v1595 = vadd.f32 0.0, %v1594
  %1596 = vmatmul.bf16.gmra.mxu0 %v1464
  %v1597 = vpop.f32.mrf.mxu0
  %v1598 = vadd.f32 0.0, %v1597
  %v1599 = vpop.f32.mrf.mxu0
  %v1600 = vadd.f32 0.0, %v1599
  %1601 = vmatmul.bf16.gmra.mxu0 %v1467
  %v1602 = vpop.f32.mrf.mxu0
  %v1603 = vadd.f32 0.0, %v1602
  %v1604 = vpop.f32.mrf.mxu0
  %v1605 = vadd.f32 0.0, %v1604
  %1606 = vmatmul.bf16.gmra.mxu0 %v1470
  %v1607 = vpop.f32.mrf.mxu0
  %v1608 = vadd.f32 0.0, %v1607
  %v1609 = vpop.f32.mrf.mxu0
  %v1610 = vadd.f32 0.0, %v1609
  %1611 = vmatmul.bf16.gmra.mxu0 %v1473
  %v1612 = vpop.f32.mrf.mxu0
  %v1613 = vadd.f32 0.0, %v1612
  %v1614 = vpop.f32.mrf.mxu0
  %v1615 = vadd.f32 0.0, %v1614
  %1616 = vmatmul.bf16.gmra.mxu0 %v1476
  %v1617 = vpop.f32.mrf.mxu0
  %v1618 = vadd.f32 0.0, %v1617
  %v1619 = vpop.f32.mrf.mxu0
  %v1620 = vadd.f32 0.0, %v1619
  %1621 = vmatmul.bf16.gmra.mxu0 %v1479
  %v1622 = vpop.f32.mrf.mxu0
  %v1623 = vadd.f32 0.0, %v1622
  %v1624 = vpop.f32.mrf.mxu0
  %v1625 = vadd.f32 0.0, %v1624
  %1626 = vmatmul.bf16.gmra.mxu0 %v1482
  %v1627 = vpop.f32.mrf.mxu0
  %v1628 = vadd.f32 0.0, %v1627
  %v1629 = vpop.f32.mrf.mxu0
  %v1630 = vadd.f32 0.0, %v1629
  %1631 = vmatmul.bf16.gmra.mxu0 %v1485
  %v1632 = vpop.f32.mrf.mxu0
  %v1633 = vadd.f32 0.0, %v1632
  %v1634 = vpop.f32.mrf.mxu0
  %v1635 = vadd.f32 0.0, %v1634
  %1636 = vmatmul.bf16.gmra.mxu0 %v1488
  %v1637 = vpop.f32.mrf.mxu0
  %v1638 = vadd.f32 0.0, %v1637
  %v1639 = vpop.f32.mrf.mxu0
  %v1640 = vadd.f32 0.0, %v1639
  %1641 = vmatmul.bf16.gmra.mxu0 %v1491
  %v1642 = vpop.f32.mrf.mxu0
  %v1643 = vadd.f32 0.0, %v1642
  %v1644 = vpop.f32.mrf.mxu0
  %v1645 = vadd.f32 0.0, %v1644
  %1646 = vmatmul.bf16.gmra.mxu0 %v1494
  %v1647 = vpop.f32.mrf.mxu0
  %v1648 = vadd.f32 0.0, %v1647
  %v1649 = vpop.f32.mrf.mxu0
  %v1650 = vadd.f32 0.0, %v1649
  %1651 = vmatmul.bf16.gmra.mxu0 %v1497
  %v1652 = vpop.f32.mrf.mxu0
  %v1653 = vadd.f32 0.0, %v1652
  %v1654 = vpop.f32.mrf.mxu0
  %v1655 = vadd.f32 0.0, %v1654
  %1656 = vmatmul.bf16.gmra.mxu0 %v1500
  %v1657 = vpop.f32.mrf.mxu0
  %v1658 = vadd.f32 0.0, %v1657
  %v1659 = vpop.f32.mrf.mxu0
  %v1660 = vadd.f32 0.0, %v1659
  %1661 = vmatmul.bf16.gmra.mxu0 %v1503
  %v1662 = vpop.f32.mrf.mxu0
  %v1663 = vadd.f32 0.0, %v1662
  %v1664 = vpop.f32.mrf.mxu0
  %v1665 = vadd.f32 0.0, %v1664
  %1666 = vmatmul.bf16.gmra.mxu0 %v1506
  %v1667 = vpop.f32.mrf.mxu0
  %v1668 = vadd.f32 0.0, %v1667
  %v1669 = vpop.f32.mrf.mxu0
  %v1670 = vadd.f32 0.0, %v1669
  %1671 = vmatmul.bf16.gmra.mxu0 %v1509
  %v1672 = vpop.f32.mrf.mxu0
  %v1673 = vadd.f32 0.0, %v1672
  %v1674 = vpop.f32.mrf.mxu0
  %v1675 = vadd.f32 0.0, %v1674
  %1676 = vmatmul.bf16.gmra.mxu0 %v1512
  %v1677 = vpop.f32.mrf.mxu0
  %v1678 = vadd.f32 0.0, %v1677
  %v1679 = vpop.f32.mrf.mxu0
  %v1680 = vadd.f32 0.0, %v1679
  %1681 = vmatmul.bf16.gmra.mxu0 %v1515
  %v1682 = vpop.f32.mrf.mxu0
  %v1683 = vadd.f32 0.0, %v1682
  %v1684 = vpop.f32.mrf.mxu0
  %v1685 = vadd.f32 0.0, %v1684
  %1686 = vmatmul.bf16.gmra.mxu0 %v1518
  %v1687 = vpop.f32.mrf.mxu0
  %v1688 = vadd.f32 0.0, %v1687
  %v1689 = vpop.f32.mrf.mxu0
  %v1690 = vadd.f32 0.0, %v1689
  %1691 = vdwg.mxu0
  %v1692 = vadd.f32 %v995, %v1533
  %v1693 = vadd.f32 %v997, %v1535
  %v1694 = vadd.f32 %v1000, %v1538
  %v1695 = vadd.f32 %v1002, %v1540
  %v1696 = vadd.f32 %v1005, %v1543
  %v1697 = vadd.f32 %v1007, %v1545
  %v1698 = vadd.f32 %v1010, %v1548
  %v1699 = vadd.f32 %v1012, %v1550
  %v1700 = vadd.f32 %v1015, %v1553
  %v1701 = vadd.f32 %v1017, %v1555
  %v1702 = vadd.f32 %v1020, %v1558
  %v1703 = vadd.f32 %v1022, %v1560
  %v1704 = vadd.f32 %v1025, %v1563
  %v1705 = vadd.f32 %v1027, %v1565
  %v1706 = vadd.f32 %v1030, %v1568
  %v1707 = vadd.f32 %v1032, %v1570
  %v1708 = vadd.f32 %v1035, %v1573
  %v1709 = vadd.f32 %v1037, %v1575
  %v1710 = vadd.f32 %v1040, %v1578
  %v1711 = vadd.f32 %v1042, %v1580
  %v1712 = vadd.f32 %v1045, %v1583
  %v1713 = vadd.f32 %v1047, %v1585
  %v1714 = vadd.f32 %v1050, %v1588
  %v1715 = vadd.f32 %v1052, %v1590
  %v1716 = vadd.f32 %v1055, %v1593
  %v1717 = vadd.f32 %v1057, %v1595
  %v1718 = vadd.f32 %v1060, %v1598
  %v1719 = vadd.f32 %v1062, %v1600
  %v1720 = vadd.f32 %v1065, %v1603
  %v1721 = vadd.f32 %v1067, %v1605
  %v1722 = vadd.f32 %v1070, %v1608
  %v1723 = vadd.f32 %v1072, %v1610
  %v1724 = vadd.f32 %v1075, %v1613
  %v1725 = vadd.f32 %v1077, %v1615
  %v1726 = vadd.f32 %v1080, %v1618
  %v1727 = vadd.f32 %v1082, %v1620
  %v1728 = vadd.f32 %v1085, %v1623
  %v1729 = vadd.f32 %v1087, %v1625
  %v1730 = vadd.f32 %v1090, %v1628
  %v1731 = vadd.f32 %v1092, %v1630
  %v1732 = vadd.f32 %v1095, %v1633
  %v1733 = vadd.f32 %v1097, %v1635
  %v1734 = vadd.f32 %v1100, %v1638
  %v1735 = vadd.f32 %v1102, %v1640
  %v1736 = vadd.f32 %v1105, %v1643
  %v1737 = vadd.f32 %v1107, %v1645
  %v1738 = vadd.f32 %v1110, %v1648
  %v1739 = vadd.f32 %v1112, %v1650
  %v1740 = vadd.f32 %v1115, %v1653
  %v1741 = vadd.f32 %v1117, %v1655
  %v1742 = vadd.f32 %v1120, %v1658
  %v1743 = vadd.f32 %v1122, %v1660
  %v1744 = vadd.f32 %v1125, %v1663
  %v1745 = vadd.f32 %v1127, %v1665
  %v1746 = vadd.f32 %v1130, %v1668
  %v1747 = vadd.f32 %v1132, %v1670
  %v1748 = vadd.f32 %v1135, %v1673
  %v1749 = vadd.f32 %v1137, %v1675
  %v1750 = vadd.f32 %v1140, %v1678
  %v1751 = vadd.f32 %v1142, %v1680
  %v1752 = vadd.f32 %v1145, %v1683
  %v1753 = vadd.f32 %v1147, %v1685
  %v1754 = vadd.f32 %v1150, %v1688
  %v1755 = vadd.f32 %v1152, %v1690
  %vm1756 = vcmask 64512
  %1757 = vst.msk [vmem:[%s2] sm:$0xff] %vm1756, %v1692
  %1758 = vst.msk [vmem:[%s2 + $0x8] sm:$0xff] %vm1756, %v1693
  %1759 = vst.msk [vmem:[%s2 + $0x10] sm:$0xff] %vm1756, %v1694
  %1760 = vst.msk [vmem:[%s2 + $0x18] sm:$0xff] %vm1756, %v1695
  %1761 = vst.msk [vmem:[%s2 + $0x20] sm:$0xff] %vm1756, %v1696
  %1762 = vst.msk [vmem:[%s2 + $0x28] sm:$0xff] %vm1756, %v1697
  %1763 = vst.msk [vmem:[%s2 + $0x30] sm:$0xff] %vm1756, %v1698
  %1764 = vst.msk [vmem:[%s2 + $0x38] sm:$0xff] %vm1756, %v1699
  %1765 = vst.msk [vmem:[%s2 + $0x40] sm:$0xff] %vm1756, %v1700
  %1766 = vst.msk [vmem:[%s2 + $0x48] sm:$0xff] %vm1756, %v1701
  %1767 = vst.msk [vmem:[%s2 + $0x50] sm:$0xff] %vm1756, %v1702
  %1768 = vst.msk [vmem:[%s2 + $0x58] sm:$0xff] %vm1756, %v1703
  %1769 = vst.msk [vmem:[%s2 + $0x60] sm:$0xff] %vm1756, %v1704
  %1770 = vst.msk [vmem:[%s2 + $0x68] sm:$0xff] %vm1756, %v1705
  %1771 = vst.msk [vmem:[%s2 + $0x70] sm:$0xff] %vm1756, %v1706
  %1772 = vst.msk [vmem:[%s2 + $0x78] sm:$0xff] %vm1756, %v1707
  %1773 = vst.msk [vmem:[%s2 + $0x80] sm:$0xff] %vm1756, %v1708
  %1774 = vst.msk [vmem:[%s2 + $0x88] sm:$0xff] %vm1756, %v1709
  %1775 = vst.msk [vmem:[%s2 + $0x90] sm:$0xff] %vm1756, %v1710
  %1776 = vst.msk [vmem:[%s2 + $0x98] sm:$0xff] %vm1756, %v1711
  %1777 = vst.msk [vmem:[%s2 + $0xa0] sm:$0xff] %vm1756, %v1712
  %1778 = vst.msk [vmem:[%s2 + $0xa8] sm:$0xff] %vm1756, %v1713
  %1779 = vst.msk [vmem:[%s2 + $0xb0] sm:$0xff] %vm1756, %v1714
  %1780 = vst.msk [vmem:[%s2 + $0xb8] sm:$0xff] %vm1756, %v1715
  %1781 = vst.msk [vmem:[%s2 + $0xc0] sm:$0xff] %vm1756, %v1716
  %1782 = vst.msk [vmem:[%s2 + $0xc8] sm:$0xff] %vm1756, %v1717
  %1783 = vst.msk [vmem:[%s2 + $0xd0] sm:$0xff] %vm1756, %v1718
  %1784 = vst.msk [vmem:[%s2 + $0xd8] sm:$0xff] %vm1756, %v1719
  %1785 = vst.msk [vmem:[%s2 + $0xe0] sm:$0xff] %vm1756, %v1720
  %1786 = vst.msk [vmem:[%s2 + $0xe8] sm:$0xff] %vm1756, %v1721
  %1787 = vst.msk [vmem:[%s2 + $0xf0] sm:$0xff] %vm1756, %v1722
  %1788 = vst.msk [vmem:[%s2 + $0xf8] sm:$0xff] %vm1756, %v1723
  %1789 = vst.msk [vmem:[%s2 + $0x100] sm:$0xff] %vm1756, %v1724
  %1790 = vst.msk [vmem:[%s2 + $0x108] sm:$0xff] %vm1756, %v1725
  %1791 = vst.msk [vmem:[%s2 + $0x110] sm:$0xff] %vm1756, %v1726
  %1792 = vst.msk [vmem:[%s2 + $0x118] sm:$0xff] %vm1756, %v1727
  %1793 = vst.msk [vmem:[%s2 + $0x120] sm:$0xff] %vm1756, %v1728
  %1794 = vst.msk [vmem:[%s2 + $0x128] sm:$0xff] %vm1756, %v1729
  %1795 = vst.msk [vmem:[%s2 + $0x130] sm:$0xff] %vm1756, %v1730
  %1796 = vst.msk [vmem:[%s2 + $0x138] sm:$0xff] %vm1756, %v1731
  %1797 = vst.msk [vmem:[%s2 + $0x140] sm:$0xff] %vm1756, %v1732
  %1798 = vst.msk [vmem:[%s2 + $0x148] sm:$0xff] %vm1756, %v1733
  %1799 = vst.msk [vmem:[%s2 + $0x150] sm:$0xff] %vm1756, %v1734
  %1800 = vst.msk [vmem:[%s2 + $0x158] sm:$0xff] %vm1756, %v1735
  %1801 = vst.msk [vmem:[%s2 + $0x160] sm:$0xff] %vm1756, %v1736
  %1802 = vst.msk [vmem:[%s2 + $0x168] sm:$0xff] %vm1756, %v1737
  %1803 = vst.msk [vmem:[%s2 + $0x170] sm:$0xff] %vm1756, %v1738
  %1804 = vst.msk [vmem:[%s2 + $0x178] sm:$0xff] %vm1756, %v1739
  %1805 = vst.msk [vmem:[%s2 + $0x180] sm:$0xff] %vm1756, %v1740
  %1806 = vst.msk [vmem:[%s2 + $0x188] sm:$0xff] %vm1756, %v1741
  %1807 = vst.msk [vmem:[%s2 + $0x190] sm:$0xff] %vm1756, %v1742
  %1808 = vst.msk [vmem:[%s2 + $0x198] sm:$0xff] %vm1756, %v1743
  %1809 = vst.msk [vmem:[%s2 + $0x1a0] sm:$0xff] %vm1756, %v1744
  %1810 = vst.msk [vmem:[%s2 + $0x1a8] sm:$0xff] %vm1756, %v1745
  %1811 = vst.msk [vmem:[%s2 + $0x1b0] sm:$0xff] %vm1756, %v1746
  %1812 = vst.msk [vmem:[%s2 + $0x1b8] sm:$0xff] %vm1756, %v1747
  %1813 = vst.msk [vmem:[%s2 + $0x1c0] sm:$0xff] %vm1756, %v1748
  %1814 = vst.msk [vmem:[%s2 + $0x1c8] sm:$0xff] %vm1756, %v1749
  %1815 = vst.msk [vmem:[%s2 + $0x1d0] sm:$0xff] %vm1756, %v1750
  %1816 = vst.msk [vmem:[%s2 + $0x1d8] sm:$0xff] %vm1756, %v1751
  %1817 = vst.msk [vmem:[%s2 + $0x1e0] sm:$0xff] %vm1756, %v1752
  %1818 = vst.msk [vmem:[%s2 + $0x1e8] sm:$0xff] %vm1756, %v1753
  %1819 = vst.msk [vmem:[%s2 + $0x1f0] sm:$0xff] %vm1756, %v1754
  %1820 = vst.msk [vmem:[%s2 + $0x1f8] sm:$0xff] %vm1756, %v1755
  %v1821 = vsel %vm1756, %v1692, 0.0
  %v1822 = vsel %vm1756, %v1693, 0.0
  %v1823 = vadd.f32 %v1821, %v1822
  %v1824 = vsel %vm1756, %v1694, 0.0
  %v1825 = vadd.f32 %v1823, %v1824
  %v1826 = vsel %vm1756, %v1695, 0.0
  %v1827 = vadd.f32 %v1825, %v1826
  %v1828 = vsel %vm1756, %v1696, 0.0
  %v1829 = vadd.f32 %v1827, %v1828
  %v1830 = vsel %vm1756, %v1697, 0.0
  %v1831 = vadd.f32 %v1829, %v1830
  %v1832 = vsel %vm1756, %v1698, 0.0
  %v1833 = vadd.f32 %v1831, %v1832
  %v1834 = vsel %vm1756, %v1699, 0.0
  %v1835 = vadd.f32 %v1833, %v1834
  %v1836 = vsel %vm1756, %v1700, 0.0
  %v1837 = vadd.f32 %v1835, %v1836
  %v1838 = vsel %vm1756, %v1701, 0.0
  %v1839 = vadd.f32 %v1837, %v1838
  %v1840 = vsel %vm1756, %v1702, 0.0
  %v1841 = vadd.f32 %v1839, %v1840
  %v1842 = vsel %vm1756, %v1703, 0.0
  %v1843 = vadd.f32 %v1841, %v1842
  %v1844 = vsel %vm1756, %v1704, 0.0
  %v1845 = vadd.f32 %v1843, %v1844
  %v1846 = vsel %vm1756, %v1705, 0.0
  %v1847 = vadd.f32 %v1845, %v1846
  %v1848 = vsel %vm1756, %v1706, 0.0
  %v1849 = vadd.f32 %v1847, %v1848
  %v1850 = vsel %vm1756, %v1707, 0.0
  %v1851 = vadd.f32 %v1849, %v1850
  %v1852 = vsel %vm1756, %v1708, 0.0
  %v1853 = vadd.f32 %v1851, %v1852
  %v1854 = vsel %vm1756, %v1709, 0.0
  %v1855 = vadd.f32 %v1853, %v1854
  %v1856 = vsel %vm1756, %v1710, 0.0
  %v1857 = vadd.f32 %v1855, %v1856
  %v1858 = vsel %vm1756, %v1711, 0.0
  %v1859 = vadd.f32 %v1857, %v1858
  %v1860 = vsel %vm1756, %v1712, 0.0
  %v1861 = vadd.f32 %v1859, %v1860
  %v1862 = vsel %vm1756, %v1713, 0.0
  %v1863 = vadd.f32 %v1861, %v1862
  %v1864 = vsel %vm1756, %v1714, 0.0
  %v1865 = vadd.f32 %v1863, %v1864
  %v1866 = vsel %vm1756, %v1715, 0.0
  %v1867 = vadd.f32 %v1865, %v1866
  %v1868 = vsel %vm1756, %v1716, 0.0
  %v1869 = vadd.f32 %v1867, %v1868
  %v1870 = vsel %vm1756, %v1717, 0.0
  %v1871 = vadd.f32 %v1869, %v1870
  %v1872 = vsel %vm1756, %v1718, 0.0
  %v1873 = vadd.f32 %v1871, %v1872
  %v1874 = vsel %vm1756, %v1719, 0.0
  %v1875 = vadd.f32 %v1873, %v1874
  %v1876 = vsel %vm1756, %v1720, 0.0
  %v1877 = vadd.f32 %v1875, %v1876
  %v1878 = vsel %vm1756, %v1721, 0.0
  %v1879 = vadd.f32 %v1877, %v1878
  %v1880 = vsel %vm1756, %v1722, 0.0
  %v1881 = vadd.f32 %v1879, %v1880
  %v1882 = vsel %vm1756, %v1723, 0.0
  %v1883 = vadd.f32 %v1881, %v1882
  %v1884 = vsel %vm1756, %v1724, 0.0
  %v1885 = vadd.f32 %v1883, %v1884
  %v1886 = vsel %vm1756, %v1725, 0.0
  %v1887 = vadd.f32 %v1885, %v1886
  %v1888 = vsel %vm1756, %v1726, 0.0
  %v1889 = vadd.f32 %v1887, %v1888
  %v1890 = vsel %vm1756, %v1727, 0.0
  %v1891 = vadd.f32 %v1889, %v1890
  %v1892 = vsel %vm1756, %v1728, 0.0
  %v1893 = vadd.f32 %v1891, %v1892
  %v1894 = vsel %vm1756, %v1729, 0.0
  %v1895 = vadd.f32 %v1893, %v1894
  %v1896 = vsel %vm1756, %v1730, 0.0
  %v1897 = vadd.f32 %v1895, %v1896
  %v1898 = vsel %vm1756, %v1731, 0.0
  %v1899 = vadd.f32 %v1897, %v1898
  %v1900 = vsel %vm1756, %v1732, 0.0
  %v1901 = vadd.f32 %v1899, %v1900
  %v1902 = vsel %vm1756, %v1733, 0.0
  %v1903 = vadd.f32 %v1901, %v1902
  %v1904 = vsel %vm1756, %v1734, 0.0
  %v1905 = vadd.f32 %v1903, %v1904
  %v1906 = vsel %vm1756, %v1735, 0.0
  %v1907 = vadd.f32 %v1905, %v1906
  %v1908 = vsel %vm1756, %v1736, 0.0
  %v1909 = vadd.f32 %v1907, %v1908
  %v1910 = vsel %vm1756, %v1737, 0.0
  %v1911 = vadd.f32 %v1909, %v1910
  %v1912 = vsel %vm1756, %v1738, 0.0
  %v1913 = vadd.f32 %v1911, %v1912
  %v1914 = vsel %vm1756, %v1739, 0.0
  %v1915 = vadd.f32 %v1913, %v1914
  %v1916 = vsel %vm1756, %v1740, 0.0
  %v1917 = vadd.f32 %v1915, %v1916
  %v1918 = vsel %vm1756, %v1741, 0.0
  %v1919 = vadd.f32 %v1917, %v1918
  %v1920 = vsel %vm1756, %v1742, 0.0
  %v1921 = vadd.f32 %v1919, %v1920
  %v1922 = vsel %vm1756, %v1743, 0.0
  %v1923 = vadd.f32 %v1921, %v1922
  %v1924 = vsel %vm1756, %v1744, 0.0
  %v1925 = vadd.f32 %v1923, %v1924
  %v1926 = vsel %vm1756, %v1745, 0.0
  %v1927 = vadd.f32 %v1925, %v1926
  %v1928 = vsel %vm1756, %v1746, 0.0
  %v1929 = vadd.f32 %v1927, %v1928
  %v1930 = vsel %vm1756, %v1747, 0.0
  %v1931 = vadd.f32 %v1929, %v1930
  %v1932 = vsel %vm1756, %v1748, 0.0
  %v1933 = vadd.f32 %v1931, %v1932
  %v1934 = vsel %vm1756, %v1749, 0.0
  %v1935 = vadd.f32 %v1933, %v1934
  %v1936 = vsel %vm1756, %v1750, 0.0
  %v1937 = vadd.f32 %v1935, %v1936
  %v1938 = vsel %vm1756, %v1751, 0.0
  %v1939 = vadd.f32 %v1937, %v1938
  %v1940 = vsel %vm1756, %v1752, 0.0
  %v1941 = vadd.f32 %v1939, %v1940
  %v1942 = vsel %vm1756, %v1753, 0.0
  %v1943 = vadd.f32 %v1941, %v1942
  %v1944 = vsel %vm1756, %v1754, 0.0
  %v1945 = vadd.f32 %v1943, %v1944
  %v1946 = vsel %vm1756, %v1755, 0.0
  %v1947 = vadd.f32 %v1945, %v1946
  %v1948 = vrot.slane %v1947, 4
  %v1949 = vadd.f32 %v1947, %v1948
  %v1950 = vrot.slane %v1949, 2
  %v1951 = vadd.f32 %v1949, %v1950
  %v1952 = vrot.slane %v1951, 1
  %v1953 = vadd.f32 %v1951, %v1952
  %v1954 = vmul.f32 %v1692, %v1692
  %v1955 = vmul.f32 %v1693, %v1693
  %v1956 = vmul.f32 %v1694, %v1694
  %v1957 = vmul.f32 %v1695, %v1695
  %v1958 = vmul.f32 %v1696, %v1696
  %v1959 = vmul.f32 %v1697, %v1697
  %v1960 = vmul.f32 %v1698, %v1698
  %v1961 = vmul.f32 %v1699, %v1699
  %v1962 = vmul.f32 %v1700, %v1700
  %v1963 = vmul.f32 %v1701, %v1701
  %v1964 = vmul.f32 %v1702, %v1702
  %v1965 = vmul.f32 %v1703, %v1703
  %v1966 = vmul.f32 %v1704, %v1704
  %v1967 = vmul.f32 %v1705, %v1705
  %v1968 = vmul.f32 %v1706, %v1706
  %v1969 = vmul.f32 %v1707, %v1707
  %v1970 = vmul.f32 %v1708, %v1708
  %v1971 = vmul.f32 %v1709, %v1709
  %v1972 = vmul.f32 %v1710, %v1710
  %v1973 = vmul.f32 %v1711, %v1711
  %v1974 = vmul.f32 %v1712, %v1712
  %v1975 = vmul.f32 %v1713, %v1713
  %v1976 = vmul.f32 %v1714, %v1714
  %v1977 = vmul.f32 %v1715, %v1715
  %v1978 = vmul.f32 %v1716, %v1716
  %v1979 = vmul.f32 %v1717, %v1717
  %v1980 = vmul.f32 %v1718, %v1718
  %v1981 = vmul.f32 %v1719, %v1719
  %v1982 = vmul.f32 %v1720, %v1720
  %v1983 = vmul.f32 %v1721, %v1721
  %v1984 = vmul.f32 %v1722, %v1722
  %v1985 = vmul.f32 %v1723, %v1723
  %v1986 = vmul.f32 %v1724, %v1724
  %v1987 = vmul.f32 %v1725, %v1725
  %v1988 = vmul.f32 %v1726, %v1726
  %v1989 = vmul.f32 %v1727, %v1727
  %v1990 = vmul.f32 %v1728, %v1728
  %v1991 = vmul.f32 %v1729, %v1729
  %v1992 = vmul.f32 %v1730, %v1730
  %v1993 = vmul.f32 %v1731, %v1731
  %v1994 = vmul.f32 %v1732, %v1732
  %v1995 = vmul.f32 %v1733, %v1733
  %v1996 = vmul.f32 %v1734, %v1734
  %v1997 = vmul.f32 %v1735, %v1735
  %v1998 = vmul.f32 %v1736, %v1736
  %v1999 = vmul.f32 %v1737, %v1737
  %v2000 = vmul.f32 %v1738, %v1738
  %v2001 = vmul.f32 %v1739, %v1739
  %v2002 = vmul.f32 %v1740, %v1740
  %v2003 = vmul.f32 %v1741, %v1741
  %v2004 = vmul.f32 %v1742, %v1742
  %v2005 = vmul.f32 %v1743, %v1743
  %v2006 = vmul.f32 %v1744, %v1744
  %v2007 = vmul.f32 %v1745, %v1745
  %v2008 = vmul.f32 %v1746, %v1746
  %v2009 = vmul.f32 %v1747, %v1747
  %v2010 = vmul.f32 %v1748, %v1748
  %v2011 = vmul.f32 %v1749, %v1749
  %v2012 = vmul.f32 %v1750, %v1750
  %v2013 = vmul.f32 %v1751, %v1751
  %v2014 = vmul.f32 %v1752, %v1752
  %v2015 = vmul.f32 %v1753, %v1753
  %v2016 = vmul.f32 %v1754, %v1754
  %v2017 = vmul.f32 %v1755, %v1755
  %v2018 = vsel %vm1756, %v1954, 0.0
  %v2019 = vsel %vm1756, %v1955, 0.0
  %v2020 = vadd.f32 %v2018, %v2019
  %v2021 = vsel %vm1756, %v1956, 0.0
  %v2022 = vadd.f32 %v2020, %v2021
  %v2023 = vsel %vm1756, %v1957, 0.0
  %v2024 = vadd.f32 %v2022, %v2023
  %v2025 = vsel %vm1756, %v1958, 0.0
  %v2026 = vadd.f32 %v2024, %v2025
  %v2027 = vsel %vm1756, %v1959, 0.0
  %v2028 = vadd.f32 %v2026, %v2027
  %v2029 = vsel %vm1756, %v1960, 0.0
  %v2030 = vadd.f32 %v2028, %v2029
  %v2031 = vsel %vm1756, %v1961, 0.0
  %v2032 = vadd.f32 %v2030, %v2031
  %v2033 = vsel %vm1756, %v1962, 0.0
  %v2034 = vadd.f32 %v2032, %v2033
  %v2035 = vsel %vm1756, %v1963, 0.0
  %v2036 = vadd.f32 %v2034, %v2035
  %v2037 = vsel %vm1756, %v1964, 0.0
  %v2038 = vadd.f32 %v2036, %v2037
  %v2039 = vsel %vm1756, %v1965, 0.0
  %v2040 = vadd.f32 %v2038, %v2039
  %v2041 = vsel %vm1756, %v1966, 0.0
  %v2042 = vadd.f32 %v2040, %v2041
  %v2043 = vsel %vm1756, %v1967, 0.0
  %v2044 = vadd.f32 %v2042, %v2043
  %v2045 = vsel %vm1756, %v1968, 0.0
  %v2046 = vadd.f32 %v2044, %v2045
  %v2047 = vsel %vm1756, %v1969, 0.0
  %v2048 = vadd.f32 %v2046, %v2047
  %v2049 = vsel %vm1756, %v1970, 0.0
  %v2050 = vadd.f32 %v2048, %v2049
  %v2051 = vsel %vm1756, %v1971, 0.0
  %v2052 = vadd.f32 %v2050, %v2051
  %v2053 = vsel %vm1756, %v1972, 0.0
  %v2054 = vadd.f32 %v2052, %v2053
  %v2055 = vsel %vm1756, %v1973, 0.0
  %v2056 = vadd.f32 %v2054, %v2055
  %v2057 = vsel %vm1756, %v1974, 0.0
  %v2058 = vadd.f32 %v2056, %v2057
  %v2059 = vsel %vm1756, %v1975, 0.0
  %v2060 = vadd.f32 %v2058, %v2059
  %v2061 = vsel %vm1756, %v1976, 0.0
  %v2062 = vadd.f32 %v2060, %v2061
  %v2063 = vsel %vm1756, %v1977, 0.0
  %v2064 = vadd.f32 %v2062, %v2063
  %v2065 = vsel %vm1756, %v1978, 0.0
  %v2066 = vadd.f32 %v2064, %v2065
  %v2067 = vsel %vm1756, %v1979, 0.0
  %v2068 = vadd.f32 %v2066, %v2067
  %v2069 = vsel %vm1756, %v1980, 0.0
  %v2070 = vadd.f32 %v2068, %v2069
  %v2071 = vsel %vm1756, %v1981, 0.0
  %v2072 = vadd.f32 %v2070, %v2071
  %v2073 = vsel %vm1756, %v1982, 0.0
  %v2074 = vadd.f32 %v2072, %v2073
  %v2075 = vsel %vm1756, %v1983, 0.0
  %v2076 = vadd.f32 %v2074, %v2075
  %v2077 = vsel %vm1756, %v1984, 0.0
  %v2078 = vadd.f32 %v2076, %v2077
  %v2079 = vsel %vm1756, %v1985, 0.0
  %v2080 = vadd.f32 %v2078, %v2079
  %v2081 = vsel %vm1756, %v1986, 0.0
  %v2082 = vadd.f32 %v2080, %v2081
  %v2083 = vsel %vm1756, %v1987, 0.0
  %v2084 = vadd.f32 %v2082, %v2083
  %v2085 = vsel %vm1756, %v1988, 0.0
  %v2086 = vadd.f32 %v2084, %v2085
  %v2087 = vsel %vm1756, %v1989, 0.0
  %v2088 = vadd.f32 %v2086, %v2087
  %v2089 = vsel %vm1756, %v1990, 0.0
  %v2090 = vadd.f32 %v2088, %v2089
  %v2091 = vsel %vm1756, %v1991, 0.0
  %v2092 = vadd.f32 %v2090, %v2091
  %v2093 = vsel %vm1756, %v1992, 0.0
  %v2094 = vadd.f32 %v2092, %v2093
  %v2095 = vsel %vm1756, %v1993, 0.0
  %v2096 = vadd.f32 %v2094, %v2095
  %v2097 = vsel %vm1756, %v1994, 0.0
  %v2098 = vadd.f32 %v2096, %v2097
  %v2099 = vsel %vm1756, %v1995, 0.0
  %v2100 = vadd.f32 %v2098, %v2099
  %v2101 = vsel %vm1756, %v1996, 0.0
  %v2102 = vadd.f32 %v2100, %v2101
  %v2103 = vsel %vm1756, %v1997, 0.0
  %v2104 = vadd.f32 %v2102, %v2103
  %v2105 = vsel %vm1756, %v1998, 0.0
  %v2106 = vadd.f32 %v2104, %v2105
  %v2107 = vsel %vm1756, %v1999, 0.0
  %v2108 = vadd.f32 %v2106, %v2107
  %v2109 = vsel %vm1756, %v2000, 0.0
  %v2110 = vadd.f32 %v2108, %v2109
  %v2111 = vsel %vm1756, %v2001, 0.0
  %v2112 = vadd.f32 %v2110, %v2111
  %v2113 = vsel %vm1756, %v2002, 0.0
  %v2114 = vadd.f32 %v2112, %v2113
  %v2115 = vsel %vm1756, %v2003, 0.0
  %v2116 = vadd.f32 %v2114, %v2115
  %v2117 = vsel %vm1756, %v2004, 0.0
  %v2118 = vadd.f32 %v2116, %v2117
  %v2119 = vsel %vm1756, %v2005, 0.0
  %v2120 = vadd.f32 %v2118, %v2119
  %v2121 = vsel %vm1756, %v2006, 0.0
  %v2122 = vadd.f32 %v2120, %v2121
  %v2123 = vsel %vm1756, %v2007, 0.0
  %v2124 = vadd.f32 %v2122, %v2123
  %v2125 = vsel %vm1756, %v2008, 0.0
  %v2126 = vadd.f32 %v2124, %v2125
  %v2127 = vsel %vm1756, %v2009, 0.0
  %v2128 = vadd.f32 %v2126, %v2127
  %v2129 = vsel %vm1756, %v2010, 0.0
  %v2130 = vadd.f32 %v2128, %v2129
  %v2131 = vsel %vm1756, %v2011, 0.0
  %v2132 = vadd.f32 %v2130, %v2131
  %v2133 = vsel %vm1756, %v2012, 0.0
  %v2134 = vadd.f32 %v2132, %v2133
  %v2135 = vsel %vm1756, %v2013, 0.0
  %v2136 = vadd.f32 %v2134, %v2135
  %v2137 = vsel %vm1756, %v2014, 0.0
  %v2138 = vadd.f32 %v2136, %v2137
  %v2139 = vsel %vm1756, %v2015, 0.0
  %v2140 = vadd.f32 %v2138, %v2139
  %v2141 = vsel %vm1756, %v2016, 0.0
  %v2142 = vadd.f32 %v2140, %v2141
  %v2143 = vsel %vm1756, %v2017, 0.0
  %v2144 = vadd.f32 %v2142, %v2143
  %v2145 = vrot.slane %v2144, 4
  %v2146 = vadd.f32 %v2144, %v2145
  %v2147 = vrot.slane %v2146, 2
  %v2148 = vadd.f32 %v2146, %v2147
  %v2149 = vrot.slane %v2148, 1
  %v2150 = vadd.f32 %v2148, %v2149
  %vm2151 = vcmask 1040384
  %v2152 = vsel %vm2151, %v1953, %v2150
  %vm2153 = vcmask 58368
  %2154 = vst.msk [vmem:[%s3] sm:$0x3] %vm2153, %v2152
  // Predicated region
  $region10: #{convblock_forward.8} parent=0 // pred_check
    _
  $region11: #{convblock_forward.8} parent=0 // pred_check_branch
    %2156 = sbr.rel (0) target = $region13
  $region12: #{convblock_forward.8} parent=0 // pred_region
    _
  $region13: #{convblock_forward.8} parent=0 // pred_fallthru
    _
  // Predicated region
  $region14: #{convblock_forward.8} parent=0 // pred_check
    _
  $region15: #{convblock_forward.8} parent=0 // pred_check_branch
    %2158 = sbr.rel (0) target = $region17
  $region16: #{convblock_forward.8} parent=0 // pred_region
    _
  $region17: #{convblock_forward.8} parent=0 // pred_fallthru
    _
  // Predicated region
  $region18: #{convblock_forward.8} parent=0 // pred_check
    _
  $region19: #{convblock_forward.8} parent=0 // pred_check_branch
    %2160 = sbr.rel (0) target = $region21
  $region20: #{convblock_forward.8} parent=0 // pred_region
    _
  $region21: #{convblock_forward.8} parent=0 // pred_fallthru
    _
  // Predicated region
  $region22: #{convblock_forward.8} parent=0 // pred_check
    _
  $region23: #{convblock_forward.8} parent=0 // pred_check_branch
    %2162 = sbr.rel (0) target = $region25
  $region24: #{convblock_forward.8} parent=0 // pred_region
    _
  $region25: #{convblock_forward.8} parent=0 // pred_fallthru
    _

</llo_original>
